<compile_context>
chip_gen: v7x
topology: tpu7x:2x2x1
jax: 0.10.0
libtpu: 0.0.40
codegen_flags: <defaults>
</compile_context>

<pallas_src>
import numpy as np
import jax
import jax.numpy as jnp
from jax import lax
from jax.experimental import pallas as pl
from jax.experimental.pallas import tpu as pltpu


def make_interp_matrix(out_size, in_size):
    """1-D bilinear interpolation matrix, PyTorch align_corners=True."""
    if out_size == 1 or in_size == 1:
        R = np.zeros((out_size, in_size), np.float32)
        R[:, 0] = 1.0
        return jnp.asarray(R)
    src = np.arange(out_size, dtype=np.float64) * (in_size - 1) / (out_size - 1)
    p0 = np.clip(np.floor(src).astype(np.int64), 0, in_size - 1)
    p1 = np.clip(p0 + 1, 0, in_size - 1)
    frac = src - p0
    R = np.zeros((out_size, in_size), np.float64)
    R[np.arange(out_size), p0] += 1.0 - frac
    R[np.arange(out_size), p1] += frac
    return jnp.asarray(R.astype(np.float32))


def make_conv3x3_masks(H, W):
    """(H*W, 9) float mask: tap (ki,kj) valid at output (i,j) iff the sampled
    input position (i+ki-1, j+kj-1) is inside the image (zero 'SAME' padding)."""
    ii, jj = np.meshgrid(np.arange(H), np.arange(W), indexing="ij")
    m = np.zeros((H * W, 9), np.float32)
    for ki in range(3):
        for kj in range(3):
            valid = np.ones((H, W), bool)
            if ki == 0:
                valid &= ii >= 1
            if ki == 2:
                valid &= ii <= H - 2
            if kj == 0:
                valid &= jj >= 1
            if kj == 2:
                valid &= jj <= W - 2
            m[:, ki * 3 + kj] = valid.reshape(-1)
    return jnp.asarray(m)


def fold_bn(key, c, eps=1e-5):
    """Deterministic synthetic BN params folded to (scale, bias): shape (2, c)."""
    k1, k2, k3, k4 = jax.random.split(key, 4)
    gamma = jax.random.uniform(k1, (c,), minval=0.5, maxval=1.5)
    beta = 0.1 * jax.random.normal(k2, (c,))
    mean = 0.1 * jax.random.normal(k3, (c,))
    var = jax.random.uniform(k4, (c,), minval=0.5, maxval=1.5)
    scale = gamma / jnp.sqrt(var + eps)
    bias = beta - mean * scale
    return jnp.stack([scale, bias], axis=0).astype(jnp.float32)


def _shift_rows(arr, off):
    """result[q] = arr[(q + off) % n] along axis 0, for a static Python `off`.

    Written as a concatenation of two static sublane slices so the shift
    direction is correct by construction (equivalent to
    pltpu.roll(arr, (-off) % n, axis=0))."""
    n = arr.shape[0]
    s = off % n
    if s == 0:
        return arr
    return jnp.concatenate([arr[s:], arr[:s]], axis=0)


def fuse3_pallas(x, x1, params):
    """x: (N,H,W,C0) f32, x1: (N,h1,w1,C1) f32. Returns (y, x1)."""
    N, H, W, C0 = x.shape
    _, h1, w1, C1 = x1.shape
    w11, sb11, w12, sb12, w13, sb13 = params  # w11:(C0,C0) w12:(C1,C0) w13:(9,C0,C0)

    # ---- wrapper-side parameter prep (all exact, zero in-kernel cost) --------
    # Fold BN scale (per output channel) into the matmul weights.
    w11s = (w11 * sb11[0][None, :]).astype(jnp.float32)              # (C0, C0)
    b11 = sb11[1].reshape(1, C0)
    w12s = (w12 * sb12[0][None, :]).astype(jnp.float32)              # (C1, C0)
    b12 = sb12[1].reshape(1, C0)
    # 3x3 taps concatenated along the OUTPUT dim -> one wide lane-dense matmul.
    w13cat = jnp.transpose(w13, (1, 0, 2)).reshape(C0, 9 * C0)       # (C0, 9*C0)
    w13cats = (w13cat * jnp.tile(sb13[0], 9)[None, :]).astype(jnp.float32)
    b13 = sb13[1].reshape(1, C0)

    # Separable align_corners=True interpolation matrices (no dense kron).
    rh = make_interp_matrix(H, h1)                                   # (H, h1)
    rw = make_interp_matrix(W, w1)                                   # (W, w1)
    rhrep = jnp.repeat(rh, W, axis=0)                                # (H*W, h1)

    # Precomputed boundary masks for the 9 taps of the 3x3 conv.
    mask9 = make_conv3x3_masks(H, W)                                 # (H*W, 9)

    # Wrapper-side reshapes (free layout plumbing): no reshapes inside kernel.
    x_f = x.reshape(N, H * W, C0)
    x1_f = x1.reshape(N, h1 * w1, C1)

    def kernel(x_ref, x1_ref, w11_ref, b11_ref, w12_ref, b12_ref,
               rw_ref, rhrep_ref, w13c_ref, b13_ref, m_ref, o_ref):
        f32 = jnp.float32

        # --- c11: 1x1 conv (BN scale pre-folded) + bias + ReLU -----------------
        a = jnp.dot(x_ref[0], w11_ref[...], preferred_element_type=f32)
        a = jnp.maximum(a + b11_ref[...], 0.0)                       # (H*W, C0)

        # --- c12 on x1 ---------------------------------------------------------
        b = jnp.dot(x1_ref[0], w12_ref[...], preferred_element_type=f32)
        b = jnp.maximum(b + b12_ref[...], 0.0)                       # (h1*w1, C0)

        # --- separable bilinear upsample (align_corners=True), fused into s ----
        # W-interp: one small MXU matmul per low-res row (8-aligned slices of b)
        # H-interp: FMA against row-repeated Rh, accumulated directly into s=a.
        rw_m = rw_ref[...]                                # (W, w1)
        rhrep_m = rhrep_ref[...]                          # (H*W, h1)
        s = a
        for h in range(h1):
            bh = b[h * w1:(h + 1) * w1, :]                # (w1, C0)
            twh = jnp.dot(rw_m, bh, preferred_element_type=f32)      # (W, C0)
            rowt = jnp.broadcast_to(twh[None, :, :], (H, W, C0)).reshape(H * W, C0)
            s = s + rhrep_m[:, h:h + 1] * rowt            # (H*W, C0)

        # --- c13: 3x3 conv as ONE wide matmul + 9 shifted/masked adds ----------
        t = jnp.dot(s, w13c_ref[...], preferred_element_type=f32)    # (H*W, 9*C0)

        acc = None
        for ki in range(3):
            for kj in range(3):
                k = ki * 3 + kj
                tap = t[:, k * C0:(k + 1) * C0]           # (H*W, C0)
                off = (ki - 1) * W + (kj - 1)             # flat input offset
                if off != 0:
                    tap = _shift_rows(tap, off)
                if k != 4:                                # center tap needs no mask
                    tap = tap * m_ref[:, k:k + 1]
                acc = tap if acc is None else acc + tap

        out = jnp.maximum(acc + b13_ref[...], 0.0)
        o_ref[0] = out.astype(o_ref.dtype)

    out = pl.pallas_call(
        kernel,
        out_shape=jax.ShapeDtypeStruct((N, H * W, C0), x.dtype),
        grid_spec=pltpu.PrefetchScalarGridSpec(
            num_scalar_prefetch=0,
            grid=(N,),
            in_specs=[
                pl.BlockSpec((1, H * W, C0), lambda n: (n, 0, 0)),
                pl.BlockSpec((1, h1 * w1, C1), lambda n: (n, 0, 0)),
                pl.BlockSpec((C0, C0), lambda n: (0, 0)),
                pl.BlockSpec((1, C0), lambda n: (0, 0)),
                pl.BlockSpec((C1, C0), lambda n: (0, 0)),
                pl.BlockSpec((1, C0), lambda n: (0, 0)),
                pl.BlockSpec((W, w1), lambda n: (0, 0)),
                pl.BlockSpec((H * W, h1), lambda n: (0, 0)),
                pl.BlockSpec((C0, 9 * C0), lambda n: (0, 0)),
                pl.BlockSpec((1, C0), lambda n: (0, 0)),
                pl.BlockSpec((H * W, 9), lambda n: (0, 0)),
            ],
            out_specs=pl.BlockSpec((1, H * W, C0), lambda n: (n, 0, 0)),
        ),
        compiler_params=pltpu.CompilerParams(
            dimension_semantics=("parallel",),      # N is independent -> 2 TCs on v7x
            vmem_limit_bytes=32 * 1024 * 1024),
    )(x_f, x1_f, w11s, b11, w12s, b12, rw, rhrep, w13cats, b13, mask9)

    return out.reshape(N, H, W, C0), x1


# ----------------------------- pure-JAX reference -----------------------------

def bilinear_resize_align_corners(img, out_h, out_w):
    """Independent gather-based bilinear resize, PyTorch align_corners=True."""
    n, h, w, c = img.shape

    def coords(out_size, in_size):
        if out_size == 1 or in_size == 1:
            z = np.zeros(out_size, np.int64)
            return z, z, np.zeros(out_size, np.float32)
        src = np.arange(out_size, dtype=np.float64) * (in_size - 1) / (out_size - 1)
        p0 = np.clip(np.floor(src).astype(np.int64), 0, in_size - 1)
        p1 = np.clip(p0 + 1, 0, in_size - 1)
        return p0, p1, (src - p0).astype(np.float32)

    y0, y1, fy = coords(out_h, h)
    x0, x1_, fx = coords(out_w, w)
    fy = jnp.asarray(fy)[None, :, None, None]
    fx = jnp.asarray(fx)[None, None, :, None]
    tl = img[:, y0][:, :, x0]
    tr = img[:, y0][:, :, x1_]
    bl = img[:, y1][:, :, x0]
    br = img[:, y1][:, :, x1_]
    top = tl * (1.0 - fx) + tr * fx
    bot = bl * (1.0 - fx) + br * fx
    return top * (1.0 - fy) + bot * fy


def fuse3_reference(x, x1, params):
    """Pure-JAX reference (same folded-BN eval semantics, unfolded weights)."""
    w11, sb11, w12, sb12, w13, sb13 = params
    N, H, W, C0 = x.shape
    hp = lax.Precision.HIGHEST
    a = jnp.einsum('nhwc,cd->nhwd', x, w11, precision=hp)
    a = jnp.maximum(a * sb11[0] + sb11[1], 0.0)
    b = jnp.einsum('nhwc,cd->nhwd', x1, w12, precision=hp)
    b = jnp.maximum(b * sb12[0] + sb12[1], 0.0)
    up = bilinear_resize_align_corners(b, H, W)
    s = a + up
    w_hwio = w13.reshape(3, 3, C0, C0)
    conv = lax.conv_general_dilated(
        s, w_hwio, window_strides=(1, 1), padding='SAME',
        dimension_numbers=('NHWC', 'HWIO', 'NHWC'), precision=hp)
    return jnp.maximum(conv * sb13[0] + sb13[1], 0.0)


if __name__ == "__main__":
    key = jax.random.PRNGKey(0)
    # Small shapes consistent with FUSE3(in_channels_list=(C0, C1)):
    N, C0, C1 = 2, 32, 64
    H, W = 16, 16          # high-res branch (x)
    h1, w1 = 8, 8          # low-res branch (x1), upsampled to (H, W)
    ks = jax.random.split(key, 8)

    x = jax.random.normal(ks[0], (N, H, W, C0), jnp.float32)
    x1 = jax.random.normal(ks[1], (N, h1, w1, C1), jnp.float32)

    # Conv weights in PyTorch (out, in, kh, kw) layout, reorganized for matmul.
    w11_t = 0.1 * jax.random.normal(ks[2], (C0, C0, 1, 1), jnp.float32)
    w12_t = 0.1 * jax.random.normal(ks[3], (C0, C1, 1, 1), jnp.float32)
    w13_t = 0.1 * jax.random.normal(ks[4], (C0, C0, 3, 3), jnp.float32)
    w11 = jnp.transpose(w11_t[:, :, 0, 0], (1, 0))                 # (Cin, Cout)
    w12 = jnp.transpose(w12_t[:, :, 0, 0], (1, 0))                 # (C1, C0)
    w13 = jnp.transpose(w13_t, (2, 3, 1, 0)).reshape(9, C0, C0)    # (kh*kw, Cin, Cout)

    # BatchNorm (eval mode, running stats) folded to per-channel scale/bias.
    # TODO(synk): training-mode BN (batch-stat update) is not implemented.
    sb11 = fold_bn(ks[5], C0)
    sb12 = fold_bn(ks[6], C0)
    sb13 = fold_bn(ks[7], C0)
    params = (w11, sb11, w12, sb12, w13, sb13)

    y, x1_out = fuse3_pallas(x, x1, params)
    y = jax.block_until_ready(y)

    ref = fuse3_reference(x, x1, params)
    err = float(np.max(np.abs(np.asarray(y) - np.asarray(ref))))
    assert np.allclose(np.asarray(y), np.asarray(ref), rtol=1e-3, atol=1e-3), err

    print("KERNEL_OK")
</pallas_src>

<mosaic_0001>
module attributes {stable_mosaic.version = 11 : i64} {
  func.func @kernel(%arg0: i32, %arg1: memref<1x256x32xf32, #tpu.memory_space<vmem>>, %arg2: memref<1x64x64xf32, #tpu.memory_space<vmem>>, %arg3: memref<32x32xf32, #tpu.memory_space<vmem>>, %arg4: memref<1x32xf32, #tpu.memory_space<vmem>>, %arg5: memref<64x32xf32, #tpu.memory_space<vmem>>, %arg6: memref<1x32xf32, #tpu.memory_space<vmem>>, %arg7: memref<16x8xf32, #tpu.memory_space<vmem>>, %arg8: memref<256x8xf32, #tpu.memory_space<vmem>>, %arg9: memref<32x288xf32, #tpu.memory_space<vmem>>, %arg10: memref<1x32xf32, #tpu.memory_space<vmem>>, %arg11: memref<256x9xf32, #tpu.memory_space<vmem>>, %arg12: memref<1x256x32xf32, #tpu.memory_space<vmem>>) attributes {dimension_semantics = [#tpu.dimension_semantics<parallel>], iteration_bounds = array<i64: 2>, scalar_prefetch = 0 : i64, scratch_operands = 0 : i64, tpu.core_type = #tpu.core_type<tc>, window_params = [{transform_indices = @transform_0, window_bounds = array<i64: 1, 256, 32>}, {transform_indices = @transform_1, window_bounds = array<i64: 1, 64, 64>}, {pipeline_mode = #tpu.pipeline_mode<synchronous>, transform_indices = @transform_2, window_bounds = array<i64: 32, 32>}, {pipeline_mode = #tpu.pipeline_mode<synchronous>, transform_indices = @transform_3, window_bounds = array<i64: 1, 32>}, {pipeline_mode = #tpu.pipeline_mode<synchronous>, transform_indices = @transform_4, window_bounds = array<i64: 64, 32>}, {pipeline_mode = #tpu.pipeline_mode<synchronous>, transform_indices = @transform_5, window_bounds = array<i64: 1, 32>}, {pipeline_mode = #tpu.pipeline_mode<synchronous>, transform_indices = @transform_6, window_bounds = array<i64: 16, 8>}, {pipeline_mode = #tpu.pipeline_mode<synchronous>, transform_indices = @transform_7, window_bounds = array<i64: 256, 8>}, {pipeline_mode = #tpu.pipeline_mode<synchronous>, transform_indices = @transform_8, window_bounds = array<i64: 32, 288>}, {pipeline_mode = #tpu.pipeline_mode<synchronous>, transform_indices = @transform_9, window_bounds = array<i64: 1, 32>}, {pipeline_mode = #tpu.pipeline_mode<synchronous>, transform_indices = @transform_10, window_bounds = array<i64: 256, 9>}, {transform_indices = @transform_11, window_bounds = array<i64: 1, 256, 32>}]} {
    %c0 = arith.constant 0 : index
    %c0_0 = arith.constant 0 : index
    %c0_1 = arith.constant 0 : index
    %0 = vector.load %arg1[%c0, %c0_0, %c0_1] : memref<1x256x32xf32, #tpu.memory_space<vmem>>, vector<1x256x32xf32>
    %1 = vector.shape_cast %0 : vector<1x256x32xf32> to vector<256x32xf32>
    %c0_2 = arith.constant 0 : index
    %c0_3 = arith.constant 0 : index
    %2 = vector.load %arg3[%c0_2, %c0_3] : memref<32x32xf32, #tpu.memory_space<vmem>>, vector<32x32xf32>
    %cst = arith.constant dense<0.000000e+00> : vector<256x32xf32>
    %3 = tpu.matmul %1, %2, %cst {dimension_numbers = #tpu.dot_dimension_numbers<[1], [0], [0], [1], [0, 0, 1, 1], [], []>} : vector<256x32xf32>, vector<32x32xf32>, vector<256x32xf32> -> vector<256x32xf32>
    %c0_4 = arith.constant 0 : index
    %c0_5 = arith.constant 0 : index
    %4 = vector.load %arg4[%c0_4, %c0_5] : memref<1x32xf32, #tpu.memory_space<vmem>>, vector<1x32xf32>
    %5 = vector.broadcast %4 : vector<1x32xf32> to vector<256x32xf32>
    %6 = arith.addf %3, %5 : vector<256x32xf32>
    %cst_6 = arith.constant 0.000000e+00 : f32
    %7 = vector.broadcast %cst_6 : f32 to vector<256x32xf32>
    %8 = arith.maximumf %6, %7 : vector<256x32xf32>
    %c0_7 = arith.constant 0 : index
    %c0_8 = arith.constant 0 : index
    %c0_9 = arith.constant 0 : index
    %9 = vector.load %arg2[%c0_7, %c0_8, %c0_9] : memref<1x64x64xf32, #tpu.memory_space<vmem>>, vector<1x64x64xf32>
    %10 = vector.shape_cast %9 : vector<1x64x64xf32> to vector<64x64xf32>
    %c0_10 = arith.constant 0 : index
    %c0_11 = arith.constant 0 : index
    %11 = vector.load %arg5[%c0_10, %c0_11] : memref<64x32xf32, #tpu.memory_space<vmem>>, vector<64x32xf32>
    %cst_12 = arith.constant dense<0.000000e+00> : vector<64x32xf32>
    %12 = tpu.matmul %10, %11, %cst_12 {dimension_numbers = #tpu.dot_dimension_numbers<[1], [0], [0], [1], [0, 0, 1, 1], [], []>} : vector<64x64xf32>, vector<64x32xf32>, vector<64x32xf32> -> vector<64x32xf32>
    %c0_13 = arith.constant 0 : index
    %c0_14 = arith.constant 0 : index
    %13 = vector.load %arg6[%c0_13, %c0_14] : memref<1x32xf32, #tpu.memory_space<vmem>>, vector<1x32xf32>
    %14 = vector.broadcast %13 : vector<1x32xf32> to vector<64x32xf32>
    %15 = arith.addf %12, %14 : vector<64x32xf32>
    %cst_15 = arith.constant 0.000000e+00 : f32
    %16 = vector.broadcast %cst_15 : f32 to vector<64x32xf32>
    %17 = arith.maximumf %15, %16 : vector<64x32xf32>
    %c0_16 = arith.constant 0 : index
    %c0_17 = arith.constant 0 : index
    %18 = vector.load %arg7[%c0_16, %c0_17] : memref<16x8xf32, #tpu.memory_space<vmem>>, vector<16x8xf32>
    %c0_18 = arith.constant 0 : index
    %c0_19 = arith.constant 0 : index
    %19 = vector.load %arg8[%c0_18, %c0_19] : memref<256x8xf32, #tpu.memory_space<vmem>>, vector<256x8xf32>
    %20 = vector.extract_strided_slice %17 {offsets = [0, 0], sizes = [8, 32], strides = [1, 1]} : vector<64x32xf32> to vector<8x32xf32>
    %cst_20 = arith.constant dense<0.000000e+00> : vector<16x32xf32>
    %21 = tpu.matmul %18, %20, %cst_20 {dimension_numbers = #tpu.dot_dimension_numbers<[1], [0], [0], [1], [0, 0, 1, 1], [], []>} : vector<16x8xf32>, vector<8x32xf32>, vector<16x32xf32> -> vector<16x32xf32>
    %22 = vector.shape_cast %21 : vector<16x32xf32> to vector<1x16x32xf32>
    %23 = vector.shape_cast %22 : vector<1x16x32xf32> to vector<1x16x32xf32>
    %24 = vector.broadcast %23 : vector<1x16x32xf32> to vector<16x16x32xf32>
    %25 = vector.shape_cast %24 : vector<16x16x32xf32> to vector<256x32xf32>
    %26 = vector.extract_strided_slice %19 {offsets = [0, 0], sizes = [256, 1], strides = [1, 1]} : vector<256x8xf32> to vector<256x1xf32>
    %27 = vector.broadcast %26 : vector<256x1xf32> to vector<256x32xf32>
    %28 = arith.mulf %27, %25 : vector<256x32xf32>
    %29 = arith.addf %8, %28 : vector<256x32xf32>
    %30 = vector.extract_strided_slice %17 {offsets = [8, 0], sizes = [8, 32], strides = [1, 1]} : vector<64x32xf32> to vector<8x32xf32>
    %cst_21 = arith.constant dense<0.000000e+00> : vector<16x32xf32>
    %31 = tpu.matmul %18, %30, %cst_21 {dimension_numbers = #tpu.dot_dimension_numbers<[1], [0], [0], [1], [0, 0, 1, 1], [], []>} : vector<16x8xf32>, vector<8x32xf32>, vector<16x32xf32> -> vector<16x32xf32>
    %32 = vector.shape_cast %31 : vector<16x32xf32> to vector<1x16x32xf32>
    %33 = vector.shape_cast %32 : vector<1x16x32xf32> to vector<1x16x32xf32>
    %34 = vector.broadcast %33 : vector<1x16x32xf32> to vector<16x16x32xf32>
    %35 = vector.shape_cast %34 : vector<16x16x32xf32> to vector<256x32xf32>
    %36 = vector.extract_strided_slice %19 {offsets = [0, 1], sizes = [256, 1], strides = [1, 1]} : vector<256x8xf32> to vector<256x1xf32>
    %37 = vector.broadcast %36 : vector<256x1xf32> to vector<256x32xf32>
    %38 = arith.mulf %37, %35 : vector<256x32xf32>
    %39 = arith.addf %29, %38 : vector<256x32xf32>
    %40 = vector.extract_strided_slice %17 {offsets = [16, 0], sizes = [8, 32], strides = [1, 1]} : vector<64x32xf32> to vector<8x32xf32>
    %cst_22 = arith.constant dense<0.000000e+00> : vector<16x32xf32>
    %41 = tpu.matmul %18, %40, %cst_22 {dimension_numbers = #tpu.dot_dimension_numbers<[1], [0], [0], [1], [0, 0, 1, 1], [], []>} : vector<16x8xf32>, vector<8x32xf32>, vector<16x32xf32> -> vector<16x32xf32>
    %42 = vector.shape_cast %41 : vector<16x32xf32> to vector<1x16x32xf32>
    %43 = vector.shape_cast %42 : vector<1x16x32xf32> to vector<1x16x32xf32>
    %44 = vector.broadcast %43 : vector<1x16x32xf32> to vector<16x16x32xf32>
    %45 = vector.shape_cast %44 : vector<16x16x32xf32> to vector<256x32xf32>
    %46 = vector.extract_strided_slice %19 {offsets = [0, 2], sizes = [256, 1], strides = [1, 1]} : vector<256x8xf32> to vector<256x1xf32>
    %47 = vector.broadcast %46 : vector<256x1xf32> to vector<256x32xf32>
    %48 = arith.mulf %47, %45 : vector<256x32xf32>
    %49 = arith.addf %39, %48 : vector<256x32xf32>
    %50 = vector.extract_strided_slice %17 {offsets = [24, 0], sizes = [8, 32], strides = [1, 1]} : vector<64x32xf32> to vector<8x32xf32>
    %cst_23 = arith.constant dense<0.000000e+00> : vector<16x32xf32>
    %51 = tpu.matmul %18, %50, %cst_23 {dimension_numbers = #tpu.dot_dimension_numbers<[1], [0], [0], [1], [0, 0, 1, 1], [], []>} : vector<16x8xf32>, vector<8x32xf32>, vector<16x32xf32> -> vector<16x32xf32>
    %52 = vector.shape_cast %51 : vector<16x32xf32> to vector<1x16x32xf32>
    %53 = vector.shape_cast %52 : vector<1x16x32xf32> to vector<1x16x32xf32>
    %54 = vector.broadcast %53 : vector<1x16x32xf32> to vector<16x16x32xf32>
    %55 = vector.shape_cast %54 : vector<16x16x32xf32> to vector<256x32xf32>
    %56 = vector.extract_strided_slice %19 {offsets = [0, 3], sizes = [256, 1], strides = [1, 1]} : vector<256x8xf32> to vector<256x1xf32>
    %57 = vector.broadcast %56 : vector<256x1xf32> to vector<256x32xf32>
    %58 = arith.mulf %57, %55 : vector<256x32xf32>
    %59 = arith.addf %49, %58 : vector<256x32xf32>
    %60 = vector.extract_strided_slice %17 {offsets = [32, 0], sizes = [8, 32], strides = [1, 1]} : vector<64x32xf32> to vector<8x32xf32>
    %cst_24 = arith.constant dense<0.000000e+00> : vector<16x32xf32>
    %61 = tpu.matmul %18, %60, %cst_24 {dimension_numbers = #tpu.dot_dimension_numbers<[1], [0], [0], [1], [0, 0, 1, 1], [], []>} : vector<16x8xf32>, vector<8x32xf32>, vector<16x32xf32> -> vector<16x32xf32>
    %62 = vector.shape_cast %61 : vector<16x32xf32> to vector<1x16x32xf32>
    %63 = vector.shape_cast %62 : vector<1x16x32xf32> to vector<1x16x32xf32>
    %64 = vector.broadcast %63 : vector<1x16x32xf32> to vector<16x16x32xf32>
    %65 = vector.shape_cast %64 : vector<16x16x32xf32> to vector<256x32xf32>
    %66 = vector.extract_strided_slice %19 {offsets = [0, 4], sizes = [256, 1], strides = [1, 1]} : vector<256x8xf32> to vector<256x1xf32>
    %67 = vector.broadcast %66 : vector<256x1xf32> to vector<256x32xf32>
    %68 = arith.mulf %67, %65 : vector<256x32xf32>
    %69 = arith.addf %59, %68 : vector<256x32xf32>
    %70 = vector.extract_strided_slice %17 {offsets = [40, 0], sizes = [8, 32], strides = [1, 1]} : vector<64x32xf32> to vector<8x32xf32>
    %cst_25 = arith.constant dense<0.000000e+00> : vector<16x32xf32>
    %71 = tpu.matmul %18, %70, %cst_25 {dimension_numbers = #tpu.dot_dimension_numbers<[1], [0], [0], [1], [0, 0, 1, 1], [], []>} : vector<16x8xf32>, vector<8x32xf32>, vector<16x32xf32> -> vector<16x32xf32>
    %72 = vector.shape_cast %71 : vector<16x32xf32> to vector<1x16x32xf32>
    %73 = vector.shape_cast %72 : vector<1x16x32xf32> to vector<1x16x32xf32>
    %74 = vector.broadcast %73 : vector<1x16x32xf32> to vector<16x16x32xf32>
    %75 = vector.shape_cast %74 : vector<16x16x32xf32> to vector<256x32xf32>
    %76 = vector.extract_strided_slice %19 {offsets = [0, 5], sizes = [256, 1], strides = [1, 1]} : vector<256x8xf32> to vector<256x1xf32>
    %77 = vector.broadcast %76 : vector<256x1xf32> to vector<256x32xf32>
    %78 = arith.mulf %77, %75 : vector<256x32xf32>
    %79 = arith.addf %69, %78 : vector<256x32xf32>
    %80 = vector.extract_strided_slice %17 {offsets = [48, 0], sizes = [8, 32], strides = [1, 1]} : vector<64x32xf32> to vector<8x32xf32>
    %cst_26 = arith.constant dense<0.000000e+00> : vector<16x32xf32>
    %81 = tpu.matmul %18, %80, %cst_26 {dimension_numbers = #tpu.dot_dimension_numbers<[1], [0], [0], [1], [0, 0, 1, 1], [], []>} : vector<16x8xf32>, vector<8x32xf32>, vector<16x32xf32> -> vector<16x32xf32>
    %82 = vector.shape_cast %81 : vector<16x32xf32> to vector<1x16x32xf32>
    %83 = vector.shape_cast %82 : vector<1x16x32xf32> to vector<1x16x32xf32>
    %84 = vector.broadcast %83 : vector<1x16x32xf32> to vector<16x16x32xf32>
    %85 = vector.shape_cast %84 : vector<16x16x32xf32> to vector<256x32xf32>
    %86 = vector.extract_strided_slice %19 {offsets = [0, 6], sizes = [256, 1], strides = [1, 1]} : vector<256x8xf32> to vector<256x1xf32>
    %87 = vector.broadcast %86 : vector<256x1xf32> to vector<256x32xf32>
    %88 = arith.mulf %87, %85 : vector<256x32xf32>
    %89 = arith.addf %79, %88 : vector<256x32xf32>
    %90 = vector.extract_strided_slice %17 {offsets = [56, 0], sizes = [8, 32], strides = [1, 1]} : vector<64x32xf32> to vector<8x32xf32>
    %cst_27 = arith.constant dense<0.000000e+00> : vector<16x32xf32>
    %91 = tpu.matmul %18, %90, %cst_27 {dimension_numbers = #tpu.dot_dimension_numbers<[1], [0], [0], [1], [0, 0, 1, 1], [], []>} : vector<16x8xf32>, vector<8x32xf32>, vector<16x32xf32> -> vector<16x32xf32>
    %92 = vector.shape_cast %91 : vector<16x32xf32> to vector<1x16x32xf32>
    %93 = vector.shape_cast %92 : vector<1x16x32xf32> to vector<1x16x32xf32>
    %94 = vector.broadcast %93 : vector<1x16x32xf32> to vector<16x16x32xf32>
    %95 = vector.shape_cast %94 : vector<16x16x32xf32> to vector<256x32xf32>
    %96 = vector.extract_strided_slice %19 {offsets = [0, 7], sizes = [256, 1], strides = [1, 1]} : vector<256x8xf32> to vector<256x1xf32>
    %97 = vector.broadcast %96 : vector<256x1xf32> to vector<256x32xf32>
    %98 = arith.mulf %97, %95 : vector<256x32xf32>
    %99 = arith.addf %89, %98 : vector<256x32xf32>
    %c0_28 = arith.constant 0 : index
    %c0_29 = arith.constant 0 : index
    %100 = vector.load %arg9[%c0_28, %c0_29] : memref<32x288xf32, #tpu.memory_space<vmem>>, vector<32x288xf32>
    %cst_30 = arith.constant dense<0.000000e+00> : vector<256x288xf32>
    %101 = tpu.matmul %99, %100, %cst_30 {dimension_numbers = #tpu.dot_dimension_numbers<[1], [0], [0], [1], [0, 0, 1, 1], [], []>} : vector<256x32xf32>, vector<32x288xf32>, vector<256x288xf32> -> vector<256x288xf32>
    %102 = vector.extract_strided_slice %101 {offsets = [0, 0], sizes = [256, 32], strides = [1, 1]} : vector<256x288xf32> to vector<256x32xf32>
    %103 = vector.extract_strided_slice %102 {offsets = [239, 0], sizes = [17, 32], strides = [1, 1]} : vector<256x32xf32> to vector<17x32xf32>
    %104 = vector.extract_strided_slice %102 {offsets = [0, 0], sizes = [239, 32], strides = [1, 1]} : vector<256x32xf32> to vector<239x32xf32>
    %105 = tpu.concatenate %103, %104 in 0 : vector<17x32xf32>, vector<239x32xf32> -> vector<256x32xf32>
    %c0_31 = arith.constant 0 : index
    %c0_32 = arith.constant 0 : index
    %106 = vector.load %arg11[%c0_31, %c0_32] : memref<256x9xf32, #tpu.memory_space<vmem>>, vector<256x1xf32>
    %107 = vector.broadcast %106 : vector<256x1xf32> to vector<256x32xf32>
    %108 = arith.mulf %105, %107 : vector<256x32xf32>
    %109 = vector.extract_strided_slice %101 {offsets = [0, 32], sizes = [256, 32], strides = [1, 1]} : vector<256x288xf32> to vector<256x32xf32>
    %110 = vector.extract_strided_slice %109 {offsets = [240, 0], sizes = [16, 32], strides = [1, 1]} : vector<256x32xf32> to vector<16x32xf32>
    %111 = vector.extract_strided_slice %109 {offsets = [0, 0], sizes = [240, 32], strides = [1, 1]} : vector<256x32xf32> to vector<240x32xf32>
    %112 = tpu.concatenate %110, %111 in 0 : vector<16x32xf32>, vector<240x32xf32> -> vector<256x32xf32>
    %c0_33 = arith.constant 0 : index
    %c1 = arith.constant 1 : index
    %113 = vector.load %arg11[%c0_33, %c1] : memref<256x9xf32, #tpu.memory_space<vmem>>, vector<256x1xf32>
    %114 = vector.broadcast %113 : vector<256x1xf32> to vector<256x32xf32>
    %115 = arith.mulf %112, %114 : vector<256x32xf32>
    %116 = arith.addf %108, %115 : vector<256x32xf32>
    %117 = vector.extract_strided_slice %101 {offsets = [0, 64], sizes = [256, 32], strides = [1, 1]} : vector<256x288xf32> to vector<256x32xf32>
    %118 = vector.extract_strided_slice %117 {offsets = [241, 0], sizes = [15, 32], strides = [1, 1]} : vector<256x32xf32> to vector<15x32xf32>
    %119 = vector.extract_strided_slice %117 {offsets = [0, 0], sizes = [241, 32], strides = [1, 1]} : vector<256x32xf32> to vector<241x32xf32>
    %120 = tpu.concatenate %118, %119 in 0 : vector<15x32xf32>, vector<241x32xf32> -> vector<256x32xf32>
    %c0_34 = arith.constant 0 : index
    %c2 = arith.constant 2 : index
    %121 = vector.load %arg11[%c0_34, %c2] : memref<256x9xf32, #tpu.memory_space<vmem>>, vector<256x1xf32>
    %122 = vector.broadcast %121 : vector<256x1xf32> to vector<256x32xf32>
    %123 = arith.mulf %120, %122 : vector<256x32xf32>
    %124 = arith.addf %116, %123 : vector<256x32xf32>
    %125 = vector.extract_strided_slice %101 {offsets = [0, 96], sizes = [256, 32], strides = [1, 1]} : vector<256x288xf32> to vector<256x32xf32>
    %126 = vector.extract_strided_slice %125 {offsets = [255, 0], sizes = [1, 32], strides = [1, 1]} : vector<256x32xf32> to vector<1x32xf32>
    %127 = vector.extract_strided_slice %125 {offsets = [0, 0], sizes = [255, 32], strides = [1, 1]} : vector<256x32xf32> to vector<255x32xf32>
    %128 = tpu.concatenate %126, %127 in 0 : vector<1x32xf32>, vector<255x32xf32> -> vector<256x32xf32>
    %c0_35 = arith.constant 0 : index
    %c3 = arith.constant 3 : index
    %129 = vector.load %arg11[%c0_35, %c3] : memref<256x9xf32, #tpu.memory_space<vmem>>, vector<256x1xf32>
    %130 = vector.broadcast %129 : vector<256x1xf32> to vector<256x32xf32>
    %131 = arith.mulf %128, %130 : vector<256x32xf32>
    %132 = arith.addf %124, %131 : vector<256x32xf32>
    %133 = vector.extract_strided_slice %101 {offsets = [0, 128], sizes = [256, 32], strides = [1, 1]} : vector<256x288xf32> to vector<256x32xf32>
    %134 = arith.addf %132, %133 : vector<256x32xf32>
    %135 = vector.extract_strided_slice %101 {offsets = [0, 160], sizes = [256, 32], strides = [1, 1]} : vector<256x288xf32> to vector<256x32xf32>
    %136 = vector.extract_strided_slice %135 {offsets = [1, 0], sizes = [255, 32], strides = [1, 1]} : vector<256x32xf32> to vector<255x32xf32>
    %137 = vector.extract_strided_slice %135 {offsets = [0, 0], sizes = [1, 32], strides = [1, 1]} : vector<256x32xf32> to vector<1x32xf32>
    %138 = tpu.concatenate %136, %137 in 0 : vector<255x32xf32>, vector<1x32xf32> -> vector<256x32xf32>
    %c0_36 = arith.constant 0 : index
    %c5 = arith.constant 5 : index
    %139 = vector.load %arg11[%c0_36, %c5] : memref<256x9xf32, #tpu.memory_space<vmem>>, vector<256x1xf32>
    %140 = vector.broadcast %139 : vector<256x1xf32> to vector<256x32xf32>
    %141 = arith.mulf %138, %140 : vector<256x32xf32>
    %142 = arith.addf %134, %141 : vector<256x32xf32>
    %143 = vector.extract_strided_slice %101 {offsets = [0, 192], sizes = [256, 32], strides = [1, 1]} : vector<256x288xf32> to vector<256x32xf32>
    %144 = vector.extract_strided_slice %143 {offsets = [15, 0], sizes = [241, 32], strides = [1, 1]} : vector<256x32xf32> to vector<241x32xf32>
    %145 = vector.extract_strided_slice %143 {offsets = [0, 0], sizes = [15, 32], strides = [1, 1]} : vector<256x32xf32> to vector<15x32xf32>
    %146 = tpu.concatenate %144, %145 in 0 : vector<241x32xf32>, vector<15x32xf32> -> vector<256x32xf32>
    %c0_37 = arith.constant 0 : index
    %c6 = arith.constant 6 : index
    %147 = vector.load %arg11[%c0_37, %c6] : memref<256x9xf32, #tpu.memory_space<vmem>>, vector<256x1xf32>
    %148 = vector.broadcast %147 : vector<256x1xf32> to vector<256x32xf32>
    %149 = arith.mulf %146, %148 : vector<256x32xf32>
    %150 = arith.addf %142, %149 : vector<256x32xf32>
    %151 = vector.extract_strided_slice %101 {offsets = [0, 224], sizes = [256, 32], strides = [1, 1]} : vector<256x288xf32> to vector<256x32xf32>
    %152 = vector.extract_strided_slice %151 {offsets = [16, 0], sizes = [240, 32], strides = [1, 1]} : vector<256x32xf32> to vector<240x32xf32>
    %153 = vector.extract_strided_slice %151 {offsets = [0, 0], sizes = [16, 32], strides = [1, 1]} : vector<256x32xf32> to vector<16x32xf32>
    %154 = tpu.concatenate %152, %153 in 0 : vector<240x32xf32>, vector<16x32xf32> -> vector<256x32xf32>
    %c0_38 = arith.constant 0 : index
    %c7 = arith.constant 7 : index
    %155 = vector.load %arg11[%c0_38, %c7] : memref<256x9xf32, #tpu.memory_space<vmem>>, vector<256x1xf32>
    %156 = vector.broadcast %155 : vector<256x1xf32> to vector<256x32xf32>
    %157 = arith.mulf %154, %156 : vector<256x32xf32>
    %158 = arith.addf %150, %157 : vector<256x32xf32>
    %159 = vector.extract_strided_slice %101 {offsets = [0, 256], sizes = [256, 32], strides = [1, 1]} : vector<256x288xf32> to vector<256x32xf32>
    %160 = vector.extract_strided_slice %159 {offsets = [17, 0], sizes = [239, 32], strides = [1, 1]} : vector<256x32xf32> to vector<239x32xf32>
    %161 = vector.extract_strided_slice %159 {offsets = [0, 0], sizes = [17, 32], strides = [1, 1]} : vector<256x32xf32> to vector<17x32xf32>
    %162 = tpu.concatenate %160, %161 in 0 : vector<239x32xf32>, vector<17x32xf32> -> vector<256x32xf32>
    %c0_39 = arith.constant 0 : index
    %c8 = arith.constant 8 : index
    %163 = vector.load %arg11[%c0_39, %c8] : memref<256x9xf32, #tpu.memory_space<vmem>>, vector<256x1xf32>
    %164 = vector.broadcast %163 : vector<256x1xf32> to vector<256x32xf32>
    %165 = arith.mulf %162, %164 : vector<256x32xf32>
    %166 = arith.addf %158, %165 : vector<256x32xf32>
    %c0_40 = arith.constant 0 : index
    %c0_41 = arith.constant 0 : index
    %167 = vector.load %arg10[%c0_40, %c0_41] : memref<1x32xf32, #tpu.memory_space<vmem>>, vector<1x32xf32>
    %168 = vector.broadcast %167 : vector<1x32xf32> to vector<256x32xf32>
    %169 = arith.addf %166, %168 : vector<256x32xf32>
    %cst_42 = arith.constant 0.000000e+00 : f32
    %170 = vector.broadcast %cst_42 : f32 to vector<256x32xf32>
    %171 = arith.maximumf %169, %170 : vector<256x32xf32>
    %c0_43 = arith.constant 0 : index
    %c0_44 = arith.constant 0 : index
    %c0_45 = arith.constant 0 : index
    %172 = vector.load %arg12[%c0_43, %c0_44, %c0_45] : memref<1x256x32xf32, #tpu.memory_space<vmem>>, vector<1x256x32xf32>
    %173 = vector.shape_cast %172 : vector<1x256x32xf32> to vector<256x32xf32>
    %174 = vector.shape_cast %171 : vector<256x32xf32> to vector<1x256x32xf32>
    tpu.vector_store %arg12[%c0_43, %c0_44, %c0_45], %174 {strides = array<i32>} : memref<1x256x32xf32, #tpu.memory_space<vmem>>, vector<1x256x32xf32>,
    return
  }
  func.func @transform_0(%arg0: i32) -> (i32, i32, i32) {
    %c0_i32 = arith.constant 0 : i32
    %c0_i32_0 = arith.constant 0 : i32
    %c0_i32_1 = arith.constant 0 : i32
    return %arg0, %c0_i32, %c0_i32_0 : i32, i32, i32
  }
  func.func @transform_1(%arg0: i32) -> (i32, i32, i32) {
    %c0_i32 = arith.constant 0 : i32
    %c0_i32_0 = arith.constant 0 : i32
    %c0_i32_1 = arith.constant 0 : i32
    return %arg0, %c0_i32, %c0_i32_0 : i32, i32, i32
  }
  func.func @transform_2(%arg0: i32) -> (i32, i32) {
    %c0_i32 = arith.constant 0 : i32
    %c0_i32_0 = arith.constant 0 : i32
    %c0_i32_1 = arith.constant 0 : i32
    return %c0_i32, %c0_i32_0 : i32, i32
  }
  func.func @transform_3(%arg0: i32) -> (i32, i32) {
    %c0_i32 = arith.constant 0 : i32
    %c0_i32_0 = arith.constant 0 : i32
    %c0_i32_1 = arith.constant 0 : i32
    return %c0_i32, %c0_i32_0 : i32, i32
  }
  func.func @transform_4(%arg0: i32) -> (i32, i32) {
    %c0_i32 = arith.constant 0 : i32
    %c0_i32_0 = arith.constant 0 : i32
    %c0_i32_1 = arith.constant 0 : i32
    return %c0_i32, %c0_i32_0 : i32, i32
  }
  func.func @transform_5(%arg0: i32) -> (i32, i32) {
    %c0_i32 = arith.constant 0 : i32
    %c0_i32_0 = arith.constant 0 : i32
    %c0_i32_1 = arith.constant 0 : i32
    return %c0_i32, %c0_i32_0 : i32, i32
  }
  func.func @transform_6(%arg0: i32) -> (i32, i32) {
    %c0_i32 = arith.constant 0 : i32
    %c0_i32_0 = arith.constant 0 : i32
    %c0_i32_1 = arith.constant 0 : i32
    return %c0_i32, %c0_i32_0 : i32, i32
  }
  func.func @transform_7(%arg0: i32) -> (i32, i32) {
    %c0_i32 = arith.constant 0 : i32
    %c0_i32_0 = arith.constant 0 : i32
    %c0_i32_1 = arith.constant 0 : i32
    return %c0_i32, %c0_i32_0 : i32, i32
  }
  func.func @transform_8(%arg0: i32) -> (i32, i32) {
    %c0_i32 = arith.constant 0 : i32
    %c0_i32_0 = arith.constant 0 : i32
    %c0_i32_1 = arith.constant 0 : i32
    return %c0_i32, %c0_i32_0 : i32, i32
  }
  func.func @transform_9(%arg0: i32) -> (i32, i32) {
    %c0_i32 = arith.constant 0 : i32
    %c0_i32_0 = arith.constant 0 : i32
    %c0_i32_1 = arith.constant 0 : i32
    return %c0_i32, %c0_i32_0 : i32, i32
  }
  func.func @transform_10(%arg0: i32) -> (i32, i32) {
    %c0_i32 = arith.constant 0 : i32
    %c0_i32_0 = arith.constant 0 : i32
    %c0_i32_1 = arith.constant 0 : i32
    return %c0_i32, %c0_i32_0 : i32, i32
  }
  func.func @transform_11(%arg0: i32) -> (i32, i32, i32) {
    %c0_i32 = arith.constant 0 : i32
    %c0_i32_0 = arith.constant 0 : i32
    %c0_i32_1 = arith.constant 0 : i32
    return %arg0, %c0_i32, %c0_i32_0 : i32, i32, i32
  }
}

</mosaic_0001>

<llo_original>
// kernel: tpu_custom_call.1
$region0: #{tpu_custom_call.1}
  #allocation0 [shape = 'u32[]', space=smem, size = 0x4, offset = 0x4, fixed_abs, tag = 'smem constant byte address 0x4 - core index']
  #allocation1 [shape = 'u32[144,128]{1,0:T(1,128)}', space=vmem, size = 0x12000, scoped, tag = 'internal scratch']
  %s0 = inlined_call_operand.vmem [shape: f32[2,256,32], index: 0, kind: input, shape index: {}]
  %s1 = inlined_call_operand.vmem [shape: f32[2,64,64], index: 1, kind: input, shape index: {}]
  %s2 = inlined_call_operand.vmem [shape: f32[32,32], index: 2, kind: input, shape index: {}]
  %s3 = inlined_call_operand.vmem [shape: f32[1,32], index: 3, kind: input, shape index: {}]
  %s4 = inlined_call_operand.vmem [shape: f32[64,32], index: 4, kind: input, shape index: {}]
  %s5 = inlined_call_operand.vmem [shape: f32[1,32], index: 5, kind: input, shape index: {}]
  %s6 = inlined_call_operand.vmem [shape: f32[16,8], index: 6, kind: input, shape index: {}]
  %s7 = inlined_call_operand.vmem [shape: f32[256,8], index: 7, kind: input, shape index: {}]
  %s8 = inlined_call_operand.vmem [shape: f32[32,288], index: 8, kind: input, shape index: {}]
  %s9 = inlined_call_operand.vmem [shape: f32[1,32], index: 9, kind: input, shape index: {}]
  %s10 = inlined_call_operand.vmem [shape: f32[256,9], index: 10, kind: input, shape index: {}]
  %s11 = inlined_call_operand.vmem [shape: f32[2,256,32], index: 11, kind: output, shape index: {}]
  %s12 = sld [smem:[#allocation0]]
  $region77: #{tpu_custom_call.1} parent=0
    _
  %s14 = ssub.s32 1, %s12
  %s15 = scalar_select 0, %s14, %s12
  loop: start=0, step=1, limit=4
  $region2: #{tpu_custom_call.1} parent=0 // loop_pre_header
    _
  $region3: #{tpu_custom_call.1} parent=0 // loop_header
    %s17 = sphi 0, %s21
    %p18 = scmp.ge.s32.totalorder %s17, 4
    %s27 = sphi 0, %s29
    %s30 = sphi 0, %s27
    %s31 = sphi 0, %s30
    %s47 = sphi 0, %s31
    %s53 = sphi 0, %s55
    %s56 = sphi 0, %s53
    %s57 = sphi 0, %s56
    %s73 = sphi 0, %s57
    %s77 = sphi 0, %s77
    %s79 = sphi 0, %s77
    %s80 = sphi 0, %s79
    %s94 = sphi 0, %s80
    %s98 = sphi 0, %s98
    %s100 = sphi 0, %s98
    %s101 = sphi 0, %s100
    %s115 = sphi 0, %s101
    %s119 = sphi 0, %s119
    %s121 = sphi 0, %s119
    %s122 = sphi 0, %s121
    %s136 = sphi 0, %s122
    %s140 = sphi 0, %s140
    %s142 = sphi 0, %s140
    %s143 = sphi 0, %s142
    %s157 = sphi 0, %s143
    %s161 = sphi 0, %s161
    %s163 = sphi 0, %s161
    %s164 = sphi 0, %s163
    %s178 = sphi 0, %s164
    %s182 = sphi 0, %s182
    %s184 = sphi 0, %s182
    %s185 = sphi 0, %s184
    %s199 = sphi 0, %s185
    %s203 = sphi 0, %s203
    %s205 = sphi 0, %s203
    %s206 = sphi 0, %s205
    %s220 = sphi 0, %s206
    %s224 = sphi 0, %s224
    %s226 = sphi 0, %s224
    %s227 = sphi 0, %s226
    %s241 = sphi 0, %s227
    %s245 = sphi 0, %s245
    %s247 = sphi 0, %s245
    %s248 = sphi 0, %s247
    %s262 = sphi 0, %s248
    %s268 = sphi 0, %s270
    %s271 = sphi 0, %s268
    %s272 = sphi 0, %s271
    %s288 = sphi 0, %s272
  $region4: #{tpu_custom_call.1} parent=0 // loop_header_branch
    %20 = sbr.rel (%p18) target = $region8
  $region5: #{tpu_custom_call.1} parent=0 // loop_body
    %s22 = ssub.s32 %s17, 1
    %s23 = ssub.s32 %s17, 2
    %s24 = sadd.s32 %s17, 1
    %s25 = ssub.s32 %s17, %s24
    %p26 = scmp.eq.s32.totalorder %s25, 0
    %s28 = sadd.s32 %s27, 1
    %s29 = scalar_select %p26, %s27, %s28
    %p32 = pneg %p26
    %p33 = scmp.eq.s32.totalorder %s17, 1
    %p34 = por %p32, %p33
    %p35 = scmp.ne.s32.totalorder %s27, %s30
    %p36 = scmp.eq.s32.totalorder %s17, 0
    %p37 = por %p35, %p36
    %p38 = scmp.ne.s32.totalorder %s27, %s30
    %p39 = scmp.eq.s32.totalorder %s22, 1
    %p40 = por %p38, %p39
    %p41 = scmp.ne.s32.totalorder %s30, %s31
    %p42 = scmp.eq.s32.totalorder %s22, 0
    %p43 = por %p41, %p42
    %p44 = scmp.ne.s32.totalorder %s30, %s31
    %p45 = scmp.eq.s32.totalorder %s23, 1
    %p46 = por %p44, %p45
    %p48 = scmp.ne.s32.totalorder %s31, %s47
    %p49 = scmp.eq.s32.totalorder %s23, 0
    %p50 = por %p48, %p49
    %s51 = ssub.s32 %s17, %s24
    %p52 = scmp.eq.s32.totalorder %s51, 0
    %s54 = sadd.s32 %s53, 1
    %s55 = scalar_select %p52, %s53, %s54
    %p58 = pneg %p52
    %p59 = scmp.eq.s32.totalorder %s17, 1
    %p60 = por %p58, %p59
    %p61 = scmp.ne.s32.totalorder %s53, %s56
    %p62 = scmp.eq.s32.totalorder %s17, 0
    %p63 = por %p61, %p62
    %p64 = scmp.ne.s32.totalorder %s53, %s56
    %p65 = scmp.eq.s32.totalorder %s22, 1
    %p66 = por %p64, %p65
    %p67 = scmp.ne.s32.totalorder %s56, %s57
    %p68 = scmp.eq.s32.totalorder %s22, 0
    %p69 = por %p67, %p68
    %p70 = scmp.ne.s32.totalorder %s56, %s57
    %p71 = scmp.eq.s32.totalorder %s23, 1
    %p72 = por %p70, %p71
    %p74 = scmp.ne.s32.totalorder %s57, %s73
    %p75 = scmp.eq.s32.totalorder %s23, 0
    %p76 = por %p74, %p75
    %s78 = sadd.s32 %s77, 1
    %p81 = scmp.eq.s32.totalorder %s17, 1
    %p82 = scmp.ne.s32.totalorder %s77, %s79
    %p83 = scmp.eq.s32.totalorder %s17, 0
    %p84 = por %p82, %p83
    %p85 = scmp.ne.s32.totalorder %s77, %s79
    %p86 = scmp.eq.s32.totalorder %s22, 1
    %p87 = por %p85, %p86
    %p88 = scmp.ne.s32.totalorder %s79, %s80
    %p89 = scmp.eq.s32.totalorder %s22, 0
    %p90 = por %p88, %p89
    %p91 = scmp.ne.s32.totalorder %s79, %s80
    %p92 = scmp.eq.s32.totalorder %s23, 1
    %p93 = por %p91, %p92
    %p95 = scmp.ne.s32.totalorder %s80, %s94
    %p96 = scmp.eq.s32.totalorder %s23, 0
    %p97 = por %p95, %p96
    %s99 = sadd.s32 %s98, 1
    %p102 = scmp.eq.s32.totalorder %s17, 1
    %p103 = scmp.ne.s32.totalorder %s98, %s100
    %p104 = scmp.eq.s32.totalorder %s17, 0
    %p105 = por %p103, %p104
    %p106 = scmp.ne.s32.totalorder %s98, %s100
    %p107 = scmp.eq.s32.totalorder %s22, 1
    %p108 = por %p106, %p107
    %p109 = scmp.ne.s32.totalorder %s100, %s101
    %p110 = scmp.eq.s32.totalorder %s22, 0
    %p111 = por %p109, %p110
    %p112 = scmp.ne.s32.totalorder %s100, %s101
    %p113 = scmp.eq.s32.totalorder %s23, 1
    %p114 = por %p112, %p113
    %p116 = scmp.ne.s32.totalorder %s101, %s115
    %p117 = scmp.eq.s32.totalorder %s23, 0
    %p118 = por %p116, %p117
    %s120 = sadd.s32 %s119, 1
    %p123 = scmp.eq.s32.totalorder %s17, 1
    %p124 = scmp.ne.s32.totalorder %s119, %s121
    %p125 = scmp.eq.s32.totalorder %s17, 0
    %p126 = por %p124, %p125
    %p127 = scmp.ne.s32.totalorder %s119, %s121
    %p128 = scmp.eq.s32.totalorder %s22, 1
    %p129 = por %p127, %p128
    %p130 = scmp.ne.s32.totalorder %s121, %s122
    %p131 = scmp.eq.s32.totalorder %s22, 0
    %p132 = por %p130, %p131
    %p133 = scmp.ne.s32.totalorder %s121, %s122
    %p134 = scmp.eq.s32.totalorder %s23, 1
    %p135 = por %p133, %p134
    %p137 = scmp.ne.s32.totalorder %s122, %s136
    %p138 = scmp.eq.s32.totalorder %s23, 0
    %p139 = por %p137, %p138
    %s141 = sadd.s32 %s140, 1
    %p144 = scmp.eq.s32.totalorder %s17, 1
    %p145 = scmp.ne.s32.totalorder %s140, %s142
    %p146 = scmp.eq.s32.totalorder %s17, 0
    %p147 = por %p145, %p146
    %p148 = scmp.ne.s32.totalorder %s140, %s142
    %p149 = scmp.eq.s32.totalorder %s22, 1
    %p150 = por %p148, %p149
    %p151 = scmp.ne.s32.totalorder %s142, %s143
    %p152 = scmp.eq.s32.totalorder %s22, 0
    %p153 = por %p151, %p152
    %p154 = scmp.ne.s32.totalorder %s142, %s143
    %p155 = scmp.eq.s32.totalorder %s23, 1
    %p156 = por %p154, %p155
    %p158 = scmp.ne.s32.totalorder %s143, %s157
    %p159 = scmp.eq.s32.totalorder %s23, 0
    %p160 = por %p158, %p159
    %s162 = sadd.s32 %s161, 1
    %p165 = scmp.eq.s32.totalorder %s17, 1
    %p166 = scmp.ne.s32.totalorder %s161, %s163
    %p167 = scmp.eq.s32.totalorder %s17, 0
    %p168 = por %p166, %p167
    %p169 = scmp.ne.s32.totalorder %s161, %s163
    %p170 = scmp.eq.s32.totalorder %s22, 1
    %p171 = por %p169, %p170
    %p172 = scmp.ne.s32.totalorder %s163, %s164
    %p173 = scmp.eq.s32.totalorder %s22, 0
    %p174 = por %p172, %p173
    %p175 = scmp.ne.s32.totalorder %s163, %s164
    %p176 = scmp.eq.s32.totalorder %s23, 1
    %p177 = por %p175, %p176
    %p179 = scmp.ne.s32.totalorder %s164, %s178
    %p180 = scmp.eq.s32.totalorder %s23, 0
    %p181 = por %p179, %p180
    %s183 = sadd.s32 %s182, 1
    %p186 = scmp.eq.s32.totalorder %s17, 1
    %p187 = scmp.ne.s32.totalorder %s182, %s184
    %p188 = scmp.eq.s32.totalorder %s17, 0
    %p189 = por %p187, %p188
    %p190 = scmp.ne.s32.totalorder %s182, %s184
    %p191 = scmp.eq.s32.totalorder %s22, 1
    %p192 = por %p190, %p191
    %p193 = scmp.ne.s32.totalorder %s184, %s185
    %p194 = scmp.eq.s32.totalorder %s22, 0
    %p195 = por %p193, %p194
    %p196 = scmp.ne.s32.totalorder %s184, %s185
    %p197 = scmp.eq.s32.totalorder %s23, 1
    %p198 = por %p196, %p197
    %p200 = scmp.ne.s32.totalorder %s185, %s199
    %p201 = scmp.eq.s32.totalorder %s23, 0
    %p202 = por %p200, %p201
    %s204 = sadd.s32 %s203, 1
    %p207 = scmp.eq.s32.totalorder %s17, 1
    %p208 = scmp.ne.s32.totalorder %s203, %s205
    %p209 = scmp.eq.s32.totalorder %s17, 0
    %p210 = por %p208, %p209
    %p211 = scmp.ne.s32.totalorder %s203, %s205
    %p212 = scmp.eq.s32.totalorder %s22, 1
    %p213 = por %p211, %p212
    %p214 = scmp.ne.s32.totalorder %s205, %s206
    %p215 = scmp.eq.s32.totalorder %s22, 0
    %p216 = por %p214, %p215
    %p217 = scmp.ne.s32.totalorder %s205, %s206
    %p218 = scmp.eq.s32.totalorder %s23, 1
    %p219 = por %p217, %p218
    %p221 = scmp.ne.s32.totalorder %s206, %s220
    %p222 = scmp.eq.s32.totalorder %s23, 0
    %p223 = por %p221, %p222
    %s225 = sadd.s32 %s224, 1
    %p228 = scmp.eq.s32.totalorder %s17, 1
    %p229 = scmp.ne.s32.totalorder %s224, %s226
    %p230 = scmp.eq.s32.totalorder %s17, 0
    %p231 = por %p229, %p230
    %p232 = scmp.ne.s32.totalorder %s224, %s226
    %p233 = scmp.eq.s32.totalorder %s22, 1
    %p234 = por %p232, %p233
    %p235 = scmp.ne.s32.totalorder %s226, %s227
    %p236 = scmp.eq.s32.totalorder %s22, 0
    %p237 = por %p235, %p236
    %p238 = scmp.ne.s32.totalorder %s226, %s227
    %p239 = scmp.eq.s32.totalorder %s23, 1
    %p240 = por %p238, %p239
    %p242 = scmp.ne.s32.totalorder %s227, %s241
    %p243 = scmp.eq.s32.totalorder %s23, 0
    %p244 = por %p242, %p243
    %s246 = sadd.s32 %s245, 1
    %p249 = scmp.eq.s32.totalorder %s17, 1
    %p250 = scmp.ne.s32.totalorder %s245, %s247
    %p251 = scmp.eq.s32.totalorder %s17, 0
    %p252 = por %p250, %p251
    %p253 = scmp.ne.s32.totalorder %s245, %s247
    %p254 = scmp.eq.s32.totalorder %s22, 1
    %p255 = por %p253, %p254
    %p256 = scmp.ne.s32.totalorder %s247, %s248
    %p257 = scmp.eq.s32.totalorder %s22, 0
    %p258 = por %p256, %p257
    %p259 = scmp.ne.s32.totalorder %s247, %s248
    %p260 = scmp.eq.s32.totalorder %s23, 1
    %p261 = por %p259, %p260
    %p263 = scmp.ne.s32.totalorder %s248, %s262
    %p264 = scmp.eq.s32.totalorder %s23, 0
    %p265 = por %p263, %p264
    %s266 = ssub.s32 %s17, %s24
    %p267 = scmp.eq.s32.totalorder %s266, 0
    %s269 = sadd.s32 %s268, 1
    %s270 = scalar_select %p267, %s268, %s269
    %p273 = pneg %p267
    %p274 = scmp.eq.s32.totalorder %s17, 1
    %p275 = por %p273, %p274
    %p276 = scmp.ne.s32.totalorder %s268, %s271
    %p277 = scmp.eq.s32.totalorder %s17, 0
    %p278 = por %p276, %p277
    %p279 = scmp.ne.s32.totalorder %s268, %s271
    %p280 = scmp.eq.s32.totalorder %s22, 1
    %p281 = por %p279, %p280
    %p282 = scmp.ne.s32.totalorder %s271, %s272
    %p283 = scmp.eq.s32.totalorder %s22, 0
    %p284 = por %p282, %p283
    %p285 = scmp.ne.s32.totalorder %s271, %s272
    %p286 = scmp.eq.s32.totalorder %s23, 1
    %p287 = por %p285, %p286
    %p289 = scmp.ne.s32.totalorder %s272, %s288
    %p290 = scmp.eq.s32.totalorder %s23, 0
    %p291 = por %p289, %p290
    %p292 = scmp.le.s32.totalorder 1, %s17
    %p293 = scmp.lt.s32.totalorder %s17, 3
    %p294 = pnand %p292, %p293
    %p295 = pneg %p294
    // Predicated region
    $region9: #{tpu_custom_call.1} parent=5 // pred_check
      _
    $region10: #{tpu_custom_call.1} parent=5 // pred_check_branch
      %297 = sbr.rel (%p294) target = $region12
    $region11: #{tpu_custom_call.1} parent=5 // pred_region
      %s298 = ssub.s32 %s17, 1
      // Predicated region
      $region13: #{tpu_custom_call.1} parent=11 // pred_check
        %p299 = pneg %p90
      $region14: #{tpu_custom_call.1} parent=11 // pred_check_branch
        %301 = sbr.rel (%p299) target = $region16
      $region15: #{tpu_custom_call.1} parent=11 // pred_region
        _
      $region16: #{tpu_custom_call.1} parent=11 // pred_fallthru
        _
      // Predicated region
      $region17: #{tpu_custom_call.1} parent=11 // pred_check
        %p302 = pneg %p111
      $region18: #{tpu_custom_call.1} parent=11 // pred_check_branch
        %304 = sbr.rel (%p302) target = $region20
      $region19: #{tpu_custom_call.1} parent=11 // pred_region
        _
      $region20: #{tpu_custom_call.1} parent=11 // pred_fallthru
        _
      // Predicated region
      $region21: #{tpu_custom_call.1} parent=11 // pred_check
        %p305 = pneg %p132
      $region22: #{tpu_custom_call.1} parent=11 // pred_check_branch
        %307 = sbr.rel (%p305) target = $region24
      $region23: #{tpu_custom_call.1} parent=11 // pred_region
        _
      $region24: #{tpu_custom_call.1} parent=11 // pred_fallthru
        _
      // Predicated region
      $region25: #{tpu_custom_call.1} parent=11 // pred_check
        %p308 = pneg %p153
      $region26: #{tpu_custom_call.1} parent=11 // pred_check_branch
        %310 = sbr.rel (%p308) target = $region28
      $region27: #{tpu_custom_call.1} parent=11 // pred_region
        _
      $region28: #{tpu_custom_call.1} parent=11 // pred_fallthru
        _
      // Predicated region
      $region29: #{tpu_custom_call.1} parent=11 // pred_check
        %p311 = pneg %p174
      $region30: #{tpu_custom_call.1} parent=11 // pred_check_branch
        %313 = sbr.rel (%p311) target = $region32
      $region31: #{tpu_custom_call.1} parent=11 // pred_region
        _
      $region32: #{tpu_custom_call.1} parent=11 // pred_fallthru
        _
      // Predicated region
      $region33: #{tpu_custom_call.1} parent=11 // pred_check
        %p314 = pneg %p195
      $region34: #{tpu_custom_call.1} parent=11 // pred_check_branch
        %316 = sbr.rel (%p314) target = $region36
      $region35: #{tpu_custom_call.1} parent=11 // pred_region
        _
      $region36: #{tpu_custom_call.1} parent=11 // pred_fallthru
        _
      // Predicated region
      $region37: #{tpu_custom_call.1} parent=11 // pred_check
        %p317 = pneg %p216
      $region38: #{tpu_custom_call.1} parent=11 // pred_check_branch
        %319 = sbr.rel (%p317) target = $region40
      $region39: #{tpu_custom_call.1} parent=11 // pred_region
        _
      $region40: #{tpu_custom_call.1} parent=11 // pred_fallthru
        _
      // Predicated region
      $region41: #{tpu_custom_call.1} parent=11 // pred_check
        %p320 = pneg %p237
      $region42: #{tpu_custom_call.1} parent=11 // pred_check_branch
        %322 = sbr.rel (%p320) target = $region44
      $region43: #{tpu_custom_call.1} parent=11 // pred_region
        _
      $region44: #{tpu_custom_call.1} parent=11 // pred_fallthru
        _
      // Predicated region
      $region45: #{tpu_custom_call.1} parent=11 // pred_check
        %p323 = pneg %p258
      $region46: #{tpu_custom_call.1} parent=11 // pred_check_branch
        %325 = sbr.rel (%p323) target = $region48
      $region47: #{tpu_custom_call.1} parent=11 // pred_region
        _
      $region48: #{tpu_custom_call.1} parent=11 // pred_fallthru
        _
    $region12: #{tpu_custom_call.1} parent=5 // pred_fallthru
      _
    %p326 = scmp.lt.s32.totalorder %s17, 2
    // Predicated region
    $region49: #{tpu_custom_call.1} parent=5 // pred_check
      %p327 = pneg %p326
    $region50: #{tpu_custom_call.1} parent=5 // pred_check_branch
      %329 = sbr.rel (%p327) target = $region52
    $region51: #{tpu_custom_call.1} parent=5 // pred_region
      // Predicated region
      $region53: #{tpu_custom_call.1} parent=51 // pred_check
        %p330 = pneg %p37
      $region54: #{tpu_custom_call.1} parent=51 // pred_check_branch
        %332 = sbr.rel (%p330) target = $region56
      $region55: #{tpu_custom_call.1} parent=51 // pred_region
        %p333 = scmp.lt.s32.totalorder %s17, 1
        %s334 = scalar_select %p333, %s17, 1
        %s335 = smul.addr %s334, 32
        %s336 = smul.addr %s335, 8
        %s337 = scalar_lea.vmem %s0, %s336
      $region56: #{tpu_custom_call.1} parent=51 // pred_fallthru
        _
      // Predicated region
      $region57: #{tpu_custom_call.1} parent=51 // pred_check
        %p338 = pneg %p63
      $region58: #{tpu_custom_call.1} parent=51 // pred_check_branch
        %340 = sbr.rel (%p338) target = $region60
      $region59: #{tpu_custom_call.1} parent=51 // pred_region
        %p341 = scmp.lt.s32.totalorder %s17, 1
        %s342 = scalar_select %p341, %s17, 1
        %s343 = smul.addr %s342, 8
        %s344 = smul.addr %s343, 8
        %s345 = scalar_lea.vmem %s1, %s344
      $region60: #{tpu_custom_call.1} parent=51 // pred_fallthru
        _
    $region52: #{tpu_custom_call.1} parent=5 // pred_fallthru
      _
    %p346 = scmp.le.s32.totalorder 1, %s17
    %p347 = scmp.lt.s32.totalorder %s17, 3
    %p348 = pnand %p346, %p347
    %p349 = pneg %p348
    // Predicated region
    $region61: #{tpu_custom_call.1} parent=5 // pred_check
      _
    $region62: #{tpu_custom_call.1} parent=5 // pred_check_branch
      %351 = sbr.rel (%p348) target = $region64
    $region63: #{tpu_custom_call.1} parent=5 // pred_region
      %s352 = ssub.s32 %s17, 1
      %p353 = scmp.lt.s32.totalorder %s22, 1
      %s354 = scalar_select %p353, %s22, 1
      %s355 = smul.addr %s354, 32
      %s356 = smul.addr %s355, 8
      %s357 = scalar_lea.vmem %s0, %s356
      %p358 = pneg %p43
      %p359 = pneg %p40
      %p360 = scmp.lt.s32.totalorder %s22, 1
      %s361 = scalar_select %p360, %s22, 1
      %s362 = smul.addr %s361, 8
      %s363 = smul.addr %s362, 8
      %s364 = scalar_lea.vmem %s1, %s363
      %p365 = pneg %p69
      %p366 = pneg %p66
      %p367 = pneg %p90
      %p368 = pneg %p87
      %p369 = pneg %p111
      %p370 = pneg %p108
      %p371 = pneg %p132
      %p372 = pneg %p129
      %p373 = pneg %p153
      %p374 = pneg %p150
      %p375 = pneg %p174
      %p376 = pneg %p171
      %p377 = pneg %p195
      %p378 = pneg %p192
      %p379 = pneg %p216
      %p380 = pneg %p213
      %p381 = pneg %p237
      %p382 = pneg %p234
      %p383 = pneg %p258
      %p384 = pneg %p255
      %p385 = pneg %p284
      %p386 = pneg %p281
      %p387 = scmp.lt.s32.totalorder %s22, 1
      %s388 = scalar_select %p387, %s22, 1
      %s389 = smul.addr %s388, 32
      %s390 = smul.addr %s389, 8
      %s391 = scalar_lea.vmem %s11, %s390
      %p392 = scmp.lt.s32.totalorder %s22, 1
      %s393 = scalar_select %p392, %s22, 1
      %s394 = smul.addr %s393, 32
      %s395 = smul.addr %s394, 8
      %s396 = scalar_lea.vmem %s0, %s395
      %p397 = scmp.lt.s32.totalorder %s22, 1
      %s398 = scalar_select %p397, %s22, 1
      %s399 = smul.addr %s398, 8
      %s400 = smul.addr %s399, 8
      %s401 = scalar_lea.vmem %s1, %s400
      %p402 = scmp.lt.s32.totalorder %s22, 1
      %s403 = scalar_select %p402, %s22, 1
      %s404 = smul.addr %s403, 32
      %s405 = smul.addr %s404, 8
      %s406 = scalar_lea.vmem %s11, %s405
      %v407 = vld [vmem:[%s396] sm:$0xff]
      %v408 = vld [vmem:[%s396 + $0x8] sm:$0xff]
      %v409 = vld [vmem:[%s396 + $0x10] sm:$0xff]
      %v410 = vld [vmem:[%s396 + $0x18] sm:$0xff]
      %v411 = vld [vmem:[%s396 + $0x20] sm:$0xff]
      %v412 = vld [vmem:[%s396 + $0x28] sm:$0xff]
      %v413 = vld [vmem:[%s396 + $0x30] sm:$0xff]
      %v414 = vld [vmem:[%s396 + $0x38] sm:$0xff]
      %v415 = vld [vmem:[%s396 + $0x40] sm:$0xff]
      %v416 = vld [vmem:[%s396 + $0x48] sm:$0xff]
      %v417 = vld [vmem:[%s396 + $0x50] sm:$0xff]
      %v418 = vld [vmem:[%s396 + $0x58] sm:$0xff]
      %v419 = vld [vmem:[%s396 + $0x60] sm:$0xff]
      %v420 = vld [vmem:[%s396 + $0x68] sm:$0xff]
      %v421 = vld [vmem:[%s396 + $0x70] sm:$0xff]
      %v422 = vld [vmem:[%s396 + $0x78] sm:$0xff]
      %v423 = vld [vmem:[%s396 + $0x80] sm:$0xff]
      %v424 = vld [vmem:[%s396 + $0x88] sm:$0xff]
      %v425 = vld [vmem:[%s396 + $0x90] sm:$0xff]
      %v426 = vld [vmem:[%s396 + $0x98] sm:$0xff]
      %v427 = vld [vmem:[%s396 + $0xa0] sm:$0xff]
      %v428 = vld [vmem:[%s396 + $0xa8] sm:$0xff]
      %v429 = vld [vmem:[%s396 + $0xb0] sm:$0xff]
      %v430 = vld [vmem:[%s396 + $0xb8] sm:$0xff]
      %v431 = vld [vmem:[%s396 + $0xc0] sm:$0xff]
      %v432 = vld [vmem:[%s396 + $0xc8] sm:$0xff]
      %v433 = vld [vmem:[%s396 + $0xd0] sm:$0xff]
      %v434 = vld [vmem:[%s396 + $0xd8] sm:$0xff]
      %v435 = vld [vmem:[%s396 + $0xe0] sm:$0xff]
      %v436 = vld [vmem:[%s396 + $0xe8] sm:$0xff]
      %v437 = vld [vmem:[%s396 + $0xf0] sm:$0xff]
      %v438 = vld [vmem:[%s396 + $0xf8] sm:$0xff]
      %v439 = vld [vmem:[%s2] sm:$0xff]
      %v440 = vld [vmem:[%s2 + $0x8] sm:$0xff]
      %v441 = vld [vmem:[%s2 + $0x10] sm:$0xff]
      %v442 = vld [vmem:[%s2 + $0x18] sm:$0xff]
      %v443 = vld [vmem:[%s3] sm:$0x1]
      %v445 = vlaneseq
      %v446 = vshrl.u32 %v445, 7
      %v447 = vsub.s32 0, %v446
      %v448 = vrot.slane %v443, %v447
      %vm450 = vcmask 261120
      %v452 = vsel %vm450, %v407, 0
      %v455 = vsel %vm450, %v408, 0
      %v458 = vsel %vm450, %v409, 0
      %v461 = vsel %vm450, %v410, 0
      %v464 = vsel %vm450, %v411, 0
      %v467 = vsel %vm450, %v412, 0
      %v470 = vsel %vm450, %v413, 0
      %v473 = vsel %vm450, %v414, 0
      %v476 = vsel %vm450, %v415, 0
      %v479 = vsel %vm450, %v416, 0
      %v482 = vsel %vm450, %v417, 0
      %v485 = vsel %vm450, %v418, 0
      %v488 = vsel %vm450, %v419, 0
      %v491 = vsel %vm450, %v420, 0
      %v494 = vsel %vm450, %v421, 0
      %v497 = vsel %vm450, %v422, 0
      %v500 = vsel %vm450, %v423, 0
      %v503 = vsel %vm450, %v424, 0
      %v506 = vsel %vm450, %v425, 0
      %v509 = vsel %vm450, %v426, 0
      %v512 = vsel %vm450, %v427, 0
      %v515 = vsel %vm450, %v428, 0
      %v518 = vsel %vm450, %v429, 0
      %v521 = vsel %vm450, %v430, 0
      %v524 = vsel %vm450, %v431, 0
      %v527 = vsel %vm450, %v432, 0
      %v530 = vsel %vm450, %v433, 0
      %v533 = vsel %vm450, %v434, 0
      %v536 = vsel %vm450, %v435, 0
      %v539 = vsel %vm450, %v436, 0
      %v542 = vsel %vm450, %v437, 0
      %v545 = vsel %vm450, %v438, 0
      %547 = vmatprep.subr.mxu0 0.0
      %548 = vmatpush1.msra.mxu0 %v439
      %549 = vmatprep.subr.mxu0 0.0
      %550 = vmatpush1.msra.mxu0 %v440
      %551 = vmatprep.subr.mxu0 0.0
      %552 = vmatpush1.msra.mxu0 %v441
      %553 = vmatprep.subr.mxu0 0.0
      %554 = vmatpush1.msra.mxu0 %v442
      %555 = vmatprep.subr.mxu0 0.0
      %556 = vmatpush1.msra.mxu0 0.0
      %557 = vmatprep.subr.mxu0 0.0
      %558 = vmatpush1.msra.mxu0 0.0
      %559 = vmatprep.subr.mxu0 0.0
      %560 = vmatpush1.msra.mxu0 0.0
      %561 = vmatprep.subr.mxu0 0.0
      %562 = vmatpush1.msra.mxu0 0.0
      %563 = vmatprep.subr.mxu0 0.0
      %564 = vmatpush1.msra.mxu0 0.0
      %565 = vmatprep.subr.mxu0 0.0
      %566 = vmatpush1.msra.mxu0 0.0
      %567 = vmatprep.subr.mxu0 0.0
      %568 = vmatpush1.msra.mxu0 0.0
      %569 = vmatprep.subr.mxu0 0.0
      %570 = vmatpush1.msra.mxu0 0.0
      %571 = vmatprep.subr.mxu0 0.0
      %572 = vmatpush1.msra.mxu0 0.0
      %573 = vmatprep.subr.mxu0 0.0
      %574 = vmatpush1.msra.mxu0 0.0
      %575 = vmatprep.subr.mxu0 0.0
      %576 = vmatpush1.msra.mxu0 0.0
      %577 = vmatprep.subr.mxu0 0.0
      %578 = vmatpush1.msra.mxu0 0.0
      %579 = vmatprep.subr.mxu0 0.0
      %580 = vmatpush1.msra.mxu0 0.0
      %581 = vmatprep.subr.mxu0 0.0
      %582 = vmatpush1.msra.mxu0 0.0
      %583 = vmatprep.subr.mxu0 0.0
      %584 = vmatpush1.msra.mxu0 0.0
      %585 = vmatprep.subr.mxu0 0.0
      %586 = vmatpush1.msra.mxu0 0.0
      %587 = vmatprep.subr.mxu0 0.0
      %588 = vmatpush1.msra.mxu0 0.0
      %589 = vmatprep.subr.mxu0 0.0
      %590 = vmatpush1.msra.mxu0 0.0
      %591 = vmatprep.subr.mxu0 0.0
      %592 = vmatpush1.msra.mxu0 0.0
      %593 = vmatprep.subr.mxu0 0.0
      %594 = vmatpush1.msra.mxu0 0.0
      %595 = vmatprep.subr.mxu0 0.0
      %596 = vmatpush1.msra.mxu0 0.0
      %597 = vmatprep.subr.mxu0 0.0
      %598 = vmatpush1.msra.mxu0 0.0
      %599 = vmatprep.subr.mxu0 0.0
      %600 = vmatpush1.msra.mxu0 0.0
      %601 = vmatprep.subr.mxu0 0.0
      %602 = vmatpush1.msra.mxu0 0.0
      %603 = vmatprep.subr.mxu0 0.0
      %604 = vmatpush1.msra.mxu0 0.0
      %605 = vmatprep.subr.mxu0 0.0
      %606 = vmatpush1.msra.mxu0 0.0
      %607 = vmatprep.subr.mxu0 0.0
      %608 = vmatpush1.msra.mxu0 0.0
      %609 = vmatprep.subr.mxu0 0.0
      %610 = vmatpush1.msra.mxu0 0.0
      %611 = vmatprep.mubr.f32.mxu0 0.0
      %612 = vmatmul.mubr.f32.gmra.mrb[0].mxu0 %v452
      %v613 = vpop.f32.mrb[0].mxu0
      %v614 = vadd.f32 %v448, %v613
      %v615 = vpop.f32.mrb[0].mxu0
      %616 = vmatprep.mubr.f32.mxu0 0.0
      %617 = vmatmul.mubr.f32.gmra.mrb[0].mxu0 %v455
      %v618 = vpop.f32.mrb[0].mxu0
      %v619 = vadd.f32 %v448, %v618
      %v620 = vpop.f32.mrb[0].mxu0
      %621 = vmatprep.mubr.f32.mxu0 0.0
      %622 = vmatmul.mubr.f32.gmra.mrb[0].mxu0 %v458
      %v623 = vpop.f32.mrb[0].mxu0
      %v624 = vadd.f32 %v448, %v623
      %v625 = vpop.f32.mrb[0].mxu0
      %626 = vmatprep.mubr.f32.mxu0 0.0
      %627 = vmatmul.mubr.f32.gmra.mrb[0].mxu0 %v461
      %v628 = vpop.f32.mrb[0].mxu0
      %v629 = vadd.f32 %v448, %v628
      %v630 = vpop.f32.mrb[0].mxu0
      %631 = vmatprep.mubr.f32.mxu0 0.0
      %632 = vmatmul.mubr.f32.gmra.mrb[0].mxu0 %v464
      %v633 = vpop.f32.mrb[0].mxu0
      %v634 = vadd.f32 %v448, %v633
      %v635 = vpop.f32.mrb[0].mxu0
      %636 = vmatprep.mubr.f32.mxu0 0.0
      %637 = vmatmul.mubr.f32.gmra.mrb[0].mxu0 %v467
      %v638 = vpop.f32.mrb[0].mxu0
      %v639 = vadd.f32 %v448, %v638
      %v640 = vpop.f32.mrb[0].mxu0
      %641 = vmatprep.mubr.f32.mxu0 0.0
      %642 = vmatmul.mubr.f32.gmra.mrb[0].mxu0 %v470
      %v643 = vpop.f32.mrb[0].mxu0
      %v644 = vadd.f32 %v448, %v643
      %v645 = vpop.f32.mrb[0].mxu0
      %646 = vmatprep.mubr.f32.mxu0 0.0
      %647 = vmatmul.mubr.f32.gmra.mrb[0].mxu0 %v473
      %v648 = vpop.f32.mrb[0].mxu0
      %v649 = vadd.f32 %v448, %v648
      %v650 = vpop.f32.mrb[0].mxu0
      %651 = vmatprep.mubr.f32.mxu0 0.0
      %652 = vmatmul.mubr.f32.gmra.mrb[0].mxu0 %v476
      %v653 = vpop.f32.mrb[0].mxu0
      %v654 = vadd.f32 %v448, %v653
      %v655 = vpop.f32.mrb[0].mxu0
      %656 = vmatprep.mubr.f32.mxu0 0.0
      %657 = vmatmul.mubr.f32.gmra.mrb[0].mxu0 %v479
      %v658 = vpop.f32.mrb[0].mxu0
      %v659 = vadd.f32 %v448, %v658
      %v660 = vpop.f32.mrb[0].mxu0
      %661 = vmatprep.mubr.f32.mxu0 0.0
      %662 = vmatmul.mubr.f32.gmra.mrb[0].mxu0 %v482
      %v663 = vpop.f32.mrb[0].mxu0
      %v664 = vadd.f32 %v448, %v663
      %v665 = vpop.f32.mrb[0].mxu0
      %666 = vmatprep.mubr.f32.mxu0 0.0
      %667 = vmatmul.mubr.f32.gmra.mrb[0].mxu0 %v485
      %v668 = vpop.f32.mrb[0].mxu0
      %v669 = vadd.f32 %v448, %v668
      %v670 = vpop.f32.mrb[0].mxu0
      %671 = vmatprep.mubr.f32.mxu0 0.0
      %672 = vmatmul.mubr.f32.gmra.mrb[0].mxu0 %v488
      %v673 = vpop.f32.mrb[0].mxu0
      %v674 = vadd.f32 %v448, %v673
      %v675 = vpop.f32.mrb[0].mxu0
      %676 = vmatprep.mubr.f32.mxu0 0.0
      %677 = vmatmul.mubr.f32.gmra.mrb[0].mxu0 %v491
      %v678 = vpop.f32.mrb[0].mxu0
      %v679 = vadd.f32 %v448, %v678
      %v680 = vpop.f32.mrb[0].mxu0
      %681 = vmatprep.mubr.f32.mxu0 0.0
      %682 = vmatmul.mubr.f32.gmra.mrb[0].mxu0 %v494
      %v683 = vpop.f32.mrb[0].mxu0
      %v684 = vadd.f32 %v448, %v683
      %v685 = vpop.f32.mrb[0].mxu0
      %686 = vmatprep.mubr.f32.mxu0 0.0
      %687 = vmatmul.mubr.f32.gmra.mrb[0].mxu0 %v497
      %v688 = vpop.f32.mrb[0].mxu0
      %v689 = vadd.f32 %v448, %v688
      %v690 = vpop.f32.mrb[0].mxu0
      %691 = vmatprep.mubr.f32.mxu0 0.0
      %692 = vmatmul.mubr.f32.gmra.mrb[0].mxu0 %v500
      %v693 = vpop.f32.mrb[0].mxu0
      %v694 = vadd.f32 %v448, %v693
      %v695 = vpop.f32.mrb[0].mxu0
      %696 = vmatprep.mubr.f32.mxu0 0.0
      %697 = vmatmul.mubr.f32.gmra.mrb[0].mxu0 %v503
      %v698 = vpop.f32.mrb[0].mxu0
      %v699 = vadd.f32 %v448, %v698
      %v700 = vpop.f32.mrb[0].mxu0
      %701 = vmatprep.mubr.f32.mxu0 0.0
      %702 = vmatmul.mubr.f32.gmra.mrb[0].mxu0 %v506
      %v703 = vpop.f32.mrb[0].mxu0
      %v704 = vadd.f32 %v448, %v703
      %v705 = vpop.f32.mrb[0].mxu0
      %706 = vmatprep.mubr.f32.mxu0 0.0
      %707 = vmatmul.mubr.f32.gmra.mrb[0].mxu0 %v509
      %v708 = vpop.f32.mrb[0].mxu0
      %v709 = vadd.f32 %v448, %v708
      %v710 = vpop.f32.mrb[0].mxu0
      %711 = vmatprep.mubr.f32.mxu0 0.0
      %712 = vmatmul.mubr.f32.gmra.mrb[0].mxu0 %v512
      %v713 = vpop.f32.mrb[0].mxu0
      %v714 = vadd.f32 %v448, %v713
      %v715 = vpop.f32.mrb[0].mxu0
      %716 = vmatprep.mubr.f32.mxu0 0.0
      %717 = vmatmul.mubr.f32.gmra.mrb[0].mxu0 %v515
      %v718 = vpop.f32.mrb[0].mxu0
      %v719 = vadd.f32 %v448, %v718
      %v720 = vpop.f32.mrb[0].mxu0
      %721 = vmatprep.mubr.f32.mxu0 0.0
      %722 = vmatmul.mubr.f32.gmra.mrb[0].mxu0 %v518
      %v723 = vpop.f32.mrb[0].mxu0
      %v724 = vadd.f32 %v448, %v723
      %v725 = vpop.f32.mrb[0].mxu0
      %726 = vmatprep.mubr.f32.mxu0 0.0
      %727 = vmatmul.mubr.f32.gmra.mrb[0].mxu0 %v521
      %v728 = vpop.f32.mrb[0].mxu0
      %v729 = vadd.f32 %v448, %v728
      %v730 = vpop.f32.mrb[0].mxu0
      %731 = vmatprep.mubr.f32.mxu0 0.0
      %732 = vmatmul.mubr.f32.gmra.mrb[0].mxu0 %v524
      %v733 = vpop.f32.mrb[0].mxu0
      %v734 = vadd.f32 %v448, %v733
      %v735 = vpop.f32.mrb[0].mxu0
      %736 = vmatprep.mubr.f32.mxu0 0.0
      %737 = vmatmul.mubr.f32.gmra.mrb[0].mxu0 %v527
      %v738 = vpop.f32.mrb[0].mxu0
      %v739 = vadd.f32 %v448, %v738
      %v740 = vpop.f32.mrb[0].mxu0
      %741 = vmatprep.mubr.f32.mxu0 0.0
      %742 = vmatmul.mubr.f32.gmra.mrb[0].mxu0 %v530
      %v743 = vpop.f32.mrb[0].mxu0
      %v744 = vadd.f32 %v448, %v743
      %v745 = vpop.f32.mrb[0].mxu0
      %746 = vmatprep.mubr.f32.mxu0 0.0
      %747 = vmatmul.mubr.f32.gmra.mrb[0].mxu0 %v533
      %v748 = vpop.f32.mrb[0].mxu0
      %v749 = vadd.f32 %v448, %v748
      %v750 = vpop.f32.mrb[0].mxu0
      %751 = vmatprep.mubr.f32.mxu0 0.0
      %752 = vmatmul.mubr.f32.gmra.mrb[0].mxu0 %v536
      %v753 = vpop.f32.mrb[0].mxu0
      %v754 = vadd.f32 %v448, %v753
      %v755 = vpop.f32.mrb[0].mxu0
      %756 = vmatprep.mubr.f32.mxu0 0.0
      %757 = vmatmul.mubr.f32.gmra.mrb[0].mxu0 %v539
      %v758 = vpop.f32.mrb[0].mxu0
      %v759 = vadd.f32 %v448, %v758
      %v760 = vpop.f32.mrb[0].mxu0
      %761 = vmatprep.mubr.f32.mxu0 0.0
      %762 = vmatmul.mubr.f32.gmra.mrb[0].mxu0 %v542
      %v763 = vpop.f32.mrb[0].mxu0
      %v764 = vadd.f32 %v448, %v763
      %v765 = vpop.f32.mrb[0].mxu0
      %766 = vmatprep.mubr.f32.mxu0 0.0
      %767 = vmatmul.mubr.f32.gmra.mrb[0].mxu0 %v545
      %v768 = vpop.f32.mrb[0].mxu0
      %v769 = vadd.f32 %v448, %v768
      %v770 = vpop.f32.mrb[0].mxu0
      %771 = vdwg.mxu0
      %v772 = vmax.f32 %v614, 0.0
      %v773 = vmax.f32 %v619, 0.0
      %v774 = vmax.f32 %v624, 0.0
      %v775 = vmax.f32 %v629, 0.0
      %v776 = vmax.f32 %v634, 0.0
      %v777 = vmax.f32 %v639, 0.0
      %v778 = vmax.f32 %v644, 0.0
      %v779 = vmax.f32 %v649, 0.0
      %v780 = vmax.f32 %v654, 0.0
      %v781 = vmax.f32 %v659, 0.0
      %v782 = vmax.f32 %v664, 0.0
      %v783 = vmax.f32 %v669, 0.0
      %v784 = vmax.f32 %v674, 0.0
      %v785 = vmax.f32 %v679, 0.0
      %v786 = vmax.f32 %v684, 0.0
      %v787 = vmax.f32 %v689, 0.0
      %v788 = vmax.f32 %v694, 0.0
      %v789 = vmax.f32 %v699, 0.0
      %v790 = vmax.f32 %v704, 0.0
      %v791 = vmax.f32 %v709, 0.0
      %v792 = vmax.f32 %v714, 0.0
      %v793 = vmax.f32 %v719, 0.0
      %v794 = vmax.f32 %v724, 0.0
      %v795 = vmax.f32 %v729, 0.0
      %v796 = vmax.f32 %v734, 0.0
      %v797 = vmax.f32 %v739, 0.0
      %v798 = vmax.f32 %v744, 0.0
      %v799 = vmax.f32 %v749, 0.0
      %v800 = vmax.f32 %v754, 0.0
      %v801 = vmax.f32 %v759, 0.0
      %v802 = vmax.f32 %v764, 0.0
      %v803 = vmax.f32 %v769, 0.0
      %v804 = vld [vmem:[%s401] sm:$0xff]
      %v805 = vld [vmem:[%s401 + $0x8] sm:$0xff]
      %v806 = vld [vmem:[%s401 + $0x10] sm:$0xff]
      %v807 = vld [vmem:[%s401 + $0x18] sm:$0xff]
      %v808 = vld [vmem:[%s401 + $0x20] sm:$0xff]
      %v809 = vld [vmem:[%s401 + $0x28] sm:$0xff]
      %v810 = vld [vmem:[%s401 + $0x30] sm:$0xff]
      %v811 = vld [vmem:[%s401 + $0x38] sm:$0xff]
      %v812 = vld [vmem:[%s4] sm:$0xff]
      %v813 = vld [vmem:[%s4 + $0x8] sm:$0xff]
      %v814 = vld [vmem:[%s4 + $0x10] sm:$0xff]
      %v815 = vld [vmem:[%s4 + $0x18] sm:$0xff]
      %v816 = vld [vmem:[%s4 + $0x20] sm:$0xff]
      %v817 = vld [vmem:[%s4 + $0x28] sm:$0xff]
      %v818 = vld [vmem:[%s4 + $0x30] sm:$0xff]
      %v819 = vld [vmem:[%s4 + $0x38] sm:$0xff]
      %v820 = vld [vmem:[%s5] sm:$0x1]
      %v822 = vlaneseq
      %v823 = vshrl.u32 %v822, 7
      %v824 = vsub.s32 0, %v823
      %v825 = vrot.slane %v820, %v824
      %vm827 = vcmask 523264
      %v829 = vsel %vm827, %v804, 0
      %v832 = vsel %vm827, %v805, 0
      %v835 = vsel %vm827, %v806, 0
      %v838 = vsel %vm827, %v807, 0
      %v841 = vsel %vm827, %v808, 0
      %v844 = vsel %vm827, %v809, 0
      %v847 = vsel %vm827, %v810, 0
      %v850 = vsel %vm827, %v811, 0
      %852 = vmatprep.subr.mxu0 0.0
      %853 = vmatpush1.msra.mxu0 %v812
      %854 = vmatprep.subr.mxu0 0.0
      %855 = vmatpush1.msra.mxu0 %v813
      %856 = vmatprep.subr.mxu0 0.0
      %857 = vmatpush1.msra.mxu0 %v814
      %858 = vmatprep.subr.mxu0 0.0
      %859 = vmatpush1.msra.mxu0 %v815
      %860 = vmatprep.subr.mxu0 0.0
      %861 = vmatpush1.msra.mxu0 %v816
      %862 = vmatprep.subr.mxu0 0.0
      %863 = vmatpush1.msra.mxu0 %v817
      %864 = vmatprep.subr.mxu0 0.0
      %865 = vmatpush1.msra.mxu0 %v818
      %866 = vmatprep.subr.mxu0 0.0
      %867 = vmatpush1.msra.mxu0 %v819
      %868 = vmatprep.subr.mxu0 0.0
      %869 = vmatpush1.msra.mxu0 0.0
      %870 = vmatprep.subr.mxu0 0.0
      %871 = vmatpush1.msra.mxu0 0.0
      %872 = vmatprep.subr.mxu0 0.0
      %873 = vmatpush1.msra.mxu0 0.0
      %874 = vmatprep.subr.mxu0 0.0
      %875 = vmatpush1.msra.mxu0 0.0
      %876 = vmatprep.subr.mxu0 0.0
      %877 = vmatpush1.msra.mxu0 0.0
      %878 = vmatprep.subr.mxu0 0.0
      %879 = vmatpush1.msra.mxu0 0.0
      %880 = vmatprep.subr.mxu0 0.0
      %881 = vmatpush1.msra.mxu0 0.0
      %882 = vmatprep.subr.mxu0 0.0
      %883 = vmatpush1.msra.mxu0 0.0
      %884 = vmatprep.subr.mxu0 0.0
      %885 = vmatpush1.msra.mxu0 0.0
      %886 = vmatprep.subr.mxu0 0.0
      %887 = vmatpush1.msra.mxu0 0.0
      %888 = vmatprep.subr.mxu0 0.0
      %889 = vmatpush1.msra.mxu0 0.0
      %890 = vmatprep.subr.mxu0 0.0
      %891 = vmatpush1.msra.mxu0 0.0
      %892 = vmatprep.subr.mxu0 0.0
      %893 = vmatpush1.msra.mxu0 0.0
      %894 = vmatprep.subr.mxu0 0.0
      %895 = vmatpush1.msra.mxu0 0.0
      %896 = vmatprep.subr.mxu0 0.0
      %897 = vmatpush1.msra.mxu0 0.0
      %898 = vmatprep.subr.mxu0 0.0
      %899 = vmatpush1.msra.mxu0 0.0
      %900 = vmatprep.subr.mxu0 0.0
      %901 = vmatpush1.msra.mxu0 0.0
      %902 = vmatprep.subr.mxu0 0.0
      %903 = vmatpush1.msra.mxu0 0.0
      %904 = vmatprep.subr.mxu0 0.0
      %905 = vmatpush1.msra.mxu0 0.0
      %906 = vmatprep.subr.mxu0 0.0
      %907 = vmatpush1.msra.mxu0 0.0
      %908 = vmatprep.subr.mxu0 0.0
      %909 = vmatpush1.msra.mxu0 0.0
      %910 = vmatprep.subr.mxu0 0.0
      %911 = vmatpush1.msra.mxu0 0.0
      %912 = vmatprep.subr.mxu0 0.0
      %913 = vmatpush1.msra.mxu0 0.0
      %914 = vmatprep.subr.mxu0 0.0
      %915 = vmatpush1.msra.mxu0 0.0
      %916 = vmatprep.mubr.f32.mxu0 0.0
      %917 = vmatmul.mubr.f32.gmra.mrb[0].mxu0 %v829
      %v918 = vpop.f32.mrb[0].mxu0
      %v919 = vadd.f32 %v825, %v918
      %v920 = vpop.f32.mrb[0].mxu0
      %921 = vmatprep.mubr.f32.mxu0 0.0
      %922 = vmatmul.mubr.f32.gmra.mrb[0].mxu0 %v832
      %v923 = vpop.f32.mrb[0].mxu0
      %v924 = vadd.f32 %v825, %v923
      %v925 = vpop.f32.mrb[0].mxu0
      %926 = vmatprep.mubr.f32.mxu0 0.0
      %927 = vmatmul.mubr.f32.gmra.mrb[0].mxu0 %v835
      %v928 = vpop.f32.mrb[0].mxu0
      %v929 = vadd.f32 %v825, %v928
      %v930 = vpop.f32.mrb[0].mxu0
      %931 = vmatprep.mubr.f32.mxu0 0.0
      %932 = vmatmul.mubr.f32.gmra.mrb[0].mxu0 %v838
      %v933 = vpop.f32.mrb[0].mxu0
      %v934 = vadd.f32 %v825, %v933
      %v935 = vpop.f32.mrb[0].mxu0
      %936 = vmatprep.mubr.f32.mxu0 0.0
      %937 = vmatmul.mubr.f32.gmra.mrb[0].mxu0 %v841
      %v938 = vpop.f32.mrb[0].mxu0
      %v939 = vadd.f32 %v825, %v938
      %v940 = vpop.f32.mrb[0].mxu0
      %941 = vmatprep.mubr.f32.mxu0 0.0
      %942 = vmatmul.mubr.f32.gmra.mrb[0].mxu0 %v844
      %v943 = vpop.f32.mrb[0].mxu0
      %v944 = vadd.f32 %v825, %v943
      %v945 = vpop.f32.mrb[0].mxu0
      %946 = vmatprep.mubr.f32.mxu0 0.0
      %947 = vmatmul.mubr.f32.gmra.mrb[0].mxu0 %v847
      %v948 = vpop.f32.mrb[0].mxu0
      %v949 = vadd.f32 %v825, %v948
      %v950 = vpop.f32.mrb[0].mxu0
      %951 = vmatprep.mubr.f32.mxu0 0.0
      %952 = vmatmul.mubr.f32.gmra.mrb[0].mxu0 %v850
      %v953 = vpop.f32.mrb[0].mxu0
      %v954 = vadd.f32 %v825, %v953
      %v955 = vpop.f32.mrb[0].mxu0
      %956 = vdwg.mxu0
      %v957 = vmax.f32 %v919, 0.0
      %v958 = vmax.f32 %v924, 0.0
      %v959 = vmax.f32 %v929, 0.0
      %v960 = vmax.f32 %v934, 0.0
      %v961 = vmax.f32 %v939, 0.0
      %v962 = vmax.f32 %v944, 0.0
      %v963 = vmax.f32 %v949, 0.0
      %v964 = vmax.f32 %v954, 0.0
      %v965 = vld [vmem:[%s6] sm:$0xff]
      %v966 = vld [vmem:[%s6 + $0x8] sm:$0xff]
      %v967 = vld [vmem:[%s7] sm:$0xff]
      %v968 = vld [vmem:[%s7 + $0x8] sm:$0xff]
      %v969 = vld [vmem:[%s7 + $0x10] sm:$0xff]
      %v970 = vld [vmem:[%s7 + $0x18] sm:$0xff]
      %v971 = vld [vmem:[%s7 + $0x20] sm:$0xff]
      %v972 = vld [vmem:[%s7 + $0x28] sm:$0xff]
      %v973 = vld [vmem:[%s7 + $0x30] sm:$0xff]
      %v974 = vld [vmem:[%s7 + $0x38] sm:$0xff]
      %v975 = vld [vmem:[%s7 + $0x40] sm:$0xff]
      %v976 = vld [vmem:[%s7 + $0x48] sm:$0xff]
      %v977 = vld [vmem:[%s7 + $0x50] sm:$0xff]
      %v978 = vld [vmem:[%s7 + $0x58] sm:$0xff]
      %v979 = vld [vmem:[%s7 + $0x60] sm:$0xff]
      %v980 = vld [vmem:[%s7 + $0x68] sm:$0xff]
      %v981 = vld [vmem:[%s7 + $0x70] sm:$0xff]
      %v982 = vld [vmem:[%s7 + $0x78] sm:$0xff]
      %v983 = vld [vmem:[%s7 + $0x80] sm:$0xff]
      %v984 = vld [vmem:[%s7 + $0x88] sm:$0xff]
      %v985 = vld [vmem:[%s7 + $0x90] sm:$0xff]
      %v986 = vld [vmem:[%s7 + $0x98] sm:$0xff]
      %v987 = vld [vmem:[%s7 + $0xa0] sm:$0xff]
      %v988 = vld [vmem:[%s7 + $0xa8] sm:$0xff]
      %v989 = vld [vmem:[%s7 + $0xb0] sm:$0xff]
      %v990 = vld [vmem:[%s7 + $0xb8] sm:$0xff]
      %v991 = vld [vmem:[%s7 + $0xc0] sm:$0xff]
      %v992 = vld [vmem:[%s7 + $0xc8] sm:$0xff]
      %v993 = vld [vmem:[%s7 + $0xd0] sm:$0xff]
      %v994 = vld [vmem:[%s7 + $0xd8] sm:$0xff]
      %v995 = vld [vmem:[%s7 + $0xe0] sm:$0xff]
      %v996 = vld [vmem:[%s7 + $0xe8] sm:$0xff]
      %v997 = vld [vmem:[%s7 + $0xf0] sm:$0xff]
      %v998 = vld [vmem:[%s7 + $0xf8] sm:$0xff]
      %vm999 = vcmask 64512
      %v1001 = vsel %vm999, %v965, 0
      %v1004 = vsel %vm999, %v966, 0
      %1006 = vmatprep.subr.mxu0 0.0
      %1007 = vmatpush1.msra.mxu0 %v957
      %1008 = vmatprep.subr.mxu0 0.0
      %1009 = vmatpush1.msra.mxu0 0.0
      %1010 = vmatprep.subr.mxu0 0.0
      %1011 = vmatpush1.msra.mxu0 0.0
      %1012 = vmatprep.subr.mxu0 0.0
      %1013 = vmatpush1.msra.mxu0 0.0
      %1014 = vmatprep.subr.mxu0 0.0
      %1015 = vmatpush1.msra.mxu0 0.0
      %1016 = vmatprep.subr.mxu0 0.0
      %1017 = vmatpush1.msra.mxu0 0.0
      %1018 = vmatprep.subr.mxu0 0.0
      %1019 = vmatpush1.msra.mxu0 0.0
      %1020 = vmatprep.subr.mxu0 0.0
      %1021 = vmatpush1.msra.mxu0 0.0
      %1022 = vmatprep.subr.mxu0 0.0
      %1023 = vmatpush1.msra.mxu0 0.0
      %1024 = vmatprep.subr.mxu0 0.0
      %1025 = vmatpush1.msra.mxu0 0.0
      %1026 = vmatprep.subr.mxu0 0.0
      %1027 = vmatpush1.msra.mxu0 0.0
      %1028 = vmatprep.subr.mxu0 0.0
      %1029 = vmatpush1.msra.mxu0 0.0
      %1030 = vmatprep.subr.mxu0 0.0
      %1031 = vmatpush1.msra.mxu0 0.0
      %1032 = vmatprep.subr.mxu0 0.0
      %1033 = vmatpush1.msra.mxu0 0.0
      %1034 = vmatprep.subr.mxu0 0.0
      %1035 = vmatpush1.msra.mxu0 0.0
      %1036 = vmatprep.subr.mxu0 0.0
      %1037 = vmatpush1.msra.mxu0 0.0
      %1038 = vmatprep.subr.mxu0 0.0
      %1039 = vmatpush1.msra.mxu0 0.0
      %1040 = vmatprep.subr.mxu0 0.0
      %1041 = vmatpush1.msra.mxu0 0.0
      %1042 = vmatprep.subr.mxu0 0.0
      %1043 = vmatpush1.msra.mxu0 0.0
      %1044 = vmatprep.subr.mxu0 0.0
      %1045 = vmatpush1.msra.mxu0 0.0
      %1046 = vmatprep.subr.mxu0 0.0
      %1047 = vmatpush1.msra.mxu0 0.0
      %1048 = vmatprep.subr.mxu0 0.0
      %1049 = vmatpush1.msra.mxu0 0.0
      %1050 = vmatprep.subr.mxu0 0.0
      %1051 = vmatpush1.msra.mxu0 0.0
      %1052 = vmatprep.subr.mxu0 0.0
      %1053 = vmatpush1.msra.mxu0 0.0
      %1054 = vmatprep.subr.mxu0 0.0
      %1055 = vmatpush1.msra.mxu0 0.0
      %1056 = vmatprep.subr.mxu0 0.0
      %1057 = vmatpush1.msra.mxu0 0.0
      %1058 = vmatprep.subr.mxu0 0.0
      %1059 = vmatpush1.msra.mxu0 0.0
      %1060 = vmatprep.subr.mxu0 0.0
      %1061 = vmatpush1.msra.mxu0 0.0
      %1062 = vmatprep.subr.mxu0 0.0
      %1063 = vmatpush1.msra.mxu0 0.0
      %1064 = vmatprep.subr.mxu0 0.0
      %1065 = vmatpush1.msra.mxu0 0.0
      %1066 = vmatprep.subr.mxu0 0.0
      %1067 = vmatpush1.msra.mxu0 0.0
      %1068 = vmatprep.subr.mxu0 0.0
      %1069 = vmatpush1.msra.mxu0 0.0
      %1070 = vmatprep.mubr.f32.mxu0 0.0
      %1071 = vmatmul.mubr.f32.gmra.mrb[0].mxu0 %v1001
      %v1072 = vpop.f32.mrb[0].mxu0
      %v1073 = vadd.f32 0.0, %v1072
      %v1074 = vpop.f32.mrb[0].mxu0
      %1075 = vmatprep.mubr.f32.mxu0 0.0
      %1076 = vmatmul.mubr.f32.gmra.mrb[0].mxu0 %v1004
      %v1077 = vpop.f32.mrb[0].mxu0
      %v1078 = vadd.f32 0.0, %v1077
      %v1079 = vpop.f32.mrb[0].mxu0
      %1080 = vdwg.mxu0
      %1082 = vset.pattern.permute.xlu0 0
      %1083 = vperm.xlu0 %1082, %v967
      %v1084 = vpop.permute.xlu0 %1083
      %1087 = vset.pattern.permute.xlu0 0
      %1088 = vperm.xlu0 %1087, %v968
      %v1089 = vpop.permute.xlu0 %1088
      %1092 = vset.pattern.permute.xlu0 0
      %1093 = vperm.xlu0 %1092, %v969
      %v1094 = vpop.permute.xlu0 %1093
      %1097 = vset.pattern.permute.xlu0 0
      %1098 = vperm.xlu0 %1097, %v970
      %v1099 = vpop.permute.xlu0 %1098
      %1102 = vset.pattern.permute.xlu0 0
      %1103 = vperm.xlu0 %1102, %v971
      %v1104 = vpop.permute.xlu0 %1103
      %1107 = vset.pattern.permute.xlu0 0
      %1108 = vperm.xlu0 %1107, %v972
      %v1109 = vpop.permute.xlu0 %1108
      %1112 = vset.pattern.permute.xlu0 0
      %1113 = vperm.xlu0 %1112, %v973
      %v1114 = vpop.permute.xlu0 %1113
      %1117 = vset.pattern.permute.xlu0 0
      %1118 = vperm.xlu0 %1117, %v974
      %v1119 = vpop.permute.xlu0 %1118
      %1122 = vset.pattern.permute.xlu0 0
      %1123 = vperm.xlu0 %1122, %v975
      %v1124 = vpop.permute.xlu0 %1123
      %1127 = vset.pattern.permute.xlu0 0
      %1128 = vperm.xlu0 %1127, %v976
      %v1129 = vpop.permute.xlu0 %1128
      %1132 = vset.pattern.permute.xlu0 0
      %1133 = vperm.xlu0 %1132, %v977
      %v1134 = vpop.permute.xlu0 %1133
      %1137 = vset.pattern.permute.xlu0 0
      %1138 = vperm.xlu0 %1137, %v978
      %v1139 = vpop.permute.xlu0 %1138
      %1142 = vset.pattern.permute.xlu0 0
      %1143 = vperm.xlu0 %1142, %v979
      %v1144 = vpop.permute.xlu0 %1143
      %1147 = vset.pattern.permute.xlu0 0
      %1148 = vperm.xlu0 %1147, %v980
      %v1149 = vpop.permute.xlu0 %1148
      %1152 = vset.pattern.permute.xlu0 0
      %1153 = vperm.xlu0 %1152, %v981
      %v1154 = vpop.permute.xlu0 %1153
      %1157 = vset.pattern.permute.xlu0 0
      %1158 = vperm.xlu0 %1157, %v982
      %v1159 = vpop.permute.xlu0 %1158
      %1162 = vset.pattern.permute.xlu0 0
      %1163 = vperm.xlu0 %1162, %v983
      %v1164 = vpop.permute.xlu0 %1163
      %1167 = vset.pattern.permute.xlu0 0
      %1168 = vperm.xlu0 %1167, %v984
      %v1169 = vpop.permute.xlu0 %1168
      %1172 = vset.pattern.permute.xlu0 0
      %1173 = vperm.xlu0 %1172, %v985
      %v1174 = vpop.permute.xlu0 %1173
      %1177 = vset.pattern.permute.xlu0 0
      %1178 = vperm.xlu0 %1177, %v986
      %v1179 = vpop.permute.xlu0 %1178
      %1182 = vset.pattern.permute.xlu0 0
      %1183 = vperm.xlu0 %1182, %v987
      %v1184 = vpop.permute.xlu0 %1183
      %1187 = vset.pattern.permute.xlu0 0
      %1188 = vperm.xlu0 %1187, %v988
      %v1189 = vpop.permute.xlu0 %1188
      %1192 = vset.pattern.permute.xlu0 0
      %1193 = vperm.xlu0 %1192, %v989
      %v1194 = vpop.permute.xlu0 %1193
      %1197 = vset.pattern.permute.xlu0 0
      %1198 = vperm.xlu0 %1197, %v990
      %v1199 = vpop.permute.xlu0 %1198
      %1202 = vset.pattern.permute.xlu0 0
      %1203 = vperm.xlu0 %1202, %v991
      %v1204 = vpop.permute.xlu0 %1203
      %1207 = vset.pattern.permute.xlu0 0
      %1208 = vperm.xlu0 %1207, %v992
      %v1209 = vpop.permute.xlu0 %1208
      %1212 = vset.pattern.permute.xlu0 0
      %1213 = vperm.xlu0 %1212, %v993
      %v1214 = vpop.permute.xlu0 %1213
      %1217 = vset.pattern.permute.xlu0 0
      %1218 = vperm.xlu0 %1217, %v994
      %v1219 = vpop.permute.xlu0 %1218
      %1222 = vset.pattern.permute.xlu0 0
      %1223 = vperm.xlu0 %1222, %v995
      %v1224 = vpop.permute.xlu0 %1223
      %1227 = vset.pattern.permute.xlu0 0
      %1228 = vperm.xlu0 %1227, %v996
      %v1229 = vpop.permute.xlu0 %1228
      %1232 = vset.pattern.permute.xlu0 0
      %1233 = vperm.xlu0 %1232, %v997
      %v1234 = vpop.permute.xlu0 %1233
      %1237 = vset.pattern.permute.xlu0 0
      %1238 = vperm.xlu0 %1237, %v998
      %v1239 = vpop.permute.xlu0 %1238
      %v1241 = vmul.f32 %v1084, %v1073
      %v1242 = vmul.f32 %v1089, %v1078
      %v1243 = vmul.f32 %v1094, %v1073
      %v1244 = vmul.f32 %v1099, %v1078
      %v1245 = vmul.f32 %v1104, %v1073
      %v1246 = vmul.f32 %v1109, %v1078
      %v1247 = vmul.f32 %v1114, %v1073
      %v1248 = vmul.f32 %v1119, %v1078
      %v1249 = vmul.f32 %v1124, %v1073
      %v1250 = vmul.f32 %v1129, %v1078
      %v1251 = vmul.f32 %v1134, %v1073
      %v1252 = vmul.f32 %v1139, %v1078
      %v1253 = vmul.f32 %v1144, %v1073
      %v1254 = vmul.f32 %v1149, %v1078
      %v1255 = vmul.f32 %v1154, %v1073
      %v1256 = vmul.f32 %v1159, %v1078
      %v1257 = vmul.f32 %v1164, %v1073
      %v1258 = vmul.f32 %v1169, %v1078
      %v1259 = vmul.f32 %v1174, %v1073
      %v1260 = vmul.f32 %v1179, %v1078
      %v1261 = vmul.f32 %v1184, %v1073
      %v1262 = vmul.f32 %v1189, %v1078
      %v1263 = vmul.f32 %v1194, %v1073
      %v1264 = vmul.f32 %v1199, %v1078
      %v1265 = vmul.f32 %v1204, %v1073
      %v1266 = vmul.f32 %v1209, %v1078
      %v1267 = vmul.f32 %v1214, %v1073
      %v1268 = vmul.f32 %v1219, %v1078
      %v1269 = vmul.f32 %v1224, %v1073
      %v1270 = vmul.f32 %v1229, %v1078
      %v1271 = vmul.f32 %v1234, %v1073
      %v1272 = vmul.f32 %v1239, %v1078
      %v1273 = vadd.f32 %v772, %v1241
      %v1274 = vadd.f32 %v773, %v1242
      %v1275 = vadd.f32 %v774, %v1243
      %v1276 = vadd.f32 %v775, %v1244
      %v1277 = vadd.f32 %v776, %v1245
      %v1278 = vadd.f32 %v777, %v1246
      %v1279 = vadd.f32 %v778, %v1247
      %v1280 = vadd.f32 %v779, %v1248
      %v1281 = vadd.f32 %v780, %v1249
      %v1282 = vadd.f32 %v781, %v1250
      %v1283 = vadd.f32 %v782, %v1251
      %v1284 = vadd.f32 %v783, %v1252
      %v1285 = vadd.f32 %v784, %v1253
      %v1286 = vadd.f32 %v785, %v1254
      %v1287 = vadd.f32 %v786, %v1255
      %v1288 = vadd.f32 %v787, %v1256
      %v1289 = vadd.f32 %v788, %v1257
      %v1290 = vadd.f32 %v789, %v1258
      %v1291 = vadd.f32 %v790, %v1259
      %v1292 = vadd.f32 %v791, %v1260
      %v1293 = vadd.f32 %v792, %v1261
      %v1294 = vadd.f32 %v793, %v1262
      %v1295 = vadd.f32 %v794, %v1263
      %v1296 = vadd.f32 %v795, %v1264
      %v1297 = vadd.f32 %v796, %v1265
      %v1298 = vadd.f32 %v797, %v1266
      %v1299 = vadd.f32 %v798, %v1267
      %v1300 = vadd.f32 %v799, %v1268
      %v1301 = vadd.f32 %v800, %v1269
      %v1302 = vadd.f32 %v801, %v1270
      %v1303 = vadd.f32 %v802, %v1271
      %v1304 = vadd.f32 %v803, %v1272
      %1305 = vmatprep.subr.mxu0 0.0
      %1306 = vmatpush1.msra.mxu0 %v958
      %1307 = vmatprep.subr.mxu0 0.0
      %1308 = vmatpush1.msra.mxu0 0.0
      %1309 = vmatprep.subr.mxu0 0.0
      %1310 = vmatpush1.msra.mxu0 0.0
      %1311 = vmatprep.subr.mxu0 0.0
      %1312 = vmatpush1.msra.mxu0 0.0
      %1313 = vmatprep.subr.mxu0 0.0
      %1314 = vmatpush1.msra.mxu0 0.0
      %1315 = vmatprep.subr.mxu0 0.0
      %1316 = vmatpush1.msra.mxu0 0.0
      %1317 = vmatprep.subr.mxu0 0.0
      %1318 = vmatpush1.msra.mxu0 0.0
      %1319 = vmatprep.subr.mxu0 0.0
      %1320 = vmatpush1.msra.mxu0 0.0
      %1321 = vmatprep.subr.mxu0 0.0
      %1322 = vmatpush1.msra.mxu0 0.0
      %1323 = vmatprep.subr.mxu0 0.0
      %1324 = vmatpush1.msra.mxu0 0.0
      %1325 = vmatprep.subr.mxu0 0.0
      %1326 = vmatpush1.msra.mxu0 0.0
      %1327 = vmatprep.subr.mxu0 0.0
      %1328 = vmatpush1.msra.mxu0 0.0
      %1329 = vmatprep.subr.mxu0 0.0
      %1330 = vmatpush1.msra.mxu0 0.0
      %1331 = vmatprep.subr.mxu0 0.0
      %1332 = vmatpush1.msra.mxu0 0.0
      %1333 = vmatprep.subr.mxu0 0.0
      %1334 = vmatpush1.msra.mxu0 0.0
      %1335 = vmatprep.subr.mxu0 0.0
      %1336 = vmatpush1.msra.mxu0 0.0
      %1337 = vmatprep.subr.mxu0 0.0
      %1338 = vmatpush1.msra.mxu0 0.0
      %1339 = vmatprep.subr.mxu0 0.0
      %1340 = vmatpush1.msra.mxu0 0.0
      %1341 = vmatprep.subr.mxu0 0.0
      %1342 = vmatpush1.msra.mxu0 0.0
      %1343 = vmatprep.subr.mxu0 0.0
      %1344 = vmatpush1.msra.mxu0 0.0
      %1345 = vmatprep.subr.mxu0 0.0
      %1346 = vmatpush1.msra.mxu0 0.0
      %1347 = vmatprep.subr.mxu0 0.0
      %1348 = vmatpush1.msra.mxu0 0.0
      %1349 = vmatprep.subr.mxu0 0.0
      %1350 = vmatpush1.msra.mxu0 0.0
      %1351 = vmatprep.subr.mxu0 0.0
      %1352 = vmatpush1.msra.mxu0 0.0
      %1353 = vmatprep.subr.mxu0 0.0
      %1354 = vmatpush1.msra.mxu0 0.0
      %1355 = vmatprep.subr.mxu0 0.0
      %1356 = vmatpush1.msra.mxu0 0.0
      %1357 = vmatprep.subr.mxu0 0.0
      %1358 = vmatpush1.msra.mxu0 0.0
      %1359 = vmatprep.subr.mxu0 0.0
      %1360 = vmatpush1.msra.mxu0 0.0
      %1361 = vmatprep.subr.mxu0 0.0
      %1362 = vmatpush1.msra.mxu0 0.0
      %1363 = vmatprep.subr.mxu0 0.0
      %1364 = vmatpush1.msra.mxu0 0.0
      %1365 = vmatprep.subr.mxu0 0.0
      %1366 = vmatpush1.msra.mxu0 0.0
      %1367 = vmatprep.subr.mxu0 0.0
      %1368 = vmatpush1.msra.mxu0 0.0
      %1369 = vmatprep.mubr.f32.mxu0 0.0
      %1370 = vmatmul.mubr.f32.gmra.mrb[0].mxu0 %v1001
      %v1371 = vpop.f32.mrb[0].mxu0
      %v1372 = vadd.f32 0.0, %v1371
      %v1373 = vpop.f32.mrb[0].mxu0
      %1374 = vmatprep.mubr.f32.mxu0 0.0
      %1375 = vmatmul.mubr.f32.gmra.mrb[0].mxu0 %v1004
      %v1376 = vpop.f32.mrb[0].mxu0
      %v1377 = vadd.f32 0.0, %v1376
      %v1378 = vpop.f32.mrb[0].mxu0
      %1379 = vdwg.mxu0
      %1380 = vset.pattern.permute.xlu0 1
      %1381 = vperm.xlu0 %1380, %v967
      %v1382 = vpop.permute.xlu0 %1381
      %1384 = vset.pattern.permute.xlu0 1
      %1385 = vperm.xlu0 %1384, %v968
      %v1386 = vpop.permute.xlu0 %1385
      %1388 = vset.pattern.permute.xlu0 1
      %1389 = vperm.xlu0 %1388, %v969
      %v1390 = vpop.permute.xlu0 %1389
      %1392 = vset.pattern.permute.xlu0 1
      %1393 = vperm.xlu0 %1392, %v970
      %v1394 = vpop.permute.xlu0 %1393
      %1396 = vset.pattern.permute.xlu0 1
      %1397 = vperm.xlu0 %1396, %v971
      %v1398 = vpop.permute.xlu0 %1397
      %1400 = vset.pattern.permute.xlu0 1
      %1401 = vperm.xlu0 %1400, %v972
      %v1402 = vpop.permute.xlu0 %1401
      %1404 = vset.pattern.permute.xlu0 1
      %1405 = vperm.xlu0 %1404, %v973
      %v1406 = vpop.permute.xlu0 %1405
      %1408 = vset.pattern.permute.xlu0 1
      %1409 = vperm.xlu0 %1408, %v974
      %v1410 = vpop.permute.xlu0 %1409
      %1412 = vset.pattern.permute.xlu0 1
      %1413 = vperm.xlu0 %1412, %v975
      %v1414 = vpop.permute.xlu0 %1413
      %1416 = vset.pattern.permute.xlu0 1
      %1417 = vperm.xlu0 %1416, %v976
      %v1418 = vpop.permute.xlu0 %1417
      %1420 = vset.pattern.permute.xlu0 1
      %1421 = vperm.xlu0 %1420, %v977
      %v1422 = vpop.permute.xlu0 %1421
      %1424 = vset.pattern.permute.xlu0 1
      %1425 = vperm.xlu0 %1424, %v978
      %v1426 = vpop.permute.xlu0 %1425
      %1428 = vset.pattern.permute.xlu0 1
      %1429 = vperm.xlu0 %1428, %v979
      %v1430 = vpop.permute.xlu0 %1429
      %1432 = vset.pattern.permute.xlu0 1
      %1433 = vperm.xlu0 %1432, %v980
      %v1434 = vpop.permute.xlu0 %1433
      %1436 = vset.pattern.permute.xlu0 1
      %1437 = vperm.xlu0 %1436, %v981
      %v1438 = vpop.permute.xlu0 %1437
      %1440 = vset.pattern.permute.xlu0 1
      %1441 = vperm.xlu0 %1440, %v982
      %v1442 = vpop.permute.xlu0 %1441
      %1444 = vset.pattern.permute.xlu0 1
      %1445 = vperm.xlu0 %1444, %v983
      %v1446 = vpop.permute.xlu0 %1445
      %1448 = vset.pattern.permute.xlu0 1
      %1449 = vperm.xlu0 %1448, %v984
      %v1450 = vpop.permute.xlu0 %1449
      %1452 = vset.pattern.permute.xlu0 1
      %1453 = vperm.xlu0 %1452, %v985
      %v1454 = vpop.permute.xlu0 %1453
      %1456 = vset.pattern.permute.xlu0 1
      %1457 = vperm.xlu0 %1456, %v986
      %v1458 = vpop.permute.xlu0 %1457
      %1460 = vset.pattern.permute.xlu0 1
      %1461 = vperm.xlu0 %1460, %v987
      %v1462 = vpop.permute.xlu0 %1461
      %1464 = vset.pattern.permute.xlu0 1
      %1465 = vperm.xlu0 %1464, %v988
      %v1466 = vpop.permute.xlu0 %1465
      %1468 = vset.pattern.permute.xlu0 1
      %1469 = vperm.xlu0 %1468, %v989
      %v1470 = vpop.permute.xlu0 %1469
      %1472 = vset.pattern.permute.xlu0 1
      %1473 = vperm.xlu0 %1472, %v990
      %v1474 = vpop.permute.xlu0 %1473
      %1476 = vset.pattern.permute.xlu0 1
      %1477 = vperm.xlu0 %1476, %v991
      %v1478 = vpop.permute.xlu0 %1477
      %1480 = vset.pattern.permute.xlu0 1
      %1481 = vperm.xlu0 %1480, %v992
      %v1482 = vpop.permute.xlu0 %1481
      %1484 = vset.pattern.permute.xlu0 1
      %1485 = vperm.xlu0 %1484, %v993
      %v1486 = vpop.permute.xlu0 %1485
      %1488 = vset.pattern.permute.xlu0 1
      %1489 = vperm.xlu0 %1488, %v994
      %v1490 = vpop.permute.xlu0 %1489
      %1492 = vset.pattern.permute.xlu0 1
      %1493 = vperm.xlu0 %1492, %v995
      %v1494 = vpop.permute.xlu0 %1493
      %1496 = vset.pattern.permute.xlu0 1
      %1497 = vperm.xlu0 %1496, %v996
      %v1498 = vpop.permute.xlu0 %1497
      %1500 = vset.pattern.permute.xlu0 1
      %1501 = vperm.xlu0 %1500, %v997
      %v1502 = vpop.permute.xlu0 %1501
      %1504 = vset.pattern.permute.xlu0 1
      %1505 = vperm.xlu0 %1504, %v998
      %v1506 = vpop.permute.xlu0 %1505
      %v1508 = vmul.f32 %v1382, %v1372
      %v1509 = vmul.f32 %v1386, %v1377
      %v1510 = vmul.f32 %v1390, %v1372
      %v1511 = vmul.f32 %v1394, %v1377
      %v1512 = vmul.f32 %v1398, %v1372
      %v1513 = vmul.f32 %v1402, %v1377
      %v1514 = vmul.f32 %v1406, %v1372
      %v1515 = vmul.f32 %v1410, %v1377
      %v1516 = vmul.f32 %v1414, %v1372
      %v1517 = vmul.f32 %v1418, %v1377
      %v1518 = vmul.f32 %v1422, %v1372
      %v1519 = vmul.f32 %v1426, %v1377
      %v1520 = vmul.f32 %v1430, %v1372
      %v1521 = vmul.f32 %v1434, %v1377
      %v1522 = vmul.f32 %v1438, %v1372
      %v1523 = vmul.f32 %v1442, %v1377
      %v1524 = vmul.f32 %v1446, %v1372
      %v1525 = vmul.f32 %v1450, %v1377
      %v1526 = vmul.f32 %v1454, %v1372
      %v1527 = vmul.f32 %v1458, %v1377
      %v1528 = vmul.f32 %v1462, %v1372
      %v1529 = vmul.f32 %v1466, %v1377
      %v1530 = vmul.f32 %v1470, %v1372
      %v1531 = vmul.f32 %v1474, %v1377
      %v1532 = vmul.f32 %v1478, %v1372
      %v1533 = vmul.f32 %v1482, %v1377
      %v1534 = vmul.f32 %v1486, %v1372
      %v1535 = vmul.f32 %v1490, %v1377
      %v1536 = vmul.f32 %v1494, %v1372
      %v1537 = vmul.f32 %v1498, %v1377
      %v1538 = vmul.f32 %v1502, %v1372
      %v1539 = vmul.f32 %v1506, %v1377
      %v1540 = vadd.f32 %v1273, %v1508
      %v1541 = vadd.f32 %v1274, %v1509
      %v1542 = vadd.f32 %v1275, %v1510
      %v1543 = vadd.f32 %v1276, %v1511
      %v1544 = vadd.f32 %v1277, %v1512
      %v1545 = vadd.f32 %v1278, %v1513
      %v1546 = vadd.f32 %v1279, %v1514
      %v1547 = vadd.f32 %v1280, %v1515
      %v1548 = vadd.f32 %v1281, %v1516
      %v1549 = vadd.f32 %v1282, %v1517
      %v1550 = vadd.f32 %v1283, %v1518
      %v1551 = vadd.f32 %v1284, %v1519
      %v1552 = vadd.f32 %v1285, %v1520
      %v1553 = vadd.f32 %v1286, %v1521
      %v1554 = vadd.f32 %v1287, %v1522
      %v1555 = vadd.f32 %v1288, %v1523
      %v1556 = vadd.f32 %v1289, %v1524
      %v1557 = vadd.f32 %v1290, %v1525
      %v1558 = vadd.f32 %v1291, %v1526
      %v1559 = vadd.f32 %v1292, %v1527
      %v1560 = vadd.f32 %v1293, %v1528
      %v1561 = vadd.f32 %v1294, %v1529
      %v1562 = vadd.f32 %v1295, %v1530
      %v1563 = vadd.f32 %v1296, %v1531
      %v1564 = vadd.f32 %v1297, %v1532
      %v1565 = vadd.f32 %v1298, %v1533
      %v1566 = vadd.f32 %v1299, %v1534
      %v1567 = vadd.f32 %v1300, %v1535
      %v1568 = vadd.f32 %v1301, %v1536
      %v1569 = vadd.f32 %v1302, %v1537
      %v1570 = vadd.f32 %v1303, %v1538
      %v1571 = vadd.f32 %v1304, %v1539
      %1572 = vmatprep.subr.mxu0 0.0
      %1573 = vmatpush1.msra.mxu0 %v959
      %1574 = vmatprep.subr.mxu0 0.0
      %1575 = vmatpush1.msra.mxu0 0.0
      %1576 = vmatprep.subr.mxu0 0.0
      %1577 = vmatpush1.msra.mxu0 0.0
      %1578 = vmatprep.subr.mxu0 0.0
      %1579 = vmatpush1.msra.mxu0 0.0
      %1580 = vmatprep.subr.mxu0 0.0
      %1581 = vmatpush1.msra.mxu0 0.0
      %1582 = vmatprep.subr.mxu0 0.0
      %1583 = vmatpush1.msra.mxu0 0.0
      %1584 = vmatprep.subr.mxu0 0.0
      %1585 = vmatpush1.msra.mxu0 0.0
      %1586 = vmatprep.subr.mxu0 0.0
      %1587 = vmatpush1.msra.mxu0 0.0
      %1588 = vmatprep.subr.mxu0 0.0
      %1589 = vmatpush1.msra.mxu0 0.0
      %1590 = vmatprep.subr.mxu0 0.0
      %1591 = vmatpush1.msra.mxu0 0.0
      %1592 = vmatprep.subr.mxu0 0.0
      %1593 = vmatpush1.msra.mxu0 0.0
      %1594 = vmatprep.subr.mxu0 0.0
      %1595 = vmatpush1.msra.mxu0 0.0
      %1596 = vmatprep.subr.mxu0 0.0
      %1597 = vmatpush1.msra.mxu0 0.0
      %1598 = vmatprep.subr.mxu0 0.0
      %1599 = vmatpush1.msra.mxu0 0.0
      %1600 = vmatprep.subr.mxu0 0.0
      %1601 = vmatpush1.msra.mxu0 0.0
      %1602 = vmatprep.subr.mxu0 0.0
      %1603 = vmatpush1.msra.mxu0 0.0
      %1604 = vmatprep.subr.mxu0 0.0
      %1605 = vmatpush1.msra.mxu0 0.0
      %1606 = vmatprep.subr.mxu0 0.0
      %1607 = vmatpush1.msra.mxu0 0.0
      %1608 = vmatprep.subr.mxu0 0.0
      %1609 = vmatpush1.msra.mxu0 0.0
      %1610 = vmatprep.subr.mxu0 0.0
      %1611 = vmatpush1.msra.mxu0 0.0
      %1612 = vmatprep.subr.mxu0 0.0
      %1613 = vmatpush1.msra.mxu0 0.0
      %1614 = vmatprep.subr.mxu0 0.0
      %1615 = vmatpush1.msra.mxu0 0.0
      %1616 = vmatprep.subr.mxu0 0.0
      %1617 = vmatpush1.msra.mxu0 0.0
      %1618 = vmatprep.subr.mxu0 0.0
      %1619 = vmatpush1.msra.mxu0 0.0
      %1620 = vmatprep.subr.mxu0 0.0
      %1621 = vmatpush1.msra.mxu0 0.0
      %1622 = vmatprep.subr.mxu0 0.0
      %1623 = vmatpush1.msra.mxu0 0.0
      %1624 = vmatprep.subr.mxu0 0.0
      %1625 = vmatpush1.msra.mxu0 0.0
      %1626 = vmatprep.subr.mxu0 0.0
      %1627 = vmatpush1.msra.mxu0 0.0
      %1628 = vmatprep.subr.mxu0 0.0
      %1629 = vmatpush1.msra.mxu0 0.0
      %1630 = vmatprep.subr.mxu0 0.0
      %1631 = vmatpush1.msra.mxu0 0.0
      %1632 = vmatprep.subr.mxu0 0.0
      %1633 = vmatpush1.msra.mxu0 0.0
      %1634 = vmatprep.subr.mxu0 0.0
      %1635 = vmatpush1.msra.mxu0 0.0
      %1636 = vmatprep.mubr.f32.mxu0 0.0
      %1637 = vmatmul.mubr.f32.gmra.mrb[0].mxu0 %v1001
      %v1638 = vpop.f32.mrb[0].mxu0
      %v1639 = vadd.f32 0.0, %v1638
      %v1640 = vpop.f32.mrb[0].mxu0
      %1641 = vmatprep.mubr.f32.mxu0 0.0
      %1642 = vmatmul.mubr.f32.gmra.mrb[0].mxu0 %v1004
      %v1643 = vpop.f32.mrb[0].mxu0
      %v1644 = vadd.f32 0.0, %v1643
      %v1645 = vpop.f32.mrb[0].mxu0
      %1646 = vdwg.mxu0
      %1647 = vset.pattern.permute.xlu0 2
      %1648 = vperm.xlu0 %1647, %v967
      %v1649 = vpop.permute.xlu0 %1648
      %1651 = vset.pattern.permute.xlu0 2
      %1652 = vperm.xlu0 %1651, %v968
      %v1653 = vpop.permute.xlu0 %1652
      %1655 = vset.pattern.permute.xlu0 2
      %1656 = vperm.xlu0 %1655, %v969
      %v1657 = vpop.permute.xlu0 %1656
      %1659 = vset.pattern.permute.xlu0 2
      %1660 = vperm.xlu0 %1659, %v970
      %v1661 = vpop.permute.xlu0 %1660
      %1663 = vset.pattern.permute.xlu0 2
      %1664 = vperm.xlu0 %1663, %v971
      %v1665 = vpop.permute.xlu0 %1664
      %1667 = vset.pattern.permute.xlu0 2
      %1668 = vperm.xlu0 %1667, %v972
      %v1669 = vpop.permute.xlu0 %1668
      %1671 = vset.pattern.permute.xlu0 2
      %1672 = vperm.xlu0 %1671, %v973
      %v1673 = vpop.permute.xlu0 %1672
      %1675 = vset.pattern.permute.xlu0 2
      %1676 = vperm.xlu0 %1675, %v974
      %v1677 = vpop.permute.xlu0 %1676
      %1679 = vset.pattern.permute.xlu0 2
      %1680 = vperm.xlu0 %1679, %v975
      %v1681 = vpop.permute.xlu0 %1680
      %1683 = vset.pattern.permute.xlu0 2
      %1684 = vperm.xlu0 %1683, %v976
      %v1685 = vpop.permute.xlu0 %1684
      %1687 = vset.pattern.permute.xlu0 2
      %1688 = vperm.xlu0 %1687, %v977
      %v1689 = vpop.permute.xlu0 %1688
      %1691 = vset.pattern.permute.xlu0 2
      %1692 = vperm.xlu0 %1691, %v978
      %v1693 = vpop.permute.xlu0 %1692
      %1695 = vset.pattern.permute.xlu0 2
      %1696 = vperm.xlu0 %1695, %v979
      %v1697 = vpop.permute.xlu0 %1696
      %1699 = vset.pattern.permute.xlu0 2
      %1700 = vperm.xlu0 %1699, %v980
      %v1701 = vpop.permute.xlu0 %1700
      %1703 = vset.pattern.permute.xlu0 2
      %1704 = vperm.xlu0 %1703, %v981
      %v1705 = vpop.permute.xlu0 %1704
      %1707 = vset.pattern.permute.xlu0 2
      %1708 = vperm.xlu0 %1707, %v982
      %v1709 = vpop.permute.xlu0 %1708
      %1711 = vset.pattern.permute.xlu0 2
      %1712 = vperm.xlu0 %1711, %v983
      %v1713 = vpop.permute.xlu0 %1712
      %1715 = vset.pattern.permute.xlu0 2
      %1716 = vperm.xlu0 %1715, %v984
      %v1717 = vpop.permute.xlu0 %1716
      %1719 = vset.pattern.permute.xlu0 2
      %1720 = vperm.xlu0 %1719, %v985
      %v1721 = vpop.permute.xlu0 %1720
      %1723 = vset.pattern.permute.xlu0 2
      %1724 = vperm.xlu0 %1723, %v986
      %v1725 = vpop.permute.xlu0 %1724
      %1727 = vset.pattern.permute.xlu0 2
      %1728 = vperm.xlu0 %1727, %v987
      %v1729 = vpop.permute.xlu0 %1728
      %1731 = vset.pattern.permute.xlu0 2
      %1732 = vperm.xlu0 %1731, %v988
      %v1733 = vpop.permute.xlu0 %1732
      %1735 = vset.pattern.permute.xlu0 2
      %1736 = vperm.xlu0 %1735, %v989
      %v1737 = vpop.permute.xlu0 %1736
      %1739 = vset.pattern.permute.xlu0 2
      %1740 = vperm.xlu0 %1739, %v990
      %v1741 = vpop.permute.xlu0 %1740
      %1743 = vset.pattern.permute.xlu0 2
      %1744 = vperm.xlu0 %1743, %v991
      %v1745 = vpop.permute.xlu0 %1744
      %1747 = vset.pattern.permute.xlu0 2
      %1748 = vperm.xlu0 %1747, %v992
      %v1749 = vpop.permute.xlu0 %1748
      %1751 = vset.pattern.permute.xlu0 2
      %1752 = vperm.xlu0 %1751, %v993
      %v1753 = vpop.permute.xlu0 %1752
      %1755 = vset.pattern.permute.xlu0 2
      %1756 = vperm.xlu0 %1755, %v994
      %v1757 = vpop.permute.xlu0 %1756
      %1759 = vset.pattern.permute.xlu0 2
      %1760 = vperm.xlu0 %1759, %v995
      %v1761 = vpop.permute.xlu0 %1760
      %1763 = vset.pattern.permute.xlu0 2
      %1764 = vperm.xlu0 %1763, %v996
      %v1765 = vpop.permute.xlu0 %1764
      %1767 = vset.pattern.permute.xlu0 2
      %1768 = vperm.xlu0 %1767, %v997
      %v1769 = vpop.permute.xlu0 %1768
      %1771 = vset.pattern.permute.xlu0 2
      %1772 = vperm.xlu0 %1771, %v998
      %v1773 = vpop.permute.xlu0 %1772
      %v1775 = vmul.f32 %v1649, %v1639
      %v1776 = vmul.f32 %v1653, %v1644
      %v1777 = vmul.f32 %v1657, %v1639
      %v1778 = vmul.f32 %v1661, %v1644
      %v1779 = vmul.f32 %v1665, %v1639
      %v1780 = vmul.f32 %v1669, %v1644
      %v1781 = vmul.f32 %v1673, %v1639
      %v1782 = vmul.f32 %v1677, %v1644
      %v1783 = vmul.f32 %v1681, %v1639
      %v1784 = vmul.f32 %v1685, %v1644
      %v1785 = vmul.f32 %v1689, %v1639
      %v1786 = vmul.f32 %v1693, %v1644
      %v1787 = vmul.f32 %v1697, %v1639
      %v1788 = vmul.f32 %v1701, %v1644
      %v1789 = vmul.f32 %v1705, %v1639
      %v1790 = vmul.f32 %v1709, %v1644
      %v1791 = vmul.f32 %v1713, %v1639
      %v1792 = vmul.f32 %v1717, %v1644
      %v1793 = vmul.f32 %v1721, %v1639
      %v1794 = vmul.f32 %v1725, %v1644
      %v1795 = vmul.f32 %v1729, %v1639
      %v1796 = vmul.f32 %v1733, %v1644
      %v1797 = vmul.f32 %v1737, %v1639
      %v1798 = vmul.f32 %v1741, %v1644
      %v1799 = vmul.f32 %v1745, %v1639
      %v1800 = vmul.f32 %v1749, %v1644
      %v1801 = vmul.f32 %v1753, %v1639
      %v1802 = vmul.f32 %v1757, %v1644
      %v1803 = vmul.f32 %v1761, %v1639
      %v1804 = vmul.f32 %v1765, %v1644
      %v1805 = vmul.f32 %v1769, %v1639
      %v1806 = vmul.f32 %v1773, %v1644
      %v1807 = vadd.f32 %v1540, %v1775
      %v1808 = vadd.f32 %v1541, %v1776
      %v1809 = vadd.f32 %v1542, %v1777
      %v1810 = vadd.f32 %v1543, %v1778
      %v1811 = vadd.f32 %v1544, %v1779
      %v1812 = vadd.f32 %v1545, %v1780
      %v1813 = vadd.f32 %v1546, %v1781
      %v1814 = vadd.f32 %v1547, %v1782
      %v1815 = vadd.f32 %v1548, %v1783
      %v1816 = vadd.f32 %v1549, %v1784
      %v1817 = vadd.f32 %v1550, %v1785
      %v1818 = vadd.f32 %v1551, %v1786
      %v1819 = vadd.f32 %v1552, %v1787
      %v1820 = vadd.f32 %v1553, %v1788
      %v1821 = vadd.f32 %v1554, %v1789
      %v1822 = vadd.f32 %v1555, %v1790
      %v1823 = vadd.f32 %v1556, %v1791
      %v1824 = vadd.f32 %v1557, %v1792
      %v1825 = vadd.f32 %v1558, %v1793
      %v1826 = vadd.f32 %v1559, %v1794
      %v1827 = vadd.f32 %v1560, %v1795
      %v1828 = vadd.f32 %v1561, %v1796
      %v1829 = vadd.f32 %v1562, %v1797
      %v1830 = vadd.f32 %v1563, %v1798
      %v1831 = vadd.f32 %v1564, %v1799
      %v1832 = vadd.f32 %v1565, %v1800
      %v1833 = vadd.f32 %v1566, %v1801
      %v1834 = vadd.f32 %v1567, %v1802
      %v1835 = vadd.f32 %v1568, %v1803
      %v1836 = vadd.f32 %v1569, %v1804
      %v1837 = vadd.f32 %v1570, %v1805
      %v1838 = vadd.f32 %v1571, %v1806
      %1839 = vmatprep.subr.mxu0 0.0
      %1840 = vmatpush1.msra.mxu0 %v960
      %1841 = vmatprep.subr.mxu0 0.0
      %1842 = vmatpush1.msra.mxu0 0.0
      %1843 = vmatprep.subr.mxu0 0.0
      %1844 = vmatpush1.msra.mxu0 0.0
      %1845 = vmatprep.subr.mxu0 0.0
      %1846 = vmatpush1.msra.mxu0 0.0
      %1847 = vmatprep.subr.mxu0 0.0
      %1848 = vmatpush1.msra.mxu0 0.0
      %1849 = vmatprep.subr.mxu0 0.0
      %1850 = vmatpush1.msra.mxu0 0.0
      %1851 = vmatprep.subr.mxu0 0.0
      %1852 = vmatpush1.msra.mxu0 0.0
      %1853 = vmatprep.subr.mxu0 0.0
      %1854 = vmatpush1.msra.mxu0 0.0
      %1855 = vmatprep.subr.mxu0 0.0
      %1856 = vmatpush1.msra.mxu0 0.0
      %1857 = vmatprep.subr.mxu0 0.0
      %1858 = vmatpush1.msra.mxu0 0.0
      %1859 = vmatprep.subr.mxu0 0.0
      %1860 = vmatpush1.msra.mxu0 0.0
      %1861 = vmatprep.subr.mxu0 0.0
      %1862 = vmatpush1.msra.mxu0 0.0
      %1863 = vmatprep.subr.mxu0 0.0
      %1864 = vmatpush1.msra.mxu0 0.0
      %1865 = vmatprep.subr.mxu0 0.0
      %1866 = vmatpush1.msra.mxu0 0.0
      %1867 = vmatprep.subr.mxu0 0.0
      %1868 = vmatpush1.msra.mxu0 0.0
      %1869 = vmatprep.subr.mxu0 0.0
      %1870 = vmatpush1.msra.mxu0 0.0
      %1871 = vmatprep.subr.mxu0 0.0
      %1872 = vmatpush1.msra.mxu0 0.0
      %1873 = vmatprep.subr.mxu0 0.0
      %1874 = vmatpush1.msra.mxu0 0.0
      %1875 = vmatprep.subr.mxu0 0.0
      %1876 = vmatpush1.msra.mxu0 0.0
      %1877 = vmatprep.subr.mxu0 0.0
      %1878 = vmatpush1.msra.mxu0 0.0
      %1879 = vmatprep.subr.mxu0 0.0
      %1880 = vmatpush1.msra.mxu0 0.0
      %1881 = vmatprep.subr.mxu0 0.0
      %1882 = vmatpush1.msra.mxu0 0.0
      %1883 = vmatprep.subr.mxu0 0.0
      %1884 = vmatpush1.msra.mxu0 0.0
      %1885 = vmatprep.subr.mxu0 0.0
      %1886 = vmatpush1.msra.mxu0 0.0
      %1887 = vmatprep.subr.mxu0 0.0
      %1888 = vmatpush1.msra.mxu0 0.0
      %1889 = vmatprep.subr.mxu0 0.0
      %1890 = vmatpush1.msra.mxu0 0.0
      %1891 = vmatprep.subr.mxu0 0.0
      %1892 = vmatpush1.msra.mxu0 0.0
      %1893 = vmatprep.subr.mxu0 0.0
      %1894 = vmatpush1.msra.mxu0 0.0
      %1895 = vmatprep.subr.mxu0 0.0
      %1896 = vmatpush1.msra.mxu0 0.0
      %1897 = vmatprep.subr.mxu0 0.0
      %1898 = vmatpush1.msra.mxu0 0.0
      %1899 = vmatprep.subr.mxu0 0.0
      %1900 = vmatpush1.msra.mxu0 0.0
      %1901 = vmatprep.subr.mxu0 0.0
      %1902 = vmatpush1.msra.mxu0 0.0
      %1903 = vmatprep.mubr.f32.mxu0 0.0
      %1904 = vmatmul.mubr.f32.gmra.mrb[0].mxu0 %v1001
      %v1905 = vpop.f32.mrb[0].mxu0
      %v1906 = vadd.f32 0.0, %v1905
      %v1907 = vpop.f32.mrb[0].mxu0
      %1908 = vmatprep.mubr.f32.mxu0 0.0
      %1909 = vmatmul.mubr.f32.gmra.mrb[0].mxu0 %v1004
      %v1910 = vpop.f32.mrb[0].mxu0
      %v1911 = vadd.f32 0.0, %v1910
      %v1912 = vpop.f32.mrb[0].mxu0
      %1913 = vdwg.mxu0
      %1914 = vset.pattern.permute.xlu0 3
      %1915 = vperm.xlu0 %1914, %v967
      %v1916 = vpop.permute.xlu0 %1915
      %1918 = vset.pattern.permute.xlu0 3
      %1919 = vperm.xlu0 %1918, %v968
      %v1920 = vpop.permute.xlu0 %1919
      %1922 = vset.pattern.permute.xlu0 3
      %1923 = vperm.xlu0 %1922, %v969
      %v1924 = vpop.permute.xlu0 %1923
      %1926 = vset.pattern.permute.xlu0 3
      %1927 = vperm.xlu0 %1926, %v970
      %v1928 = vpop.permute.xlu0 %1927
      %1930 = vset.pattern.permute.xlu0 3
      %1931 = vperm.xlu0 %1930, %v971
      %v1932 = vpop.permute.xlu0 %1931
      %1934 = vset.pattern.permute.xlu0 3
      %1935 = vperm.xlu0 %1934, %v972
      %v1936 = vpop.permute.xlu0 %1935
      %1938 = vset.pattern.permute.xlu0 3
      %1939 = vperm.xlu0 %1938, %v973
      %v1940 = vpop.permute.xlu0 %1939
      %1942 = vset.pattern.permute.xlu0 3
      %1943 = vperm.xlu0 %1942, %v974
      %v1944 = vpop.permute.xlu0 %1943
      %1946 = vset.pattern.permute.xlu0 3
      %1947 = vperm.xlu0 %1946, %v975
      %v1948 = vpop.permute.xlu0 %1947
      %1950 = vset.pattern.permute.xlu0 3
      %1951 = vperm.xlu0 %1950, %v976
      %v1952 = vpop.permute.xlu0 %1951
      %1954 = vset.pattern.permute.xlu0 3
      %1955 = vperm.xlu0 %1954, %v977
      %v1956 = vpop.permute.xlu0 %1955
      %1958 = vset.pattern.permute.xlu0 3
      %1959 = vperm.xlu0 %1958, %v978
      %v1960 = vpop.permute.xlu0 %1959
      %1962 = vset.pattern.permute.xlu0 3
      %1963 = vperm.xlu0 %1962, %v979
      %v1964 = vpop.permute.xlu0 %1963
      %1966 = vset.pattern.permute.xlu0 3
      %1967 = vperm.xlu0 %1966, %v980
      %v1968 = vpop.permute.xlu0 %1967
      %1970 = vset.pattern.permute.xlu0 3
      %1971 = vperm.xlu0 %1970, %v981
      %v1972 = vpop.permute.xlu0 %1971
      %1974 = vset.pattern.permute.xlu0 3
      %1975 = vperm.xlu0 %1974, %v982
      %v1976 = vpop.permute.xlu0 %1975
      %1978 = vset.pattern.permute.xlu0 3
      %1979 = vperm.xlu0 %1978, %v983
      %v1980 = vpop.permute.xlu0 %1979
      %1982 = vset.pattern.permute.xlu0 3
      %1983 = vperm.xlu0 %1982, %v984
      %v1984 = vpop.permute.xlu0 %1983
      %1986 = vset.pattern.permute.xlu0 3
      %1987 = vperm.xlu0 %1986, %v985
      %v1988 = vpop.permute.xlu0 %1987
      %1990 = vset.pattern.permute.xlu0 3
      %1991 = vperm.xlu0 %1990, %v986
      %v1992 = vpop.permute.xlu0 %1991
      %1994 = vset.pattern.permute.xlu0 3
      %1995 = vperm.xlu0 %1994, %v987
      %v1996 = vpop.permute.xlu0 %1995
      %1998 = vset.pattern.permute.xlu0 3
      %1999 = vperm.xlu0 %1998, %v988
      %v2000 = vpop.permute.xlu0 %1999
      %2002 = vset.pattern.permute.xlu0 3
      %2003 = vperm.xlu0 %2002, %v989
      %v2004 = vpop.permute.xlu0 %2003
      %2006 = vset.pattern.permute.xlu0 3
      %2007 = vperm.xlu0 %2006, %v990
      %v2008 = vpop.permute.xlu0 %2007
      %2010 = vset.pattern.permute.xlu0 3
      %2011 = vperm.xlu0 %2010, %v991
      %v2012 = vpop.permute.xlu0 %2011
      %2014 = vset.pattern.permute.xlu0 3
      %2015 = vperm.xlu0 %2014, %v992
      %v2016 = vpop.permute.xlu0 %2015
      %2018 = vset.pattern.permute.xlu0 3
      %2019 = vperm.xlu0 %2018, %v993
      %v2020 = vpop.permute.xlu0 %2019
      %2022 = vset.pattern.permute.xlu0 3
      %2023 = vperm.xlu0 %2022, %v994
      %v2024 = vpop.permute.xlu0 %2023
      %2026 = vset.pattern.permute.xlu0 3
      %2027 = vperm.xlu0 %2026, %v995
      %v2028 = vpop.permute.xlu0 %2027
      %2030 = vset.pattern.permute.xlu0 3
      %2031 = vperm.xlu0 %2030, %v996
      %v2032 = vpop.permute.xlu0 %2031
      %2034 = vset.pattern.permute.xlu0 3
      %2035 = vperm.xlu0 %2034, %v997
      %v2036 = vpop.permute.xlu0 %2035
      %2038 = vset.pattern.permute.xlu0 3
      %2039 = vperm.xlu0 %2038, %v998
      %v2040 = vpop.permute.xlu0 %2039
      %v2042 = vmul.f32 %v1916, %v1906
      %v2043 = vmul.f32 %v1920, %v1911
      %v2044 = vmul.f32 %v1924, %v1906
      %v2045 = vmul.f32 %v1928, %v1911
      %v2046 = vmul.f32 %v1932, %v1906
      %v2047 = vmul.f32 %v1936, %v1911
      %v2048 = vmul.f32 %v1940, %v1906
      %v2049 = vmul.f32 %v1944, %v1911
      %v2050 = vmul.f32 %v1948, %v1906
      %v2051 = vmul.f32 %v1952, %v1911
      %v2052 = vmul.f32 %v1956, %v1906
      %v2053 = vmul.f32 %v1960, %v1911
      %v2054 = vmul.f32 %v1964, %v1906
      %v2055 = vmul.f32 %v1968, %v1911
      %v2056 = vmul.f32 %v1972, %v1906
      %v2057 = vmul.f32 %v1976, %v1911
      %v2058 = vmul.f32 %v1980, %v1906
      %v2059 = vmul.f32 %v1984, %v1911
      %v2060 = vmul.f32 %v1988, %v1906
      %v2061 = vmul.f32 %v1992, %v1911
      %v2062 = vmul.f32 %v1996, %v1906
      %v2063 = vmul.f32 %v2000, %v1911
      %v2064 = vmul.f32 %v2004, %v1906
      %v2065 = vmul.f32 %v2008, %v1911
      %v2066 = vmul.f32 %v2012, %v1906
      %v2067 = vmul.f32 %v2016, %v1911
      %v2068 = vmul.f32 %v2020, %v1906
      %v2069 = vmul.f32 %v2024, %v1911
      %v2070 = vmul.f32 %v2028, %v1906
      %v2071 = vmul.f32 %v2032, %v1911
      %v2072 = vmul.f32 %v2036, %v1906
      %v2073 = vmul.f32 %v2040, %v1911
      %v2074 = vadd.f32 %v1807, %v2042
      %v2075 = vadd.f32 %v1808, %v2043
      %v2076 = vadd.f32 %v1809, %v2044
      %v2077 = vadd.f32 %v1810, %v2045
      %v2078 = vadd.f32 %v1811, %v2046
      %v2079 = vadd.f32 %v1812, %v2047
      %v2080 = vadd.f32 %v1813, %v2048
      %v2081 = vadd.f32 %v1814, %v2049
      %v2082 = vadd.f32 %v1815, %v2050
      %v2083 = vadd.f32 %v1816, %v2051
      %v2084 = vadd.f32 %v1817, %v2052
      %v2085 = vadd.f32 %v1818, %v2053
      %v2086 = vadd.f32 %v1819, %v2054
      %v2087 = vadd.f32 %v1820, %v2055
      %v2088 = vadd.f32 %v1821, %v2056
      %v2089 = vadd.f32 %v1822, %v2057
      %v2090 = vadd.f32 %v1823, %v2058
      %v2091 = vadd.f32 %v1824, %v2059
      %v2092 = vadd.f32 %v1825, %v2060
      %v2093 = vadd.f32 %v1826, %v2061
      %v2094 = vadd.f32 %v1827, %v2062
      %v2095 = vadd.f32 %v1828, %v2063
      %v2096 = vadd.f32 %v1829, %v2064
      %v2097 = vadd.f32 %v1830, %v2065
      %v2098 = vadd.f32 %v1831, %v2066
      %v2099 = vadd.f32 %v1832, %v2067
      %v2100 = vadd.f32 %v1833, %v2068
      %v2101 = vadd.f32 %v1834, %v2069
      %v2102 = vadd.f32 %v1835, %v2070
      %v2103 = vadd.f32 %v1836, %v2071
      %v2104 = vadd.f32 %v1837, %v2072
      %v2105 = vadd.f32 %v1838, %v2073
      %2106 = vmatprep.subr.mxu0 0.0
      %2107 = vmatpush1.msra.mxu0 %v961
      %2108 = vmatprep.subr.mxu0 0.0
      %2109 = vmatpush1.msra.mxu0 0.0
      %2110 = vmatprep.subr.mxu0 0.0
      %2111 = vmatpush1.msra.mxu0 0.0
      %2112 = vmatprep.subr.mxu0 0.0
      %2113 = vmatpush1.msra.mxu0 0.0
      %2114 = vmatprep.subr.mxu0 0.0
      %2115 = vmatpush1.msra.mxu0 0.0
      %2116 = vmatprep.subr.mxu0 0.0
      %2117 = vmatpush1.msra.mxu0 0.0
      %2118 = vmatprep.subr.mxu0 0.0
      %2119 = vmatpush1.msra.mxu0 0.0
      %2120 = vmatprep.subr.mxu0 0.0
      %2121 = vmatpush1.msra.mxu0 0.0
      %2122 = vmatprep.subr.mxu0 0.0
      %2123 = vmatpush1.msra.mxu0 0.0
      %2124 = vmatprep.subr.mxu0 0.0
      %2125 = vmatpush1.msra.mxu0 0.0
      %2126 = vmatprep.subr.mxu0 0.0
      %2127 = vmatpush1.msra.mxu0 0.0
      %2128 = vmatprep.subr.mxu0 0.0
      %2129 = vmatpush1.msra.mxu0 0.0
      %2130 = vmatprep.subr.mxu0 0.0
      %2131 = vmatpush1.msra.mxu0 0.0
      %2132 = vmatprep.subr.mxu0 0.0
      %2133 = vmatpush1.msra.mxu0 0.0
      %2134 = vmatprep.subr.mxu0 0.0
      %2135 = vmatpush1.msra.mxu0 0.0
      %2136 = vmatprep.subr.mxu0 0.0
      %2137 = vmatpush1.msra.mxu0 0.0
      %2138 = vmatprep.subr.mxu0 0.0
      %2139 = vmatpush1.msra.mxu0 0.0
      %2140 = vmatprep.subr.mxu0 0.0
      %2141 = vmatpush1.msra.mxu0 0.0
      %2142 = vmatprep.subr.mxu0 0.0
      %2143 = vmatpush1.msra.mxu0 0.0
      %2144 = vmatprep.subr.mxu0 0.0
      %2145 = vmatpush1.msra.mxu0 0.0
      %2146 = vmatprep.subr.mxu0 0.0
      %2147 = vmatpush1.msra.mxu0 0.0
      %2148 = vmatprep.subr.mxu0 0.0
      %2149 = vmatpush1.msra.mxu0 0.0
      %2150 = vmatprep.subr.mxu0 0.0
      %2151 = vmatpush1.msra.mxu0 0.0
      %2152 = vmatprep.subr.mxu0 0.0
      %2153 = vmatpush1.msra.mxu0 0.0
      %2154 = vmatprep.subr.mxu0 0.0
      %2155 = vmatpush1.msra.mxu0 0.0
      %2156 = vmatprep.subr.mxu0 0.0
      %2157 = vmatpush1.msra.mxu0 0.0
      %2158 = vmatprep.subr.mxu0 0.0
      %2159 = vmatpush1.msra.mxu0 0.0
      %2160 = vmatprep.subr.mxu0 0.0
      %2161 = vmatpush1.msra.mxu0 0.0
      %2162 = vmatprep.subr.mxu0 0.0
      %2163 = vmatpush1.msra.mxu0 0.0
      %2164 = vmatprep.subr.mxu0 0.0
      %2165 = vmatpush1.msra.mxu0 0.0
      %2166 = vmatprep.subr.mxu0 0.0
      %2167 = vmatpush1.msra.mxu0 0.0
      %2168 = vmatprep.subr.mxu0 0.0
      %2169 = vmatpush1.msra.mxu0 0.0
      %2170 = vmatprep.mubr.f32.mxu0 0.0
      %2171 = vmatmul.mubr.f32.gmra.mrb[0].mxu0 %v1001
      %v2172 = vpop.f32.mrb[0].mxu0
      %v2173 = vadd.f32 0.0, %v2172
      %v2174 = vpop.f32.mrb[0].mxu0
      %2175 = vmatprep.mubr.f32.mxu0 0.0
      %2176 = vmatmul.mubr.f32.gmra.mrb[0].mxu0 %v1004
      %v2177 = vpop.f32.mrb[0].mxu0
      %v2178 = vadd.f32 0.0, %v2177
      %v2179 = vpop.f32.mrb[0].mxu0
      %2180 = vdwg.mxu0
      %2181 = vset.pattern.permute.xlu0 4
      %2182 = vperm.xlu0 %2181, %v967
      %v2183 = vpop.permute.xlu0 %2182
      %2185 = vset.pattern.permute.xlu0 4
      %2186 = vperm.xlu0 %2185, %v968
      %v2187 = vpop.permute.xlu0 %2186
      %2189 = vset.pattern.permute.xlu0 4
      %2190 = vperm.xlu0 %2189, %v969
      %v2191 = vpop.permute.xlu0 %2190
      %2193 = vset.pattern.permute.xlu0 4
      %2194 = vperm.xlu0 %2193, %v970
      %v2195 = vpop.permute.xlu0 %2194
      %2197 = vset.pattern.permute.xlu0 4
      %2198 = vperm.xlu0 %2197, %v971
      %v2199 = vpop.permute.xlu0 %2198
      %2201 = vset.pattern.permute.xlu0 4
      %2202 = vperm.xlu0 %2201, %v972
      %v2203 = vpop.permute.xlu0 %2202
      %2205 = vset.pattern.permute.xlu0 4
      %2206 = vperm.xlu0 %2205, %v973
      %v2207 = vpop.permute.xlu0 %2206
      %2209 = vset.pattern.permute.xlu0 4
      %2210 = vperm.xlu0 %2209, %v974
      %v2211 = vpop.permute.xlu0 %2210
      %2213 = vset.pattern.permute.xlu0 4
      %2214 = vperm.xlu0 %2213, %v975
      %v2215 = vpop.permute.xlu0 %2214
      %2217 = vset.pattern.permute.xlu0 4
      %2218 = vperm.xlu0 %2217, %v976
      %v2219 = vpop.permute.xlu0 %2218
      %2221 = vset.pattern.permute.xlu0 4
      %2222 = vperm.xlu0 %2221, %v977
      %v2223 = vpop.permute.xlu0 %2222
      %2225 = vset.pattern.permute.xlu0 4
      %2226 = vperm.xlu0 %2225, %v978
      %v2227 = vpop.permute.xlu0 %2226
      %2229 = vset.pattern.permute.xlu0 4
      %2230 = vperm.xlu0 %2229, %v979
      %v2231 = vpop.permute.xlu0 %2230
      %2233 = vset.pattern.permute.xlu0 4
      %2234 = vperm.xlu0 %2233, %v980
      %v2235 = vpop.permute.xlu0 %2234
      %2237 = vset.pattern.permute.xlu0 4
      %2238 = vperm.xlu0 %2237, %v981
      %v2239 = vpop.permute.xlu0 %2238
      %2241 = vset.pattern.permute.xlu0 4
      %2242 = vperm.xlu0 %2241, %v982
      %v2243 = vpop.permute.xlu0 %2242
      %2245 = vset.pattern.permute.xlu0 4
      %2246 = vperm.xlu0 %2245, %v983
      %v2247 = vpop.permute.xlu0 %2246
      %2249 = vset.pattern.permute.xlu0 4
      %2250 = vperm.xlu0 %2249, %v984
      %v2251 = vpop.permute.xlu0 %2250
      %2253 = vset.pattern.permute.xlu0 4
      %2254 = vperm.xlu0 %2253, %v985
      %v2255 = vpop.permute.xlu0 %2254
      %2257 = vset.pattern.permute.xlu0 4
      %2258 = vperm.xlu0 %2257, %v986
      %v2259 = vpop.permute.xlu0 %2258
      %2261 = vset.pattern.permute.xlu0 4
      %2262 = vperm.xlu0 %2261, %v987
      %v2263 = vpop.permute.xlu0 %2262
      %2265 = vset.pattern.permute.xlu0 4
      %2266 = vperm.xlu0 %2265, %v988
      %v2267 = vpop.permute.xlu0 %2266
      %2269 = vset.pattern.permute.xlu0 4
      %2270 = vperm.xlu0 %2269, %v989
      %v2271 = vpop.permute.xlu0 %2270
      %2273 = vset.pattern.permute.xlu0 4
      %2274 = vperm.xlu0 %2273, %v990
      %v2275 = vpop.permute.xlu0 %2274
      %2277 = vset.pattern.permute.xlu0 4
      %2278 = vperm.xlu0 %2277, %v991
      %v2279 = vpop.permute.xlu0 %2278
      %2281 = vset.pattern.permute.xlu0 4
      %2282 = vperm.xlu0 %2281, %v992
      %v2283 = vpop.permute.xlu0 %2282
      %2285 = vset.pattern.permute.xlu0 4
      %2286 = vperm.xlu0 %2285, %v993
      %v2287 = vpop.permute.xlu0 %2286
      %2289 = vset.pattern.permute.xlu0 4
      %2290 = vperm.xlu0 %2289, %v994
      %v2291 = vpop.permute.xlu0 %2290
      %2293 = vset.pattern.permute.xlu0 4
      %2294 = vperm.xlu0 %2293, %v995
      %v2295 = vpop.permute.xlu0 %2294
      %2297 = vset.pattern.permute.xlu0 4
      %2298 = vperm.xlu0 %2297, %v996
      %v2299 = vpop.permute.xlu0 %2298
      %2301 = vset.pattern.permute.xlu0 4
      %2302 = vperm.xlu0 %2301, %v997
      %v2303 = vpop.permute.xlu0 %2302
      %2305 = vset.pattern.permute.xlu0 4
      %2306 = vperm.xlu0 %2305, %v998
      %v2307 = vpop.permute.xlu0 %2306
      %v2309 = vmul.f32 %v2183, %v2173
      %v2310 = vmul.f32 %v2187, %v2178
      %v2311 = vmul.f32 %v2191, %v2173
      %v2312 = vmul.f32 %v2195, %v2178
      %v2313 = vmul.f32 %v2199, %v2173
      %v2314 = vmul.f32 %v2203, %v2178
      %v2315 = vmul.f32 %v2207, %v2173
      %v2316 = vmul.f32 %v2211, %v2178
      %v2317 = vmul.f32 %v2215, %v2173
      %v2318 = vmul.f32 %v2219, %v2178
      %v2319 = vmul.f32 %v2223, %v2173
      %v2320 = vmul.f32 %v2227, %v2178
      %v2321 = vmul.f32 %v2231, %v2173
      %v2322 = vmul.f32 %v2235, %v2178
      %v2323 = vmul.f32 %v2239, %v2173
      %v2324 = vmul.f32 %v2243, %v2178
      %v2325 = vmul.f32 %v2247, %v2173
      %v2326 = vmul.f32 %v2251, %v2178
      %v2327 = vmul.f32 %v2255, %v2173
      %v2328 = vmul.f32 %v2259, %v2178
      %v2329 = vmul.f32 %v2263, %v2173
      %v2330 = vmul.f32 %v2267, %v2178
      %v2331 = vmul.f32 %v2271, %v2173
      %v2332 = vmul.f32 %v2275, %v2178
      %v2333 = vmul.f32 %v2279, %v2173
      %v2334 = vmul.f32 %v2283, %v2178
      %v2335 = vmul.f32 %v2287, %v2173
      %v2336 = vmul.f32 %v2291, %v2178
      %v2337 = vmul.f32 %v2295, %v2173
      %v2338 = vmul.f32 %v2299, %v2178
      %v2339 = vmul.f32 %v2303, %v2173
      %v2340 = vmul.f32 %v2307, %v2178
      %v2341 = vadd.f32 %v2074, %v2309
      %v2342 = vadd.f32 %v2075, %v2310
      %v2343 = vadd.f32 %v2076, %v2311
      %v2344 = vadd.f32 %v2077, %v2312
      %v2345 = vadd.f32 %v2078, %v2313
      %v2346 = vadd.f32 %v2079, %v2314
      %v2347 = vadd.f32 %v2080, %v2315
      %v2348 = vadd.f32 %v2081, %v2316
      %v2349 = vadd.f32 %v2082, %v2317
      %v2350 = vadd.f32 %v2083, %v2318
      %v2351 = vadd.f32 %v2084, %v2319
      %v2352 = vadd.f32 %v2085, %v2320
      %v2353 = vadd.f32 %v2086, %v2321
      %v2354 = vadd.f32 %v2087, %v2322
      %v2355 = vadd.f32 %v2088, %v2323
      %v2356 = vadd.f32 %v2089, %v2324
      %v2357 = vadd.f32 %v2090, %v2325
      %v2358 = vadd.f32 %v2091, %v2326
      %v2359 = vadd.f32 %v2092, %v2327
      %v2360 = vadd.f32 %v2093, %v2328
      %v2361 = vadd.f32 %v2094, %v2329
      %v2362 = vadd.f32 %v2095, %v2330
      %v2363 = vadd.f32 %v2096, %v2331
      %v2364 = vadd.f32 %v2097, %v2332
      %v2365 = vadd.f32 %v2098, %v2333
      %v2366 = vadd.f32 %v2099, %v2334
      %v2367 = vadd.f32 %v2100, %v2335
      %v2368 = vadd.f32 %v2101, %v2336
      %v2369 = vadd.f32 %v2102, %v2337
      %v2370 = vadd.f32 %v2103, %v2338
      %v2371 = vadd.f32 %v2104, %v2339
      %v2372 = vadd.f32 %v2105, %v2340
      %2373 = vmatprep.subr.mxu0 0.0
      %2374 = vmatpush1.msra.mxu0 %v962
      %2375 = vmatprep.subr.mxu0 0.0
      %2376 = vmatpush1.msra.mxu0 0.0
      %2377 = vmatprep.subr.mxu0 0.0
      %2378 = vmatpush1.msra.mxu0 0.0
      %2379 = vmatprep.subr.mxu0 0.0
      %2380 = vmatpush1.msra.mxu0 0.0
      %2381 = vmatprep.subr.mxu0 0.0
      %2382 = vmatpush1.msra.mxu0 0.0
      %2383 = vmatprep.subr.mxu0 0.0
      %2384 = vmatpush1.msra.mxu0 0.0
      %2385 = vmatprep.subr.mxu0 0.0
      %2386 = vmatpush1.msra.mxu0 0.0
      %2387 = vmatprep.subr.mxu0 0.0
      %2388 = vmatpush1.msra.mxu0 0.0
      %2389 = vmatprep.subr.mxu0 0.0
      %2390 = vmatpush1.msra.mxu0 0.0
      %2391 = vmatprep.subr.mxu0 0.0
      %2392 = vmatpush1.msra.mxu0 0.0
      %2393 = vmatprep.subr.mxu0 0.0
      %2394 = vmatpush1.msra.mxu0 0.0
      %2395 = vmatprep.subr.mxu0 0.0
      %2396 = vmatpush1.msra.mxu0 0.0
      %2397 = vmatprep.subr.mxu0 0.0
      %2398 = vmatpush1.msra.mxu0 0.0
      %2399 = vmatprep.subr.mxu0 0.0
      %2400 = vmatpush1.msra.mxu0 0.0
      %2401 = vmatprep.subr.mxu0 0.0
      %2402 = vmatpush1.msra.mxu0 0.0
      %2403 = vmatprep.subr.mxu0 0.0
      %2404 = vmatpush1.msra.mxu0 0.0
      %2405 = vmatprep.subr.mxu0 0.0
      %2406 = vmatpush1.msra.mxu0 0.0
      %2407 = vmatprep.subr.mxu0 0.0
      %2408 = vmatpush1.msra.mxu0 0.0
      %2409 = vmatprep.subr.mxu0 0.0
      %2410 = vmatpush1.msra.mxu0 0.0
      %2411 = vmatprep.subr.mxu0 0.0
      %2412 = vmatpush1.msra.mxu0 0.0
      %2413 = vmatprep.subr.mxu0 0.0
      %2414 = vmatpush1.msra.mxu0 0.0
      %2415 = vmatprep.subr.mxu0 0.0
      %2416 = vmatpush1.msra.mxu0 0.0
      %2417 = vmatprep.subr.mxu0 0.0
      %2418 = vmatpush1.msra.mxu0 0.0
      %2419 = vmatprep.subr.mxu0 0.0
      %2420 = vmatpush1.msra.mxu0 0.0
      %2421 = vmatprep.subr.mxu0 0.0
      %2422 = vmatpush1.msra.mxu0 0.0
      %2423 = vmatprep.subr.mxu0 0.0
      %2424 = vmatpush1.msra.mxu0 0.0
      %2425 = vmatprep.subr.mxu0 0.0
      %2426 = vmatpush1.msra.mxu0 0.0
      %2427 = vmatprep.subr.mxu0 0.0
      %2428 = vmatpush1.msra.mxu0 0.0
      %2429 = vmatprep.subr.mxu0 0.0
      %2430 = vmatpush1.msra.mxu0 0.0
      %2431 = vmatprep.subr.mxu0 0.0
      %2432 = vmatpush1.msra.mxu0 0.0
      %2433 = vmatprep.subr.mxu0 0.0
      %2434 = vmatpush1.msra.mxu0 0.0
      %2435 = vmatprep.subr.mxu0 0.0
      %2436 = vmatpush1.msra.mxu0 0.0
      %2437 = vmatprep.mubr.f32.mxu0 0.0
      %2438 = vmatmul.mubr.f32.gmra.mrb[0].mxu0 %v1001
      %v2439 = vpop.f32.mrb[0].mxu0
      %v2440 = vadd.f32 0.0, %v2439
      %v2441 = vpop.f32.mrb[0].mxu0
      %2442 = vmatprep.mubr.f32.mxu0 0.0
      %2443 = vmatmul.mubr.f32.gmra.mrb[0].mxu0 %v1004
      %v2444 = vpop.f32.mrb[0].mxu0
      %v2445 = vadd.f32 0.0, %v2444
      %v2446 = vpop.f32.mrb[0].mxu0
      %2447 = vdwg.mxu0
      %2448 = vset.pattern.permute.xlu0 5
      %2449 = vperm.xlu0 %2448, %v967
      %v2450 = vpop.permute.xlu0 %2449
      %2452 = vset.pattern.permute.xlu0 5
      %2453 = vperm.xlu0 %2452, %v968
      %v2454 = vpop.permute.xlu0 %2453
      %2456 = vset.pattern.permute.xlu0 5
      %2457 = vperm.xlu0 %2456, %v969
      %v2458 = vpop.permute.xlu0 %2457
      %2460 = vset.pattern.permute.xlu0 5
      %2461 = vperm.xlu0 %2460, %v970
      %v2462 = vpop.permute.xlu0 %2461
      %2464 = vset.pattern.permute.xlu0 5
      %2465 = vperm.xlu0 %2464, %v971
      %v2466 = vpop.permute.xlu0 %2465
      %2468 = vset.pattern.permute.xlu0 5
      %2469 = vperm.xlu0 %2468, %v972
      %v2470 = vpop.permute.xlu0 %2469
      %2472 = vset.pattern.permute.xlu0 5
      %2473 = vperm.xlu0 %2472, %v973
      %v2474 = vpop.permute.xlu0 %2473
      %2476 = vset.pattern.permute.xlu0 5
      %2477 = vperm.xlu0 %2476, %v974
      %v2478 = vpop.permute.xlu0 %2477
      %2480 = vset.pattern.permute.xlu0 5
      %2481 = vperm.xlu0 %2480, %v975
      %v2482 = vpop.permute.xlu0 %2481
      %2484 = vset.pattern.permute.xlu0 5
      %2485 = vperm.xlu0 %2484, %v976
      %v2486 = vpop.permute.xlu0 %2485
      %2488 = vset.pattern.permute.xlu0 5
      %2489 = vperm.xlu0 %2488, %v977
      %v2490 = vpop.permute.xlu0 %2489
      %2492 = vset.pattern.permute.xlu0 5
      %2493 = vperm.xlu0 %2492, %v978
      %v2494 = vpop.permute.xlu0 %2493
      %2496 = vset.pattern.permute.xlu0 5
      %2497 = vperm.xlu0 %2496, %v979
      %v2498 = vpop.permute.xlu0 %2497
      %2500 = vset.pattern.permute.xlu0 5
      %2501 = vperm.xlu0 %2500, %v980
      %v2502 = vpop.permute.xlu0 %2501
      %2504 = vset.pattern.permute.xlu0 5
      %2505 = vperm.xlu0 %2504, %v981
      %v2506 = vpop.permute.xlu0 %2505
      %2508 = vset.pattern.permute.xlu0 5
      %2509 = vperm.xlu0 %2508, %v982
      %v2510 = vpop.permute.xlu0 %2509
      %2512 = vset.pattern.permute.xlu0 5
      %2513 = vperm.xlu0 %2512, %v983
      %v2514 = vpop.permute.xlu0 %2513
      %2516 = vset.pattern.permute.xlu0 5
      %2517 = vperm.xlu0 %2516, %v984
      %v2518 = vpop.permute.xlu0 %2517
      %2520 = vset.pattern.permute.xlu0 5
      %2521 = vperm.xlu0 %2520, %v985
      %v2522 = vpop.permute.xlu0 %2521
      %2524 = vset.pattern.permute.xlu0 5
      %2525 = vperm.xlu0 %2524, %v986
      %v2526 = vpop.permute.xlu0 %2525
      %2528 = vset.pattern.permute.xlu0 5
      %2529 = vperm.xlu0 %2528, %v987
      %v2530 = vpop.permute.xlu0 %2529
      %2532 = vset.pattern.permute.xlu0 5
      %2533 = vperm.xlu0 %2532, %v988
      %v2534 = vpop.permute.xlu0 %2533
      %2536 = vset.pattern.permute.xlu0 5
      %2537 = vperm.xlu0 %2536, %v989
      %v2538 = vpop.permute.xlu0 %2537
      %2540 = vset.pattern.permute.xlu0 5
      %2541 = vperm.xlu0 %2540, %v990
      %v2542 = vpop.permute.xlu0 %2541
      %2544 = vset.pattern.permute.xlu0 5
      %2545 = vperm.xlu0 %2544, %v991
      %v2546 = vpop.permute.xlu0 %2545
      %2548 = vset.pattern.permute.xlu0 5
      %2549 = vperm.xlu0 %2548, %v992
      %v2550 = vpop.permute.xlu0 %2549
      %2552 = vset.pattern.permute.xlu0 5
      %2553 = vperm.xlu0 %2552, %v993
      %v2554 = vpop.permute.xlu0 %2553
      %2556 = vset.pattern.permute.xlu0 5
      %2557 = vperm.xlu0 %2556, %v994
      %v2558 = vpop.permute.xlu0 %2557
      %2560 = vset.pattern.permute.xlu0 5
      %2561 = vperm.xlu0 %2560, %v995
      %v2562 = vpop.permute.xlu0 %2561
      %2564 = vset.pattern.permute.xlu0 5
      %2565 = vperm.xlu0 %2564, %v996
      %v2566 = vpop.permute.xlu0 %2565
      %2568 = vset.pattern.permute.xlu0 5
      %2569 = vperm.xlu0 %2568, %v997
      %v2570 = vpop.permute.xlu0 %2569
      %2572 = vset.pattern.permute.xlu0 5
      %2573 = vperm.xlu0 %2572, %v998
      %v2574 = vpop.permute.xlu0 %2573
      %v2576 = vmul.f32 %v2450, %v2440
      %v2577 = vmul.f32 %v2454, %v2445
      %v2578 = vmul.f32 %v2458, %v2440
      %v2579 = vmul.f32 %v2462, %v2445
      %v2580 = vmul.f32 %v2466, %v2440
      %v2581 = vmul.f32 %v2470, %v2445
      %v2582 = vmul.f32 %v2474, %v2440
      %v2583 = vmul.f32 %v2478, %v2445
      %v2584 = vmul.f32 %v2482, %v2440
      %v2585 = vmul.f32 %v2486, %v2445
      %v2586 = vmul.f32 %v2490, %v2440
      %v2587 = vmul.f32 %v2494, %v2445
      %v2588 = vmul.f32 %v2498, %v2440
      %v2589 = vmul.f32 %v2502, %v2445
      %v2590 = vmul.f32 %v2506, %v2440
      %v2591 = vmul.f32 %v2510, %v2445
      %v2592 = vmul.f32 %v2514, %v2440
      %v2593 = vmul.f32 %v2518, %v2445
      %v2594 = vmul.f32 %v2522, %v2440
      %v2595 = vmul.f32 %v2526, %v2445
      %v2596 = vmul.f32 %v2530, %v2440
      %v2597 = vmul.f32 %v2534, %v2445
      %v2598 = vmul.f32 %v2538, %v2440
      %v2599 = vmul.f32 %v2542, %v2445
      %v2600 = vmul.f32 %v2546, %v2440
      %v2601 = vmul.f32 %v2550, %v2445
      %v2602 = vmul.f32 %v2554, %v2440
      %v2603 = vmul.f32 %v2558, %v2445
      %v2604 = vmul.f32 %v2562, %v2440
      %v2605 = vmul.f32 %v2566, %v2445
      %v2606 = vmul.f32 %v2570, %v2440
      %v2607 = vmul.f32 %v2574, %v2445
      %v2608 = vadd.f32 %v2341, %v2576
      %v2609 = vadd.f32 %v2342, %v2577
      %v2610 = vadd.f32 %v2343, %v2578
      %v2611 = vadd.f32 %v2344, %v2579
      %v2612 = vadd.f32 %v2345, %v2580
      %v2613 = vadd.f32 %v2346, %v2581
      %v2614 = vadd.f32 %v2347, %v2582
      %v2615 = vadd.f32 %v2348, %v2583
      %v2616 = vadd.f32 %v2349, %v2584
      %v2617 = vadd.f32 %v2350, %v2585
      %v2618 = vadd.f32 %v2351, %v2586
      %v2619 = vadd.f32 %v2352, %v2587
      %v2620 = vadd.f32 %v2353, %v2588
      %v2621 = vadd.f32 %v2354, %v2589
      %v2622 = vadd.f32 %v2355, %v2590
      %v2623 = vadd.f32 %v2356, %v2591
      %v2624 = vadd.f32 %v2357, %v2592
      %v2625 = vadd.f32 %v2358, %v2593
      %v2626 = vadd.f32 %v2359, %v2594
      %v2627 = vadd.f32 %v2360, %v2595
      %v2628 = vadd.f32 %v2361, %v2596
      %v2629 = vadd.f32 %v2362, %v2597
      %v2630 = vadd.f32 %v2363, %v2598
      %v2631 = vadd.f32 %v2364, %v2599
      %v2632 = vadd.f32 %v2365, %v2600
      %v2633 = vadd.f32 %v2366, %v2601
      %v2634 = vadd.f32 %v2367, %v2602
      %v2635 = vadd.f32 %v2368, %v2603
      %v2636 = vadd.f32 %v2369, %v2604
      %v2637 = vadd.f32 %v2370, %v2605
      %v2638 = vadd.f32 %v2371, %v2606
      %v2639 = vadd.f32 %v2372, %v2607
      %2640 = vmatprep.subr.mxu0 0.0
      %2641 = vmatpush1.msra.mxu0 %v963
      %2642 = vmatprep.subr.mxu0 0.0
      %2643 = vmatpush1.msra.mxu0 0.0
      %2644 = vmatprep.subr.mxu0 0.0
      %2645 = vmatpush1.msra.mxu0 0.0
      %2646 = vmatprep.subr.mxu0 0.0
      %2647 = vmatpush1.msra.mxu0 0.0
      %2648 = vmatprep.subr.mxu0 0.0
      %2649 = vmatpush1.msra.mxu0 0.0
      %2650 = vmatprep.subr.mxu0 0.0
      %2651 = vmatpush1.msra.mxu0 0.0
      %2652 = vmatprep.subr.mxu0 0.0
      %2653 = vmatpush1.msra.mxu0 0.0
      %2654 = vmatprep.subr.mxu0 0.0
      %2655 = vmatpush1.msra.mxu0 0.0
      %2656 = vmatprep.subr.mxu0 0.0
      %2657 = vmatpush1.msra.mxu0 0.0
      %2658 = vmatprep.subr.mxu0 0.0
      %2659 = vmatpush1.msra.mxu0 0.0
      %2660 = vmatprep.subr.mxu0 0.0
      %2661 = vmatpush1.msra.mxu0 0.0
      %2662 = vmatprep.subr.mxu0 0.0
      %2663 = vmatpush1.msra.mxu0 0.0
      %2664 = vmatprep.subr.mxu0 0.0
      %2665 = vmatpush1.msra.mxu0 0.0
      %2666 = vmatprep.subr.mxu0 0.0
      %2667 = vmatpush1.msra.mxu0 0.0
      %2668 = vmatprep.subr.mxu0 0.0
      %2669 = vmatpush1.msra.mxu0 0.0
      %2670 = vmatprep.subr.mxu0 0.0
      %2671 = vmatpush1.msra.mxu0 0.0
      %2672 = vmatprep.subr.mxu0 0.0
      %2673 = vmatpush1.msra.mxu0 0.0
      %2674 = vmatprep.subr.mxu0 0.0
      %2675 = vmatpush1.msra.mxu0 0.0
      %2676 = vmatprep.subr.mxu0 0.0
      %2677 = vmatpush1.msra.mxu0 0.0
      %2678 = vmatprep.subr.mxu0 0.0
      %2679 = vmatpush1.msra.mxu0 0.0
      %2680 = vmatprep.subr.mxu0 0.0
      %2681 = vmatpush1.msra.mxu0 0.0
      %2682 = vmatprep.subr.mxu0 0.0
      %2683 = vmatpush1.msra.mxu0 0.0
      %2684 = vmatprep.subr.mxu0 0.0
      %2685 = vmatpush1.msra.mxu0 0.0
      %2686 = vmatprep.subr.mxu0 0.0
      %2687 = vmatpush1.msra.mxu0 0.0
      %2688 = vmatprep.subr.mxu0 0.0
      %2689 = vmatpush1.msra.mxu0 0.0
      %2690 = vmatprep.subr.mxu0 0.0
      %2691 = vmatpush1.msra.mxu0 0.0
      %2692 = vmatprep.subr.mxu0 0.0
      %2693 = vmatpush1.msra.mxu0 0.0
      %2694 = vmatprep.subr.mxu0 0.0
      %2695 = vmatpush1.msra.mxu0 0.0
      %2696 = vmatprep.subr.mxu0 0.0
      %2697 = vmatpush1.msra.mxu0 0.0
      %2698 = vmatprep.subr.mxu0 0.0
      %2699 = vmatpush1.msra.mxu0 0.0
      %2700 = vmatprep.subr.mxu0 0.0
      %2701 = vmatpush1.msra.mxu0 0.0
      %2702 = vmatprep.subr.mxu0 0.0
      %2703 = vmatpush1.msra.mxu0 0.0
      %2704 = vmatprep.mubr.f32.mxu0 0.0
      %2705 = vmatmul.mubr.f32.gmra.mrb[0].mxu0 %v1001
      %v2706 = vpop.f32.mrb[0].mxu0
      %v2707 = vadd.f32 0.0, %v2706
      %v2708 = vpop.f32.mrb[0].mxu0
      %2709 = vmatprep.mubr.f32.mxu0 0.0
      %2710 = vmatmul.mubr.f32.gmra.mrb[0].mxu0 %v1004
      %v2711 = vpop.f32.mrb[0].mxu0
      %v2712 = vadd.f32 0.0, %v2711
      %v2713 = vpop.f32.mrb[0].mxu0
      %2714 = vdwg.mxu0
      %2715 = vset.pattern.permute.xlu0 6
      %2716 = vperm.xlu0 %2715, %v967
      %v2717 = vpop.permute.xlu0 %2716
      %2719 = vset.pattern.permute.xlu0 6
      %2720 = vperm.xlu0 %2719, %v968
      %v2721 = vpop.permute.xlu0 %2720
      %2723 = vset.pattern.permute.xlu0 6
      %2724 = vperm.xlu0 %2723, %v969
      %v2725 = vpop.permute.xlu0 %2724
      %2727 = vset.pattern.permute.xlu0 6
      %2728 = vperm.xlu0 %2727, %v970
      %v2729 = vpop.permute.xlu0 %2728
      %2731 = vset.pattern.permute.xlu0 6
      %2732 = vperm.xlu0 %2731, %v971
      %v2733 = vpop.permute.xlu0 %2732
      %2735 = vset.pattern.permute.xlu0 6
      %2736 = vperm.xlu0 %2735, %v972
      %v2737 = vpop.permute.xlu0 %2736
      %2739 = vset.pattern.permute.xlu0 6
      %2740 = vperm.xlu0 %2739, %v973
      %v2741 = vpop.permute.xlu0 %2740
      %2743 = vset.pattern.permute.xlu0 6
      %2744 = vperm.xlu0 %2743, %v974
      %v2745 = vpop.permute.xlu0 %2744
      %2747 = vset.pattern.permute.xlu0 6
      %2748 = vperm.xlu0 %2747, %v975
      %v2749 = vpop.permute.xlu0 %2748
      %2751 = vset.pattern.permute.xlu0 6
      %2752 = vperm.xlu0 %2751, %v976
      %v2753 = vpop.permute.xlu0 %2752
      %2755 = vset.pattern.permute.xlu0 6
      %2756 = vperm.xlu0 %2755, %v977
      %v2757 = vpop.permute.xlu0 %2756
      %2759 = vset.pattern.permute.xlu0 6
      %2760 = vperm.xlu0 %2759, %v978
      %v2761 = vpop.permute.xlu0 %2760
      %2763 = vset.pattern.permute.xlu0 6
      %2764 = vperm.xlu0 %2763, %v979
      %v2765 = vpop.permute.xlu0 %2764
      %2767 = vset.pattern.permute.xlu0 6
      %2768 = vperm.xlu0 %2767, %v980
      %v2769 = vpop.permute.xlu0 %2768
      %2771 = vset.pattern.permute.xlu0 6
      %2772 = vperm.xlu0 %2771, %v981
      %v2773 = vpop.permute.xlu0 %2772
      %2775 = vset.pattern.permute.xlu0 6
      %2776 = vperm.xlu0 %2775, %v982
      %v2777 = vpop.permute.xlu0 %2776
      %2779 = vset.pattern.permute.xlu0 6
      %2780 = vperm.xlu0 %2779, %v983
      %v2781 = vpop.permute.xlu0 %2780
      %2783 = vset.pattern.permute.xlu0 6
      %2784 = vperm.xlu0 %2783, %v984
      %v2785 = vpop.permute.xlu0 %2784
      %2787 = vset.pattern.permute.xlu0 6
      %2788 = vperm.xlu0 %2787, %v985
      %v2789 = vpop.permute.xlu0 %2788
      %2791 = vset.pattern.permute.xlu0 6
      %2792 = vperm.xlu0 %2791, %v986
      %v2793 = vpop.permute.xlu0 %2792
      %2795 = vset.pattern.permute.xlu0 6
      %2796 = vperm.xlu0 %2795, %v987
      %v2797 = vpop.permute.xlu0 %2796
      %2799 = vset.pattern.permute.xlu0 6
      %2800 = vperm.xlu0 %2799, %v988
      %v2801 = vpop.permute.xlu0 %2800
      %2803 = vset.pattern.permute.xlu0 6
      %2804 = vperm.xlu0 %2803, %v989
      %v2805 = vpop.permute.xlu0 %2804
      %2807 = vset.pattern.permute.xlu0 6
      %2808 = vperm.xlu0 %2807, %v990
      %v2809 = vpop.permute.xlu0 %2808
      %2811 = vset.pattern.permute.xlu0 6
      %2812 = vperm.xlu0 %2811, %v991
      %v2813 = vpop.permute.xlu0 %2812
      %2815 = vset.pattern.permute.xlu0 6
      %2816 = vperm.xlu0 %2815, %v992
      %v2817 = vpop.permute.xlu0 %2816
      %2819 = vset.pattern.permute.xlu0 6
      %2820 = vperm.xlu0 %2819, %v993
      %v2821 = vpop.permute.xlu0 %2820
      %2823 = vset.pattern.permute.xlu0 6
      %2824 = vperm.xlu0 %2823, %v994
      %v2825 = vpop.permute.xlu0 %2824
      %2827 = vset.pattern.permute.xlu0 6
      %2828 = vperm.xlu0 %2827, %v995
      %v2829 = vpop.permute.xlu0 %2828
      %2831 = vset.pattern.permute.xlu0 6
      %2832 = vperm.xlu0 %2831, %v996
      %v2833 = vpop.permute.xlu0 %2832
      %2835 = vset.pattern.permute.xlu0 6
      %2836 = vperm.xlu0 %2835, %v997
      %v2837 = vpop.permute.xlu0 %2836
      %2839 = vset.pattern.permute.xlu0 6
      %2840 = vperm.xlu0 %2839, %v998
      %v2841 = vpop.permute.xlu0 %2840
      %v2843 = vmul.f32 %v2717, %v2707
      %v2844 = vmul.f32 %v2721, %v2712
      %v2845 = vmul.f32 %v2725, %v2707
      %v2846 = vmul.f32 %v2729, %v2712
      %v2847 = vmul.f32 %v2733, %v2707
      %v2848 = vmul.f32 %v2737, %v2712
      %v2849 = vmul.f32 %v2741, %v2707
      %v2850 = vmul.f32 %v2745, %v2712
      %v2851 = vmul.f32 %v2749, %v2707
      %v2852 = vmul.f32 %v2753, %v2712
      %v2853 = vmul.f32 %v2757, %v2707
      %v2854 = vmul.f32 %v2761, %v2712
      %v2855 = vmul.f32 %v2765, %v2707
      %v2856 = vmul.f32 %v2769, %v2712
      %v2857 = vmul.f32 %v2773, %v2707
      %v2858 = vmul.f32 %v2777, %v2712
      %v2859 = vmul.f32 %v2781, %v2707
      %v2860 = vmul.f32 %v2785, %v2712
      %v2861 = vmul.f32 %v2789, %v2707
      %v2862 = vmul.f32 %v2793, %v2712
      %v2863 = vmul.f32 %v2797, %v2707
      %v2864 = vmul.f32 %v2801, %v2712
      %v2865 = vmul.f32 %v2805, %v2707
      %v2866 = vmul.f32 %v2809, %v2712
      %v2867 = vmul.f32 %v2813, %v2707
      %v2868 = vmul.f32 %v2817, %v2712
      %v2869 = vmul.f32 %v2821, %v2707
      %v2870 = vmul.f32 %v2825, %v2712
      %v2871 = vmul.f32 %v2829, %v2707
      %v2872 = vmul.f32 %v2833, %v2712
      %v2873 = vmul.f32 %v2837, %v2707
      %v2874 = vmul.f32 %v2841, %v2712
      %v2875 = vadd.f32 %v2608, %v2843
      %v2876 = vadd.f32 %v2609, %v2844
      %v2877 = vadd.f32 %v2610, %v2845
      %v2878 = vadd.f32 %v2611, %v2846
      %v2879 = vadd.f32 %v2612, %v2847
      %v2880 = vadd.f32 %v2613, %v2848
      %v2881 = vadd.f32 %v2614, %v2849
      %v2882 = vadd.f32 %v2615, %v2850
      %v2883 = vadd.f32 %v2616, %v2851
      %v2884 = vadd.f32 %v2617, %v2852
      %v2885 = vadd.f32 %v2618, %v2853
      %v2886 = vadd.f32 %v2619, %v2854
      %v2887 = vadd.f32 %v2620, %v2855
      %v2888 = vadd.f32 %v2621, %v2856
      %v2889 = vadd.f32 %v2622, %v2857
      %v2890 = vadd.f32 %v2623, %v2858
      %v2891 = vadd.f32 %v2624, %v2859
      %v2892 = vadd.f32 %v2625, %v2860
      %v2893 = vadd.f32 %v2626, %v2861
      %v2894 = vadd.f32 %v2627, %v2862
      %v2895 = vadd.f32 %v2628, %v2863
      %v2896 = vadd.f32 %v2629, %v2864
      %v2897 = vadd.f32 %v2630, %v2865
      %v2898 = vadd.f32 %v2631, %v2866
      %v2899 = vadd.f32 %v2632, %v2867
      %v2900 = vadd.f32 %v2633, %v2868
      %v2901 = vadd.f32 %v2634, %v2869
      %v2902 = vadd.f32 %v2635, %v2870
      %v2903 = vadd.f32 %v2636, %v2871
      %v2904 = vadd.f32 %v2637, %v2872
      %v2905 = vadd.f32 %v2638, %v2873
      %v2906 = vadd.f32 %v2639, %v2874
      %2907 = vmatprep.subr.mxu0 0.0
      %2908 = vmatpush1.msra.mxu0 %v964
      %2909 = vmatprep.subr.mxu0 0.0
      %2910 = vmatpush1.msra.mxu0 0.0
      %2911 = vmatprep.subr.mxu0 0.0
      %2912 = vmatpush1.msra.mxu0 0.0
      %2913 = vmatprep.subr.mxu0 0.0
      %2914 = vmatpush1.msra.mxu0 0.0
      %2915 = vmatprep.subr.mxu0 0.0
      %2916 = vmatpush1.msra.mxu0 0.0
      %2917 = vmatprep.subr.mxu0 0.0
      %2918 = vmatpush1.msra.mxu0 0.0
      %2919 = vmatprep.subr.mxu0 0.0
      %2920 = vmatpush1.msra.mxu0 0.0
      %2921 = vmatprep.subr.mxu0 0.0
      %2922 = vmatpush1.msra.mxu0 0.0
      %2923 = vmatprep.subr.mxu0 0.0
      %2924 = vmatpush1.msra.mxu0 0.0
      %2925 = vmatprep.subr.mxu0 0.0
      %2926 = vmatpush1.msra.mxu0 0.0
      %2927 = vmatprep.subr.mxu0 0.0
      %2928 = vmatpush1.msra.mxu0 0.0
      %2929 = vmatprep.subr.mxu0 0.0
      %2930 = vmatpush1.msra.mxu0 0.0
      %2931 = vmatprep.subr.mxu0 0.0
      %2932 = vmatpush1.msra.mxu0 0.0
      %2933 = vmatprep.subr.mxu0 0.0
      %2934 = vmatpush1.msra.mxu0 0.0
      %2935 = vmatprep.subr.mxu0 0.0
      %2936 = vmatpush1.msra.mxu0 0.0
      %2937 = vmatprep.subr.mxu0 0.0
      %2938 = vmatpush1.msra.mxu0 0.0
      %2939 = vmatprep.subr.mxu0 0.0
      %2940 = vmatpush1.msra.mxu0 0.0
      %2941 = vmatprep.subr.mxu0 0.0
      %2942 = vmatpush1.msra.mxu0 0.0
      %2943 = vmatprep.subr.mxu0 0.0
      %2944 = vmatpush1.msra.mxu0 0.0
      %2945 = vmatprep.subr.mxu0 0.0
      %2946 = vmatpush1.msra.mxu0 0.0
      %2947 = vmatprep.subr.mxu0 0.0
      %2948 = vmatpush1.msra.mxu0 0.0
      %2949 = vmatprep.subr.mxu0 0.0
      %2950 = vmatpush1.msra.mxu0 0.0
      %2951 = vmatprep.subr.mxu0 0.0
      %2952 = vmatpush1.msra.mxu0 0.0
      %2953 = vmatprep.subr.mxu0 0.0
      %2954 = vmatpush1.msra.mxu0 0.0
      %2955 = vmatprep.subr.mxu0 0.0
      %2956 = vmatpush1.msra.mxu0 0.0
      %2957 = vmatprep.subr.mxu0 0.0
      %2958 = vmatpush1.msra.mxu0 0.0
      %2959 = vmatprep.subr.mxu0 0.0
      %2960 = vmatpush1.msra.mxu0 0.0
      %2961 = vmatprep.subr.mxu0 0.0
      %2962 = vmatpush1.msra.mxu0 0.0
      %2963 = vmatprep.subr.mxu0 0.0
      %2964 = vmatpush1.msra.mxu0 0.0
      %2965 = vmatprep.subr.mxu0 0.0
      %2966 = vmatpush1.msra.mxu0 0.0
      %2967 = vmatprep.subr.mxu0 0.0
      %2968 = vmatpush1.msra.mxu0 0.0
      %2969 = vmatprep.subr.mxu0 0.0
      %2970 = vmatpush1.msra.mxu0 0.0
      %2971 = vmatprep.mubr.f32.mxu0 0.0
      %2972 = vmatmul.mubr.f32.gmra.mrb[0].mxu0 %v1001
      %v2973 = vpop.f32.mrb[0].mxu0
      %v2974 = vadd.f32 0.0, %v2973
      %v2975 = vpop.f32.mrb[0].mxu0
      %2976 = vmatprep.mubr.f32.mxu0 0.0
      %2977 = vmatmul.mubr.f32.gmra.mrb[0].mxu0 %v1004
      %v2978 = vpop.f32.mrb[0].mxu0
      %v2979 = vadd.f32 0.0, %v2978
      %v2980 = vpop.f32.mrb[0].mxu0
      %2981 = vdwg.mxu0
      %2982 = vset.pattern.permute.xlu0 7
      %2983 = vperm.xlu0 %2982, %v967
      %v2984 = vpop.permute.xlu0 %2983
      %2986 = vset.pattern.permute.xlu0 7
      %2987 = vperm.xlu0 %2986, %v968
      %v2988 = vpop.permute.xlu0 %2987
      %2990 = vset.pattern.permute.xlu0 7
      %2991 = vperm.xlu0 %2990, %v969
      %v2992 = vpop.permute.xlu0 %2991
      %2994 = vset.pattern.permute.xlu0 7
      %2995 = vperm.xlu0 %2994, %v970
      %v2996 = vpop.permute.xlu0 %2995
      %2998 = vset.pattern.permute.xlu0 7
      %2999 = vperm.xlu0 %2998, %v971
      %v3000 = vpop.permute.xlu0 %2999
      %3002 = vset.pattern.permute.xlu0 7
      %3003 = vperm.xlu0 %3002, %v972
      %v3004 = vpop.permute.xlu0 %3003
      %3006 = vset.pattern.permute.xlu0 7
      %3007 = vperm.xlu0 %3006, %v973
      %v3008 = vpop.permute.xlu0 %3007
      %3010 = vset.pattern.permute.xlu0 7
      %3011 = vperm.xlu0 %3010, %v974
      %v3012 = vpop.permute.xlu0 %3011
      %3014 = vset.pattern.permute.xlu0 7
      %3015 = vperm.xlu0 %3014, %v975
      %v3016 = vpop.permute.xlu0 %3015
      %3018 = vset.pattern.permute.xlu0 7
      %3019 = vperm.xlu0 %3018, %v976
      %v3020 = vpop.permute.xlu0 %3019
      %3022 = vset.pattern.permute.xlu0 7
      %3023 = vperm.xlu0 %3022, %v977
      %v3024 = vpop.permute.xlu0 %3023
      %3026 = vset.pattern.permute.xlu0 7
      %3027 = vperm.xlu0 %3026, %v978
      %v3028 = vpop.permute.xlu0 %3027
      %3030 = vset.pattern.permute.xlu0 7
      %3031 = vperm.xlu0 %3030, %v979
      %v3032 = vpop.permute.xlu0 %3031
      %3034 = vset.pattern.permute.xlu0 7
      %3035 = vperm.xlu0 %3034, %v980
      %v3036 = vpop.permute.xlu0 %3035
      %3038 = vset.pattern.permute.xlu0 7
      %3039 = vperm.xlu0 %3038, %v981
      %v3040 = vpop.permute.xlu0 %3039
      %3042 = vset.pattern.permute.xlu0 7
      %3043 = vperm.xlu0 %3042, %v982
      %v3044 = vpop.permute.xlu0 %3043
      %3046 = vset.pattern.permute.xlu0 7
      %3047 = vperm.xlu0 %3046, %v983
      %v3048 = vpop.permute.xlu0 %3047
      %3050 = vset.pattern.permute.xlu0 7
      %3051 = vperm.xlu0 %3050, %v984
      %v3052 = vpop.permute.xlu0 %3051
      %3054 = vset.pattern.permute.xlu0 7
      %3055 = vperm.xlu0 %3054, %v985
      %v3056 = vpop.permute.xlu0 %3055
      %3058 = vset.pattern.permute.xlu0 7
      %3059 = vperm.xlu0 %3058, %v986
      %v3060 = vpop.permute.xlu0 %3059
      %3062 = vset.pattern.permute.xlu0 7
      %3063 = vperm.xlu0 %3062, %v987
      %v3064 = vpop.permute.xlu0 %3063
      %3066 = vset.pattern.permute.xlu0 7
      %3067 = vperm.xlu0 %3066, %v988
      %v3068 = vpop.permute.xlu0 %3067
      %3070 = vset.pattern.permute.xlu0 7
      %3071 = vperm.xlu0 %3070, %v989
      %v3072 = vpop.permute.xlu0 %3071
      %3074 = vset.pattern.permute.xlu0 7
      %3075 = vperm.xlu0 %3074, %v990
      %v3076 = vpop.permute.xlu0 %3075
      %3078 = vset.pattern.permute.xlu0 7
      %3079 = vperm.xlu0 %3078, %v991
      %v3080 = vpop.permute.xlu0 %3079
      %3082 = vset.pattern.permute.xlu0 7
      %3083 = vperm.xlu0 %3082, %v992
      %v3084 = vpop.permute.xlu0 %3083
      %3086 = vset.pattern.permute.xlu0 7
      %3087 = vperm.xlu0 %3086, %v993
      %v3088 = vpop.permute.xlu0 %3087
      %3090 = vset.pattern.permute.xlu0 7
      %3091 = vperm.xlu0 %3090, %v994
      %v3092 = vpop.permute.xlu0 %3091
      %3094 = vset.pattern.permute.xlu0 7
      %3095 = vperm.xlu0 %3094, %v995
      %v3096 = vpop.permute.xlu0 %3095
      %3098 = vset.pattern.permute.xlu0 7
      %3099 = vperm.xlu0 %3098, %v996
      %v3100 = vpop.permute.xlu0 %3099
      %3102 = vset.pattern.permute.xlu0 7
      %3103 = vperm.xlu0 %3102, %v997
      %v3104 = vpop.permute.xlu0 %3103
      %3106 = vset.pattern.permute.xlu0 7
      %3107 = vperm.xlu0 %3106, %v998
      %v3108 = vpop.permute.xlu0 %3107
      %v3110 = vmul.f32 %v2984, %v2974
      %v3111 = vmul.f32 %v2988, %v2979
      %v3112 = vmul.f32 %v2992, %v2974
      %v3113 = vmul.f32 %v2996, %v2979
      %v3114 = vmul.f32 %v3000, %v2974
      %v3115 = vmul.f32 %v3004, %v2979
      %v3116 = vmul.f32 %v3008, %v2974
      %v3117 = vmul.f32 %v3012, %v2979
      %v3118 = vmul.f32 %v3016, %v2974
      %v3119 = vmul.f32 %v3020, %v2979
      %v3120 = vmul.f32 %v3024, %v2974
      %v3121 = vmul.f32 %v3028, %v2979
      %v3122 = vmul.f32 %v3032, %v2974
      %v3123 = vmul.f32 %v3036, %v2979
      %v3124 = vmul.f32 %v3040, %v2974
      %v3125 = vmul.f32 %v3044, %v2979
      %v3126 = vmul.f32 %v3048, %v2974
      %v3127 = vmul.f32 %v3052, %v2979
      %v3128 = vmul.f32 %v3056, %v2974
      %v3129 = vmul.f32 %v3060, %v2979
      %v3130 = vmul.f32 %v3064, %v2974
      %v3131 = vmul.f32 %v3068, %v2979
      %v3132 = vmul.f32 %v3072, %v2974
      %v3133 = vmul.f32 %v3076, %v2979
      %v3134 = vmul.f32 %v3080, %v2974
      %v3135 = vmul.f32 %v3084, %v2979
      %v3136 = vmul.f32 %v3088, %v2974
      %v3137 = vmul.f32 %v3092, %v2979
      %v3138 = vmul.f32 %v3096, %v2974
      %v3139 = vmul.f32 %v3100, %v2979
      %v3140 = vmul.f32 %v3104, %v2974
      %v3141 = vmul.f32 %v3108, %v2979
      %v3142 = vadd.f32 %v2875, %v3110
      %v3143 = vadd.f32 %v2876, %v3111
      %v3144 = vadd.f32 %v2877, %v3112
      %v3145 = vadd.f32 %v2878, %v3113
      %v3146 = vadd.f32 %v2879, %v3114
      %v3147 = vadd.f32 %v2880, %v3115
      %v3148 = vadd.f32 %v2881, %v3116
      %v3149 = vadd.f32 %v2882, %v3117
      %v3150 = vadd.f32 %v2883, %v3118
      %v3151 = vadd.f32 %v2884, %v3119
      %v3152 = vadd.f32 %v2885, %v3120
      %v3153 = vadd.f32 %v2886, %v3121
      %v3154 = vadd.f32 %v2887, %v3122
      %v3155 = vadd.f32 %v2888, %v3123
      %v3156 = vadd.f32 %v2889, %v3124
      %v3157 = vadd.f32 %v2890, %v3125
      %v3158 = vadd.f32 %v2891, %v3126
      %v3159 = vadd.f32 %v2892, %v3127
      %v3160 = vadd.f32 %v2893, %v3128
      %v3161 = vadd.f32 %v2894, %v3129
      %v3162 = vadd.f32 %v2895, %v3130
      %v3163 = vadd.f32 %v2896, %v3131
      %v3164 = vadd.f32 %v2897, %v3132
      %v3165 = vadd.f32 %v2898, %v3133
      %v3166 = vadd.f32 %v2899, %v3134
      %v3167 = vadd.f32 %v2900, %v3135
      %v3168 = vadd.f32 %v2901, %v3136
      %v3169 = vadd.f32 %v2902, %v3137
      %v3170 = vadd.f32 %v2903, %v3138
      %v3171 = vadd.f32 %v2904, %v3139
      %v3172 = vadd.f32 %v2905, %v3140
      %v3173 = vadd.f32 %v2906, %v3141
      %v3174 = vld [vmem:[%s8] sm:$0xff]
      %v3175 = vld [vmem:[%s8 + $0x8] sm:$0xff]
      %v3176 = vld [vmem:[%s8 + $0x10] sm:$0xff]
      %v3177 = vld [vmem:[%s8 + $0x18] sm:$0xff]
      %v3178 = vld [vmem:[%s8 + $0x20] sm:$0xff]
      %v3179 = vld [vmem:[%s8 + $0x28] sm:$0xff]
      %v3180 = vld [vmem:[%s8 + $0x30] sm:$0xff]
      %v3181 = vld [vmem:[%s8 + $0x38] sm:$0xff]
      %v3182 = vld [vmem:[%s8 + $0x40] sm:$0xff]
      %v3183 = vld [vmem:[%s8 + $0x48] sm:$0xff]
      %v3184 = vld [vmem:[%s8 + $0x50] sm:$0xff]
      %v3185 = vld [vmem:[%s8 + $0x58] sm:$0xff]
      %v3187 = vsel %vm450, %v3142, 0
      %v3190 = vsel %vm450, %v3143, 0
      %v3193 = vsel %vm450, %v3144, 0
      %v3196 = vsel %vm450, %v3145, 0
      %v3199 = vsel %vm450, %v3146, 0
      %v3202 = vsel %vm450, %v3147, 0
      %v3205 = vsel %vm450, %v3148, 0
      %v3208 = vsel %vm450, %v3149, 0
      %v3211 = vsel %vm450, %v3150, 0
      %v3214 = vsel %vm450, %v3151, 0
      %v3217 = vsel %vm450, %v3152, 0
      %v3220 = vsel %vm450, %v3153, 0
      %v3223 = vsel %vm450, %v3154, 0
      %v3226 = vsel %vm450, %v3155, 0
      %v3229 = vsel %vm450, %v3156, 0
      %v3232 = vsel %vm450, %v3157, 0
      %v3235 = vsel %vm450, %v3158, 0
      %v3238 = vsel %vm450, %v3159, 0
      %v3241 = vsel %vm450, %v3160, 0
      %v3244 = vsel %vm450, %v3161, 0
      %v3247 = vsel %vm450, %v3162, 0
      %v3250 = vsel %vm450, %v3163, 0
      %v3253 = vsel %vm450, %v3164, 0
      %v3256 = vsel %vm450, %v3165, 0
      %v3259 = vsel %vm450, %v3166, 0
      %v3262 = vsel %vm450, %v3167, 0
      %v3265 = vsel %vm450, %v3168, 0
      %v3268 = vsel %vm450, %v3169, 0
      %v3271 = vsel %vm450, %v3170, 0
      %v3274 = vsel %vm450, %v3171, 0
      %v3277 = vsel %vm450, %v3172, 0
      %v3280 = vsel %vm450, %v3173, 0
      %3282 = vmatprep.subr.mxu0 %v3175
      %3283 = vmatpush1.msra.mxu0 %v3174
      %3284 = vmatprep.subr.mxu0 %v3178
      %3285 = vmatpush1.msra.mxu0 %v3177
      %3286 = vmatprep.subr.mxu0 %v3181
      %3287 = vmatpush1.msra.mxu0 %v3180
      %3288 = vmatprep.subr.mxu0 %v3184
      %3289 = vmatpush1.msra.mxu0 %v3183
      %3290 = vmatprep.subr.mxu0 0.0
      %3291 = vmatpush1.msra.mxu0 0.0
      %3292 = vmatprep.subr.mxu0 0.0
      %3293 = vmatpush1.msra.mxu0 0.0
      %3294 = vmatprep.subr.mxu0 0.0
      %3295 = vmatpush1.msra.mxu0 0.0
      %3296 = vmatprep.subr.mxu0 0.0
      %3297 = vmatpush1.msra.mxu0 0.0
      %3298 = vmatprep.subr.mxu0 0.0
      %3299 = vmatpush1.msra.mxu0 0.0
      %3300 = vmatprep.subr.mxu0 0.0
      %3301 = vmatpush1.msra.mxu0 0.0
      %3302 = vmatprep.subr.mxu0 0.0
      %3303 = vmatpush1.msra.mxu0 0.0
      %3304 = vmatprep.subr.mxu0 0.0
      %3305 = vmatpush1.msra.mxu0 0.0
      %3306 = vmatprep.subr.mxu0 0.0
      %3307 = vmatpush1.msra.mxu0 0.0
      %3308 = vmatprep.subr.mxu0 0.0
      %3309 = vmatpush1.msra.mxu0 0.0
      %3310 = vmatprep.subr.mxu0 0.0
      %3311 = vmatpush1.msra.mxu0 0.0
      %3312 = vmatprep.subr.mxu0 0.0
      %3313 = vmatpush1.msra.mxu0 0.0
      %3314 = vmatprep.subr.mxu0 0.0
      %3315 = vmatpush1.msra.mxu0 0.0
      %3316 = vmatprep.subr.mxu0 0.0
      %3317 = vmatpush1.msra.mxu0 0.0
      %3318 = vmatprep.subr.mxu0 0.0
      %3319 = vmatpush1.msra.mxu0 0.0
      %3320 = vmatprep.subr.mxu0 0.0
      %3321 = vmatpush1.msra.mxu0 0.0
      %3322 = vmatprep.subr.mxu0 0.0
      %3323 = vmatpush1.msra.mxu0 0.0
      %3324 = vmatprep.subr.mxu0 0.0
      %3325 = vmatpush1.msra.mxu0 0.0
      %3326 = vmatprep.subr.mxu0 0.0
      %3327 = vmatpush1.msra.mxu0 0.0
      %3328 = vmatprep.subr.mxu0 0.0
      %3329 = vmatpush1.msra.mxu0 0.0
      %3330 = vmatprep.subr.mxu0 0.0
      %3331 = vmatpush1.msra.mxu0 0.0
      %3332 = vmatprep.subr.mxu0 0.0
      %3333 = vmatpush1.msra.mxu0 0.0
      %3334 = vmatprep.subr.mxu0 0.0
      %3335 = vmatpush1.msra.mxu0 0.0
      %3336 = vmatprep.subr.mxu0 0.0
      %3337 = vmatpush1.msra.mxu0 0.0
      %3338 = vmatprep.subr.mxu0 0.0
      %3339 = vmatpush1.msra.mxu0 0.0
      %3340 = vmatprep.subr.mxu0 0.0
      %3341 = vmatpush1.msra.mxu0 0.0
      %3342 = vmatprep.subr.mxu0 0.0
      %3343 = vmatpush1.msra.mxu0 0.0
      %3344 = vmatprep.subr.mxu0 0.0
      %3345 = vmatpush1.msra.mxu0 0.0
      %3346 = vmatprep.mubr.f32.mxu0 0.0
      %3347 = vmatmul.mubr.f32.gmra.mrb[0].mxu0 %v3187
      %v3348 = vpop.f32.mrb[0].mxu0
      %v3349 = vadd.f32 0.0, %v3348
      %v3350 = vpop.f32.mrb[0].mxu0
      %v3351 = vadd.f32 0.0, %v3350
      %3352 = vmatprep.mubr.f32.mxu0 0.0
      %3353 = vmatmul.mubr.f32.gmra.mrb[0].mxu0 %v3190
      %v3354 = vpop.f32.mrb[0].mxu0
      %v3355 = vadd.f32 0.0, %v3354
      %v3356 = vpop.f32.mrb[0].mxu0
      %v3357 = vadd.f32 0.0, %v3356
      %3358 = vmatprep.mubr.f32.mxu0 0.0
      %3359 = vmatmul.mubr.f32.gmra.mrb[0].mxu0 %v3193
      %v3360 = vpop.f32.mrb[0].mxu0
      %v3361 = vadd.f32 0.0, %v3360
      %v3362 = vpop.f32.mrb[0].mxu0
      %v3363 = vadd.f32 0.0, %v3362
      %3364 = vmatprep.mubr.f32.mxu0 0.0
      %3365 = vmatmul.mubr.f32.gmra.mrb[0].mxu0 %v3196
      %v3366 = vpop.f32.mrb[0].mxu0
      %v3367 = vadd.f32 0.0, %v3366
      %v3368 = vpop.f32.mrb[0].mxu0
      %v3369 = vadd.f32 0.0, %v3368
      %3370 = vmatprep.mubr.f32.mxu0 0.0
      %3371 = vmatmul.mubr.f32.gmra.mrb[0].mxu0 %v3199
      %v3372 = vpop.f32.mrb[0].mxu0
      %v3373 = vadd.f32 0.0, %v3372
      %v3374 = vpop.f32.mrb[0].mxu0
      %v3375 = vadd.f32 0.0, %v3374
      %3376 = vmatprep.mubr.f32.mxu0 0.0
      %3377 = vmatmul.mubr.f32.gmra.mrb[0].mxu0 %v3202
      %v3378 = vpop.f32.mrb[0].mxu0
      %v3379 = vadd.f32 0.0, %v3378
      %v3380 = vpop.f32.mrb[0].mxu0
      %v3381 = vadd.f32 0.0, %v3380
      %3382 = vmatprep.mubr.f32.mxu0 0.0
      %3383 = vmatmul.mubr.f32.gmra.mrb[0].mxu0 %v3205
      %v3384 = vpop.f32.mrb[0].mxu0
      %v3385 = vadd.f32 0.0, %v3384
      %v3386 = vpop.f32.mrb[0].mxu0
      %v3387 = vadd.f32 0.0, %v3386
      %3388 = vmatprep.mubr.f32.mxu0 0.0
      %3389 = vmatmul.mubr.f32.gmra.mrb[0].mxu0 %v3208
      %v3390 = vpop.f32.mrb[0].mxu0
      %v3391 = vadd.f32 0.0, %v3390
      %v3392 = vpop.f32.mrb[0].mxu0
      %v3393 = vadd.f32 0.0, %v3392
      %3394 = vmatprep.mubr.f32.mxu0 0.0
      %3395 = vmatmul.mubr.f32.gmra.mrb[0].mxu0 %v3211
      %v3396 = vpop.f32.mrb[0].mxu0
      %v3397 = vadd.f32 0.0, %v3396
      %v3398 = vpop.f32.mrb[0].mxu0
      %v3399 = vadd.f32 0.0, %v3398
      %3400 = vmatprep.mubr.f32.mxu0 0.0
      %3401 = vmatmul.mubr.f32.gmra.mrb[0].mxu0 %v3214
      %v3402 = vpop.f32.mrb[0].mxu0
      %v3403 = vadd.f32 0.0, %v3402
      %v3404 = vpop.f32.mrb[0].mxu0
      %v3405 = vadd.f32 0.0, %v3404
      %3406 = vmatprep.mubr.f32.mxu0 0.0
      %3407 = vmatmul.mubr.f32.gmra.mrb[0].mxu0 %v3217
      %v3408 = vpop.f32.mrb[0].mxu0
      %v3409 = vadd.f32 0.0, %v3408
      %v3410 = vpop.f32.mrb[0].mxu0
      %v3411 = vadd.f32 0.0, %v3410
      %3412 = vmatprep.mubr.f32.mxu0 0.0
      %3413 = vmatmul.mubr.f32.gmra.mrb[0].mxu0 %v3220
      %v3414 = vpop.f32.mrb[0].mxu0
      %v3415 = vadd.f32 0.0, %v3414
      %v3416 = vpop.f32.mrb[0].mxu0
      %v3417 = vadd.f32 0.0, %v3416
      %3418 = vmatprep.mubr.f32.mxu0 0.0
      %3419 = vmatmul.mubr.f32.gmra.mrb[0].mxu0 %v3223
      %v3420 = vpop.f32.mrb[0].mxu0
      %v3421 = vadd.f32 0.0, %v3420
      %v3422 = vpop.f32.mrb[0].mxu0
      %v3423 = vadd.f32 0.0, %v3422
      %3424 = vmatprep.mubr.f32.mxu0 0.0
      %3425 = vmatmul.mubr.f32.gmra.mrb[0].mxu0 %v3226
      %v3426 = vpop.f32.mrb[0].mxu0
      %v3427 = vadd.f32 0.0, %v3426
      %v3428 = vpop.f32.mrb[0].mxu0
      %v3429 = vadd.f32 0.0, %v3428
      %3430 = vmatprep.mubr.f32.mxu0 0.0
      %3431 = vmatmul.mubr.f32.gmra.mrb[0].mxu0 %v3229
      %v3432 = vpop.f32.mrb[0].mxu0
      %v3433 = vadd.f32 0.0, %v3432
      %v3434 = vpop.f32.mrb[0].mxu0
      %v3435 = vadd.f32 0.0, %v3434
      %3436 = vmatprep.mubr.f32.mxu0 0.0
      %3437 = vmatmul.mubr.f32.gmra.mrb[0].mxu0 %v3232
      %v3438 = vpop.f32.mrb[0].mxu0
      %v3439 = vadd.f32 0.0, %v3438
      %v3440 = vpop.f32.mrb[0].mxu0
      %v3441 = vadd.f32 0.0, %v3440
      %3442 = vmatprep.mubr.f32.mxu0 0.0
      %3443 = vmatmul.mubr.f32.gmra.mrb[0].mxu0 %v3235
      %v3444 = vpop.f32.mrb[0].mxu0
      %v3445 = vadd.f32 0.0, %v3444
      %v3446 = vpop.f32.mrb[0].mxu0
      %v3447 = vadd.f32 0.0, %v3446
      %3448 = vmatprep.mubr.f32.mxu0 0.0
      %3449 = vmatmul.mubr.f32.gmra.mrb[0].mxu0 %v3238
      %v3450 = vpop.f32.mrb[0].mxu0
      %v3451 = vadd.f32 0.0, %v3450
      %v3452 = vpop.f32.mrb[0].mxu0
      %v3453 = vadd.f32 0.0, %v3452
      %3454 = vmatprep.mubr.f32.mxu0 0.0
      %3455 = vmatmul.mubr.f32.gmra.mrb[0].mxu0 %v3241
      %v3456 = vpop.f32.mrb[0].mxu0
      %v3457 = vadd.f32 0.0, %v3456
      %v3458 = vpop.f32.mrb[0].mxu0
      %v3459 = vadd.f32 0.0, %v3458
      %3460 = vmatprep.mubr.f32.mxu0 0.0
      %3461 = vmatmul.mubr.f32.gmra.mrb[0].mxu0 %v3244
      %v3462 = vpop.f32.mrb[0].mxu0
      %v3463 = vadd.f32 0.0, %v3462
      %v3464 = vpop.f32.mrb[0].mxu0
      %v3465 = vadd.f32 0.0, %v3464
      %3466 = vmatprep.mubr.f32.mxu0 0.0
      %3467 = vmatmul.mubr.f32.gmra.mrb[0].mxu0 %v3247
      %v3468 = vpop.f32.mrb[0].mxu0
      %v3469 = vadd.f32 0.0, %v3468
      %v3470 = vpop.f32.mrb[0].mxu0
      %v3471 = vadd.f32 0.0, %v3470
      %3472 = vmatprep.mubr.f32.mxu0 0.0
      %3473 = vmatmul.mubr.f32.gmra.mrb[0].mxu0 %v3250
      %v3474 = vpop.f32.mrb[0].mxu0
      %v3475 = vadd.f32 0.0, %v3474
      %v3476 = vpop.f32.mrb[0].mxu0
      %v3477 = vadd.f32 0.0, %v3476
      %3478 = vmatprep.mubr.f32.mxu0 0.0
      %3479 = vmatmul.mubr.f32.gmra.mrb[0].mxu0 %v3253
      %v3480 = vpop.f32.mrb[0].mxu0
      %v3481 = vadd.f32 0.0, %v3480
      %v3482 = vpop.f32.mrb[0].mxu0
      %v3483 = vadd.f32 0.0, %v3482
      %3484 = vmatprep.mubr.f32.mxu0 0.0
      %3485 = vmatmul.mubr.f32.gmra.mrb[0].mxu0 %v3256
      %v3486 = vpop.f32.mrb[0].mxu0
      %v3487 = vadd.f32 0.0, %v3486
      %v3488 = vpop.f32.mrb[0].mxu0
      %v3489 = vadd.f32 0.0, %v3488
      %3490 = vmatprep.mubr.f32.mxu0 0.0
      %3491 = vmatmul.mubr.f32.gmra.mrb[0].mxu0 %v3259
      %v3492 = vpop.f32.mrb[0].mxu0
      %v3493 = vadd.f32 0.0, %v3492
      %v3494 = vpop.f32.mrb[0].mxu0
      %v3495 = vadd.f32 0.0, %v3494
      %3496 = vmatprep.mubr.f32.mxu0 0.0
      %3497 = vmatmul.mubr.f32.gmra.mrb[0].mxu0 %v3262
      %v3498 = vpop.f32.mrb[0].mxu0
      %v3499 = vadd.f32 0.0, %v3498
      %v3500 = vpop.f32.mrb[0].mxu0
      %v3501 = vadd.f32 0.0, %v3500
      %3502 = vmatprep.mubr.f32.mxu0 0.0
      %3503 = vmatmul.mubr.f32.gmra.mrb[0].mxu0 %v3265
      %v3504 = vpop.f32.mrb[0].mxu0
      %v3505 = vadd.f32 0.0, %v3504
      %v3506 = vpop.f32.mrb[0].mxu0
      %v3507 = vadd.f32 0.0, %v3506
      %3508 = vmatprep.mubr.f32.mxu0 0.0
      %3509 = vmatmul.mubr.f32.gmra.mrb[0].mxu0 %v3268
      %v3510 = vpop.f32.mrb[0].mxu0
      %v3511 = vadd.f32 0.0, %v3510
      %v3512 = vpop.f32.mrb[0].mxu0
      %v3513 = vadd.f32 0.0, %v3512
      %3514 = vmatprep.mubr.f32.mxu0 0.0
      %3515 = vmatmul.mubr.f32.gmra.mrb[0].mxu0 %v3271
      %v3516 = vpop.f32.mrb[0].mxu0
      %v3517 = vadd.f32 0.0, %v3516
      %v3518 = vpop.f32.mrb[0].mxu0
      %v3519 = vadd.f32 0.0, %v3518
      %3520 = vmatprep.mubr.f32.mxu0 0.0
      %3521 = vmatmul.mubr.f32.gmra.mrb[0].mxu0 %v3274
      %v3522 = vpop.f32.mrb[0].mxu0
      %v3523 = vadd.f32 0.0, %v3522
      %v3524 = vpop.f32.mrb[0].mxu0
      %v3525 = vadd.f32 0.0, %v3524
      %3526 = vmatprep.mubr.f32.mxu0 0.0
      %3527 = vmatmul.mubr.f32.gmra.mrb[0].mxu0 %v3277
      %v3528 = vpop.f32.mrb[0].mxu0
      %v3529 = vadd.f32 0.0, %v3528
      %v3530 = vpop.f32.mrb[0].mxu0
      %v3531 = vadd.f32 0.0, %v3530
      %3532 = vmatprep.mubr.f32.mxu0 0.0
      %3533 = vmatmul.mubr.f32.gmra.mrb[0].mxu0 %v3280
      %v3534 = vpop.f32.mrb[0].mxu0
      %v3535 = vadd.f32 0.0, %v3534
      %v3536 = vpop.f32.mrb[0].mxu0
      %v3537 = vadd.f32 0.0, %v3536
      %3538 = vdwg.mxu0
      %3539 = vmatprep.subr.mxu0 0.0
      %3540 = vmatpush1.msra.mxu0 %v3176
      %3541 = vmatprep.subr.mxu0 0.0
      %3542 = vmatpush1.msra.mxu0 %v3179
      %3543 = vmatprep.subr.mxu0 0.0
      %3544 = vmatpush1.msra.mxu0 %v3182
      %3545 = vmatprep.subr.mxu0 0.0
      %3546 = vmatpush1.msra.mxu0 %v3185
      %3547 = vmatprep.subr.mxu0 0.0
      %3548 = vmatpush1.msra.mxu0 0.0
      %3549 = vmatprep.subr.mxu0 0.0
      %3550 = vmatpush1.msra.mxu0 0.0
      %3551 = vmatprep.subr.mxu0 0.0
      %3552 = vmatpush1.msra.mxu0 0.0
      %3553 = vmatprep.subr.mxu0 0.0
      %3554 = vmatpush1.msra.mxu0 0.0
      %3555 = vmatprep.subr.mxu0 0.0
      %3556 = vmatpush1.msra.mxu0 0.0
      %3557 = vmatprep.subr.mxu0 0.0
      %3558 = vmatpush1.msra.mxu0 0.0
      %3559 = vmatprep.subr.mxu0 0.0
      %3560 = vmatpush1.msra.mxu0 0.0
      %3561 = vmatprep.subr.mxu0 0.0
      %3562 = vmatpush1.msra.mxu0 0.0
      %3563 = vmatprep.subr.mxu0 0.0
      %3564 = vmatpush1.msra.mxu0 0.0
      %3565 = vmatprep.subr.mxu0 0.0
      %3566 = vmatpush1.msra.mxu0 0.0
      %3567 = vmatprep.subr.mxu0 0.0
      %3568 = vmatpush1.msra.mxu0 0.0
      %3569 = vmatprep.subr.mxu0 0.0
      %3570 = vmatpush1.msra.mxu0 0.0
      %3571 = vmatprep.subr.mxu0 0.0
      %3572 = vmatpush1.msra.mxu0 0.0
      %3573 = vmatprep.subr.mxu0 0.0
      %3574 = vmatpush1.msra.mxu0 0.0
      %3575 = vmatprep.subr.mxu0 0.0
      %3576 = vmatpush1.msra.mxu0 0.0
      %3577 = vmatprep.subr.mxu0 0.0
      %3578 = vmatpush1.msra.mxu0 0.0
      %3579 = vmatprep.subr.mxu0 0.0
      %3580 = vmatpush1.msra.mxu0 0.0
      %3581 = vmatprep.subr.mxu0 0.0
      %3582 = vmatpush1.msra.mxu0 0.0
      %3583 = vmatprep.subr.mxu0 0.0
      %3584 = vmatpush1.msra.mxu0 0.0
      %3585 = vmatprep.subr.mxu0 0.0
      %3586 = vmatpush1.msra.mxu0 0.0
      %3587 = vmatprep.subr.mxu0 0.0
      %3588 = vmatpush1.msra.mxu0 0.0
      %3589 = vmatprep.subr.mxu0 0.0
      %3590 = vmatpush1.msra.mxu0 0.0
      %3591 = vmatprep.subr.mxu0 0.0
      %3592 = vmatpush1.msra.mxu0 0.0
      %3593 = vmatprep.subr.mxu0 0.0
      %3594 = vmatpush1.msra.mxu0 0.0
      %3595 = vmatprep.subr.mxu0 0.0
      %3596 = vmatpush1.msra.mxu0 0.0
      %3597 = vmatprep.subr.mxu0 0.0
      %3598 = vmatpush1.msra.mxu0 0.0
      %3599 = vmatprep.subr.mxu0 0.0
      %3600 = vmatpush1.msra.mxu0 0.0
      %3601 = vmatprep.subr.mxu0 0.0
      %3602 = vmatpush1.msra.mxu0 0.0
      %3603 = vmatprep.mubr.f32.mxu0 0.0
      %3604 = vmatmul.mubr.f32.gmra.mrb[0].mxu0 %v3187
      %v3605 = vpop.f32.mrb[0].mxu0
      %v3606 = vadd.f32 0.0, %v3605
      %v3607 = vpop.f32.mrb[0].mxu0
      %3608 = vmatprep.mubr.f32.mxu0 0.0
      %3609 = vmatmul.mubr.f32.gmra.mrb[0].mxu0 %v3190
      %v3610 = vpop.f32.mrb[0].mxu0
      %v3611 = vadd.f32 0.0, %v3610
      %v3612 = vpop.f32.mrb[0].mxu0
      %3613 = vmatprep.mubr.f32.mxu0 0.0
      %3614 = vmatmul.mubr.f32.gmra.mrb[0].mxu0 %v3193
      %v3615 = vpop.f32.mrb[0].mxu0
      %v3616 = vadd.f32 0.0, %v3615
      %v3617 = vpop.f32.mrb[0].mxu0
      %3618 = vmatprep.mubr.f32.mxu0 0.0
      %3619 = vmatmul.mubr.f32.gmra.mrb[0].mxu0 %v3196
      %v3620 = vpop.f32.mrb[0].mxu0
      %v3621 = vadd.f32 0.0, %v3620
      %v3622 = vpop.f32.mrb[0].mxu0
      %3623 = vmatprep.mubr.f32.mxu0 0.0
      %3624 = vmatmul.mubr.f32.gmra.mrb[0].mxu0 %v3199
      %v3625 = vpop.f32.mrb[0].mxu0
      %v3626 = vadd.f32 0.0, %v3625
      %v3627 = vpop.f32.mrb[0].mxu0
      %3628 = vmatprep.mubr.f32.mxu0 0.0
      %3629 = vmatmul.mubr.f32.gmra.mrb[0].mxu0 %v3202
      %v3630 = vpop.f32.mrb[0].mxu0
      %v3631 = vadd.f32 0.0, %v3630
      %v3632 = vpop.f32.mrb[0].mxu0
      %3633 = vmatprep.mubr.f32.mxu0 0.0
      %3634 = vmatmul.mubr.f32.gmra.mrb[0].mxu0 %v3205
      %v3635 = vpop.f32.mrb[0].mxu0
      %v3636 = vadd.f32 0.0, %v3635
      %v3637 = vpop.f32.mrb[0].mxu0
      %3638 = vmatprep.mubr.f32.mxu0 0.0
      %3639 = vmatmul.mubr.f32.gmra.mrb[0].mxu0 %v3208
      %v3640 = vpop.f32.mrb[0].mxu0
      %v3641 = vadd.f32 0.0, %v3640
      %v3642 = vpop.f32.mrb[0].mxu0
      %3643 = vmatprep.mubr.f32.mxu0 0.0
      %3644 = vmatmul.mubr.f32.gmra.mrb[0].mxu0 %v3211
      %v3645 = vpop.f32.mrb[0].mxu0
      %v3646 = vadd.f32 0.0, %v3645
      %v3647 = vpop.f32.mrb[0].mxu0
      %3648 = vmatprep.mubr.f32.mxu0 0.0
      %3649 = vmatmul.mubr.f32.gmra.mrb[0].mxu0 %v3214
      %v3650 = vpop.f32.mrb[0].mxu0
      %v3651 = vadd.f32 0.0, %v3650
      %v3652 = vpop.f32.mrb[0].mxu0
      %3653 = vmatprep.mubr.f32.mxu0 0.0
      %3654 = vmatmul.mubr.f32.gmra.mrb[0].mxu0 %v3217
      %v3655 = vpop.f32.mrb[0].mxu0
      %v3656 = vadd.f32 0.0, %v3655
      %v3657 = vpop.f32.mrb[0].mxu0
      %3658 = vmatprep.mubr.f32.mxu0 0.0
      %3659 = vmatmul.mubr.f32.gmra.mrb[0].mxu0 %v3220
      %v3660 = vpop.f32.mrb[0].mxu0
      %v3661 = vadd.f32 0.0, %v3660
      %v3662 = vpop.f32.mrb[0].mxu0
      %3663 = vmatprep.mubr.f32.mxu0 0.0
      %3664 = vmatmul.mubr.f32.gmra.mrb[0].mxu0 %v3223
      %v3665 = vpop.f32.mrb[0].mxu0
      %v3666 = vadd.f32 0.0, %v3665
      %v3667 = vpop.f32.mrb[0].mxu0
      %3668 = vmatprep.mubr.f32.mxu0 0.0
      %3669 = vmatmul.mubr.f32.gmra.mrb[0].mxu0 %v3226
      %v3670 = vpop.f32.mrb[0].mxu0
      %v3671 = vadd.f32 0.0, %v3670
      %v3672 = vpop.f32.mrb[0].mxu0
      %3673 = vmatprep.mubr.f32.mxu0 0.0
      %3674 = vmatmul.mubr.f32.gmra.mrb[0].mxu0 %v3229
      %v3675 = vpop.f32.mrb[0].mxu0
      %v3676 = vadd.f32 0.0, %v3675
      %v3677 = vpop.f32.mrb[0].mxu0
      %3678 = vmatprep.mubr.f32.mxu0 0.0
      %3679 = vmatmul.mubr.f32.gmra.mrb[0].mxu0 %v3232
      %v3680 = vpop.f32.mrb[0].mxu0
      %v3681 = vadd.f32 0.0, %v3680
      %v3682 = vpop.f32.mrb[0].mxu0
      %3683 = vmatprep.mubr.f32.mxu0 0.0
      %3684 = vmatmul.mubr.f32.gmra.mrb[0].mxu0 %v3235
      %v3685 = vpop.f32.mrb[0].mxu0
      %v3686 = vadd.f32 0.0, %v3685
      %v3687 = vpop.f32.mrb[0].mxu0
      %3688 = vmatprep.mubr.f32.mxu0 0.0
      %3689 = vmatmul.mubr.f32.gmra.mrb[0].mxu0 %v3238
      %v3690 = vpop.f32.mrb[0].mxu0
      %v3691 = vadd.f32 0.0, %v3690
      %v3692 = vpop.f32.mrb[0].mxu0
      %3693 = vmatprep.mubr.f32.mxu0 0.0
      %3694 = vmatmul.mubr.f32.gmra.mrb[0].mxu0 %v3241
      %v3695 = vpop.f32.mrb[0].mxu0
      %v3696 = vadd.f32 0.0, %v3695
      %v3697 = vpop.f32.mrb[0].mxu0
      %3698 = vmatprep.mubr.f32.mxu0 0.0
      %3699 = vmatmul.mubr.f32.gmra.mrb[0].mxu0 %v3244
      %v3700 = vpop.f32.mrb[0].mxu0
      %v3701 = vadd.f32 0.0, %v3700
      %v3702 = vpop.f32.mrb[0].mxu0
      %3703 = vmatprep.mubr.f32.mxu0 0.0
      %3704 = vmatmul.mubr.f32.gmra.mrb[0].mxu0 %v3247
      %v3705 = vpop.f32.mrb[0].mxu0
      %v3706 = vadd.f32 0.0, %v3705
      %v3707 = vpop.f32.mrb[0].mxu0
      %3708 = vmatprep.mubr.f32.mxu0 0.0
      %3709 = vmatmul.mubr.f32.gmra.mrb[0].mxu0 %v3250
      %v3710 = vpop.f32.mrb[0].mxu0
      %v3711 = vadd.f32 0.0, %v3710
      %v3712 = vpop.f32.mrb[0].mxu0
      %3713 = vmatprep.mubr.f32.mxu0 0.0
      %3714 = vmatmul.mubr.f32.gmra.mrb[0].mxu0 %v3253
      %v3715 = vpop.f32.mrb[0].mxu0
      %v3716 = vadd.f32 0.0, %v3715
      %v3717 = vpop.f32.mrb[0].mxu0
      %3718 = vmatprep.mubr.f32.mxu0 0.0
      %3719 = vmatmul.mubr.f32.gmra.mrb[0].mxu0 %v3256
      %v3720 = vpop.f32.mrb[0].mxu0
      %v3721 = vadd.f32 0.0, %v3720
      %v3722 = vpop.f32.mrb[0].mxu0
      %3723 = vmatprep.mubr.f32.mxu0 0.0
      %3724 = vmatmul.mubr.f32.gmra.mrb[0].mxu0 %v3259
      %v3725 = vpop.f32.mrb[0].mxu0
      %v3726 = vadd.f32 0.0, %v3725
      %v3727 = vpop.f32.mrb[0].mxu0
      %3728 = vmatprep.mubr.f32.mxu0 0.0
      %3729 = vmatmul.mubr.f32.gmra.mrb[0].mxu0 %v3262
      %v3730 = vpop.f32.mrb[0].mxu0
      %v3731 = vadd.f32 0.0, %v3730
      %v3732 = vpop.f32.mrb[0].mxu0
      %3733 = vmatprep.mubr.f32.mxu0 0.0
      %3734 = vmatmul.mubr.f32.gmra.mrb[0].mxu0 %v3265
      %v3735 = vpop.f32.mrb[0].mxu0
      %v3736 = vadd.f32 0.0, %v3735
      %v3737 = vpop.f32.mrb[0].mxu0
      %3738 = vmatprep.mubr.f32.mxu0 0.0
      %3739 = vmatmul.mubr.f32.gmra.mrb[0].mxu0 %v3268
      %v3740 = vpop.f32.mrb[0].mxu0
      %v3741 = vadd.f32 0.0, %v3740
      %v3742 = vpop.f32.mrb[0].mxu0
      %3743 = vmatprep.mubr.f32.mxu0 0.0
      %3744 = vmatmul.mubr.f32.gmra.mrb[0].mxu0 %v3271
      %v3745 = vpop.f32.mrb[0].mxu0
      %v3746 = vadd.f32 0.0, %v3745
      %v3747 = vpop.f32.mrb[0].mxu0
      %3748 = vmatprep.mubr.f32.mxu0 0.0
      %3749 = vmatmul.mubr.f32.gmra.mrb[0].mxu0 %v3274
      %v3750 = vpop.f32.mrb[0].mxu0
      %v3751 = vadd.f32 0.0, %v3750
      %v3752 = vpop.f32.mrb[0].mxu0
      %3753 = vmatprep.mubr.f32.mxu0 0.0
      %3754 = vmatmul.mubr.f32.gmra.mrb[0].mxu0 %v3277
      %v3755 = vpop.f32.mrb[0].mxu0
      %v3756 = vadd.f32 0.0, %v3755
      %v3757 = vpop.f32.mrb[0].mxu0
      %3758 = vmatprep.mubr.f32.mxu0 0.0
      %3759 = vmatmul.mubr.f32.gmra.mrb[0].mxu0 %v3280
      %v3760 = vpop.f32.mrb[0].mxu0
      %v3761 = vadd.f32 0.0, %v3760
      %v3762 = vpop.f32.mrb[0].mxu0
      %3763 = vdwg.mxu0
      %vm3767 = vcmask 1040384
      %v3768 = vrot.slane %v3523, 7
      %v3769 = vrot.slane %v3529, 7
      %v3770 = vsel %vm3767, %v3768, %v3769
      %v3771 = vrot.slane %v3535, 7
      %v3772 = vsel %vm3767, %v3769, %v3771
      %v3805 = vrot.slane %v3349, 7
      %v3806 = vrot.slane %v3355, 7
      %v3807 = vsel %vm3767, %v3805, %v3806
      %v3808 = vrot.slane %v3361, 7
      %v3809 = vsel %vm3767, %v3806, %v3808
      %v3810 = vrot.slane %v3367, 7
      %v3811 = vsel %vm3767, %v3808, %v3810
      %v3812 = vrot.slane %v3373, 7
      %v3813 = vsel %vm3767, %v3810, %v3812
      %v3814 = vrot.slane %v3379, 7
      %v3815 = vsel %vm3767, %v3812, %v3814
      %v3816 = vrot.slane %v3385, 7
      %v3817 = vsel %vm3767, %v3814, %v3816
      %v3818 = vrot.slane %v3391, 7
      %v3819 = vsel %vm3767, %v3816, %v3818
      %v3820 = vrot.slane %v3397, 7
      %v3821 = vsel %vm3767, %v3818, %v3820
      %v3822 = vrot.slane %v3403, 7
      %v3823 = vsel %vm3767, %v3820, %v3822
      %v3824 = vrot.slane %v3409, 7
      %v3825 = vsel %vm3767, %v3822, %v3824
      %v3826 = vrot.slane %v3415, 7
      %v3827 = vsel %vm3767, %v3824, %v3826
      %v3828 = vrot.slane %v3421, 7
      %v3829 = vsel %vm3767, %v3826, %v3828
      %v3830 = vrot.slane %v3427, 7
      %v3831 = vsel %vm3767, %v3828, %v3830
      %v3832 = vrot.slane %v3433, 7
      %v3833 = vsel %vm3767, %v3830, %v3832
      %v3834 = vrot.slane %v3439, 7
      %v3835 = vsel %vm3767, %v3832, %v3834
      %v3836 = vrot.slane %v3445, 7
      %v3837 = vsel %vm3767, %v3834, %v3836
      %v3838 = vrot.slane %v3451, 7
      %v3839 = vsel %vm3767, %v3836, %v3838
      %v3840 = vrot.slane %v3457, 7
      %v3841 = vsel %vm3767, %v3838, %v3840
      %v3842 = vrot.slane %v3463, 7
      %v3843 = vsel %vm3767, %v3840, %v3842
      %v3844 = vrot.slane %v3469, 7
      %v3845 = vsel %vm3767, %v3842, %v3844
      %v3846 = vrot.slane %v3475, 7
      %v3847 = vsel %vm3767, %v3844, %v3846
      %v3848 = vrot.slane %v3481, 7
      %v3849 = vsel %vm3767, %v3846, %v3848
      %v3850 = vrot.slane %v3487, 7
      %v3851 = vsel %vm3767, %v3848, %v3850
      %v3852 = vrot.slane %v3493, 7
      %v3853 = vsel %vm3767, %v3850, %v3852
      %v3854 = vrot.slane %v3499, 7
      %v3855 = vsel %vm3767, %v3852, %v3854
      %v3856 = vrot.slane %v3505, 7
      %v3857 = vsel %vm3767, %v3854, %v3856
      %v3858 = vrot.slane %v3511, 7
      %v3859 = vsel %vm3767, %v3856, %v3858
      %v3860 = vrot.slane %v3517, 7
      %v3861 = vsel %vm3767, %v3858, %v3860
      %v3862 = vsel %vm3767, %v3860, %v3768
      %v3893 = vsel %vm3767, %v3771, %v3805
      %v3894 = vld [vmem:[%s10] sm:$0xff]
      %v3895 = vld [vmem:[%s10 + $0x8] sm:$0xff]
      %v3896 = vld [vmem:[%s10 + $0x10] sm:$0xff]
      %v3897 = vld [vmem:[%s10 + $0x18] sm:$0xff]
      %v3898 = vld [vmem:[%s10 + $0x20] sm:$0xff]
      %v3899 = vld [vmem:[%s10 + $0x28] sm:$0xff]
      %v3900 = vld [vmem:[%s10 + $0x30] sm:$0xff]
      %v3901 = vld [vmem:[%s10 + $0x38] sm:$0xff]
      %v3902 = vld [vmem:[%s10 + $0x40] sm:$0xff]
      %v3903 = vld [vmem:[%s10 + $0x48] sm:$0xff]
      %v3904 = vld [vmem:[%s10 + $0x50] sm:$0xff]
      %v3905 = vld [vmem:[%s10 + $0x58] sm:$0xff]
      %v3906 = vld [vmem:[%s10 + $0x60] sm:$0xff]
      %v3907 = vld [vmem:[%s10 + $0x68] sm:$0xff]
      %v3908 = vld [vmem:[%s10 + $0x70] sm:$0xff]
      %v3909 = vld [vmem:[%s10 + $0x78] sm:$0xff]
      %v3910 = vld [vmem:[%s10 + $0x80] sm:$0xff]
      %v3911 = vld [vmem:[%s10 + $0x88] sm:$0xff]
      %v3912 = vld [vmem:[%s10 + $0x90] sm:$0xff]
      %v3913 = vld [vmem:[%s10 + $0x98] sm:$0xff]
      %v3914 = vld [vmem:[%s10 + $0xa0] sm:$0xff]
      %v3915 = vld [vmem:[%s10 + $0xa8] sm:$0xff]
      %v3916 = vld [vmem:[%s10 + $0xb0] sm:$0xff]
      %v3917 = vld [vmem:[%s10 + $0xb8] sm:$0xff]
      %v3918 = vld [vmem:[%s10 + $0xc0] sm:$0xff]
      %v3919 = vld [vmem:[%s10 + $0xc8] sm:$0xff]
      %v3920 = vld [vmem:[%s10 + $0xd0] sm:$0xff]
      %v3921 = vld [vmem:[%s10 + $0xd8] sm:$0xff]
      %v3922 = vld [vmem:[%s10 + $0xe0] sm:$0xff]
      %v3923 = vld [vmem:[%s10 + $0xe8] sm:$0xff]
      %v3924 = vld [vmem:[%s10 + $0xf0] sm:$0xff]
      %v3925 = vld [vmem:[%s10 + $0xf8] sm:$0xff]
      %3927 = vset.pattern.permute.xlu0 0
      %3928 = vperm.xlu0 %3927, %v3894
      %v3929 = vpop.permute.xlu0 %3928
      %3932 = vset.pattern.permute.xlu0 0
      %3933 = vperm.xlu0 %3932, %v3895
      %v3934 = vpop.permute.xlu0 %3933
      %3937 = vset.pattern.permute.xlu0 0
      %3938 = vperm.xlu0 %3937, %v3896
      %v3939 = vpop.permute.xlu0 %3938
      %3942 = vset.pattern.permute.xlu0 0
      %3943 = vperm.xlu0 %3942, %v3897
      %v3944 = vpop.permute.xlu0 %3943
      %3947 = vset.pattern.permute.xlu0 0
      %3948 = vperm.xlu0 %3947, %v3898
      %v3949 = vpop.permute.xlu0 %3948
      %3952 = vset.pattern.permute.xlu0 0
      %3953 = vperm.xlu0 %3952, %v3899
      %v3954 = vpop.permute.xlu0 %3953
      %3957 = vset.pattern.permute.xlu0 0
      %3958 = vperm.xlu0 %3957, %v3900
      %v3959 = vpop.permute.xlu0 %3958
      %3962 = vset.pattern.permute.xlu0 0
      %3963 = vperm.xlu0 %3962, %v3901
      %v3964 = vpop.permute.xlu0 %3963
      %3967 = vset.pattern.permute.xlu0 0
      %3968 = vperm.xlu0 %3967, %v3902
      %v3969 = vpop.permute.xlu0 %3968
      %3972 = vset.pattern.permute.xlu0 0
      %3973 = vperm.xlu0 %3972, %v3903
      %v3974 = vpop.permute.xlu0 %3973
      %3977 = vset.pattern.permute.xlu0 0
      %3978 = vperm.xlu0 %3977, %v3904
      %v3979 = vpop.permute.xlu0 %3978
      %3982 = vset.pattern.permute.xlu0 0
      %3983 = vperm.xlu0 %3982, %v3905
      %v3984 = vpop.permute.xlu0 %3983
      %3987 = vset.pattern.permute.xlu0 0
      %3988 = vperm.xlu0 %3987, %v3906
      %v3989 = vpop.permute.xlu0 %3988
      %3992 = vset.pattern.permute.xlu0 0
      %3993 = vperm.xlu0 %3992, %v3907
      %v3994 = vpop.permute.xlu0 %3993
      %3997 = vset.pattern.permute.xlu0 0
      %3998 = vperm.xlu0 %3997, %v3908
      %v3999 = vpop.permute.xlu0 %3998
      %4002 = vset.pattern.permute.xlu0 0
      %4003 = vperm.xlu0 %4002, %v3909
      %v4004 = vpop.permute.xlu0 %4003
      %4007 = vset.pattern.permute.xlu0 0
      %4008 = vperm.xlu0 %4007, %v3910
      %v4009 = vpop.permute.xlu0 %4008
      %4012 = vset.pattern.permute.xlu0 0
      %4013 = vperm.xlu0 %4012, %v3911
      %v4014 = vpop.permute.xlu0 %4013
      %4017 = vset.pattern.permute.xlu0 0
      %4018 = vperm.xlu0 %4017, %v3912
      %v4019 = vpop.permute.xlu0 %4018
      %4022 = vset.pattern.permute.xlu0 0
      %4023 = vperm.xlu0 %4022, %v3913
      %v4024 = vpop.permute.xlu0 %4023
      %4027 = vset.pattern.permute.xlu0 0
      %4028 = vperm.xlu0 %4027, %v3914
      %v4029 = vpop.permute.xlu0 %4028
      %4032 = vset.pattern.permute.xlu0 0
      %4033 = vperm.xlu0 %4032, %v3915
      %v4034 = vpop.permute.xlu0 %4033
      %4037 = vset.pattern.permute.xlu0 0
      %4038 = vperm.xlu0 %4037, %v3916
      %v4039 = vpop.permute.xlu0 %4038
      %4042 = vset.pattern.permute.xlu0 0
      %4043 = vperm.xlu0 %4042, %v3917
      %v4044 = vpop.permute.xlu0 %4043
      %4047 = vset.pattern.permute.xlu0 0
      %4048 = vperm.xlu0 %4047, %v3918
      %v4049 = vpop.permute.xlu0 %4048
      %4052 = vset.pattern.permute.xlu0 0
      %4053 = vperm.xlu0 %4052, %v3919
      %v4054 = vpop.permute.xlu0 %4053
      %4057 = vset.pattern.permute.xlu0 0
      %4058 = vperm.xlu0 %4057, %v3920
      %v4059 = vpop.permute.xlu0 %4058
      %4062 = vset.pattern.permute.xlu0 0
      %4063 = vperm.xlu0 %4062, %v3921
      %v4064 = vpop.permute.xlu0 %4063
      %4067 = vset.pattern.permute.xlu0 0
      %4068 = vperm.xlu0 %4067, %v3922
      %v4069 = vpop.permute.xlu0 %4068
      %4072 = vset.pattern.permute.xlu0 0
      %4073 = vperm.xlu0 %4072, %v3923
      %v4074 = vpop.permute.xlu0 %4073
      %4077 = vset.pattern.permute.xlu0 0
      %4078 = vperm.xlu0 %4077, %v3924
      %v4079 = vpop.permute.xlu0 %4078
      %4082 = vset.pattern.permute.xlu0 0
      %4083 = vperm.xlu0 %4082, %v3925
      %v4084 = vpop.permute.xlu0 %4083
      %v4086 = vmul.f32 %v3770, %v3929
      %v4087 = vmul.f32 %v3772, %v3934
      %v4088 = vmul.f32 %v3893, %v3939
      %v4089 = vmul.f32 %v3807, %v3944
      %v4090 = vmul.f32 %v3809, %v3949
      %v4091 = vmul.f32 %v3811, %v3954
      %v4092 = vmul.f32 %v3813, %v3959
      %v4093 = vmul.f32 %v3815, %v3964
      %v4094 = vmul.f32 %v3817, %v3969
      %v4095 = vmul.f32 %v3819, %v3974
      %v4096 = vmul.f32 %v3821, %v3979
      %v4097 = vmul.f32 %v3823, %v3984
      %v4098 = vmul.f32 %v3825, %v3989
      %v4099 = vmul.f32 %v3827, %v3994
      %v4100 = vmul.f32 %v3829, %v3999
      %v4101 = vmul.f32 %v3831, %v4004
      %v4102 = vmul.f32 %v3833, %v4009
      %v4103 = vmul.f32 %v3835, %v4014
      %v4104 = vmul.f32 %v3837, %v4019
      %v4105 = vmul.f32 %v3839, %v4024
      %v4106 = vmul.f32 %v3841, %v4029
      %v4107 = vmul.f32 %v3843, %v4034
      %v4108 = vmul.f32 %v3845, %v4039
      %v4109 = vmul.f32 %v3847, %v4044
      %v4110 = vmul.f32 %v3849, %v4049
      %v4111 = vmul.f32 %v3851, %v4054
      %v4112 = vmul.f32 %v3853, %v4059
      %v4113 = vmul.f32 %v3855, %v4064
      %v4114 = vmul.f32 %v3857, %v4069
      %v4115 = vmul.f32 %v3859, %v4074
      %v4116 = vmul.f32 %v3861, %v4079
      %v4117 = vmul.f32 %v3862, %v4084
      %4118 = vset.pattern.permute.xlu0 1
      %4119 = vperm.xlu0 %4118, %v3894
      %v4120 = vpop.permute.xlu0 %4119
      %4122 = vset.pattern.permute.xlu0 1
      %4123 = vperm.xlu0 %4122, %v3895
      %v4124 = vpop.permute.xlu0 %4123
      %4126 = vset.pattern.permute.xlu0 1
      %4127 = vperm.xlu0 %4126, %v3896
      %v4128 = vpop.permute.xlu0 %4127
      %4130 = vset.pattern.permute.xlu0 1
      %4131 = vperm.xlu0 %4130, %v3897
      %v4132 = vpop.permute.xlu0 %4131
      %4134 = vset.pattern.permute.xlu0 1
      %4135 = vperm.xlu0 %4134, %v3898
      %v4136 = vpop.permute.xlu0 %4135
      %4138 = vset.pattern.permute.xlu0 1
      %4139 = vperm.xlu0 %4138, %v3899
      %v4140 = vpop.permute.xlu0 %4139
      %4142 = vset.pattern.permute.xlu0 1
      %4143 = vperm.xlu0 %4142, %v3900
      %v4144 = vpop.permute.xlu0 %4143
      %4146 = vset.pattern.permute.xlu0 1
      %4147 = vperm.xlu0 %4146, %v3901
      %v4148 = vpop.permute.xlu0 %4147
      %4150 = vset.pattern.permute.xlu0 1
      %4151 = vperm.xlu0 %4150, %v3902
      %v4152 = vpop.permute.xlu0 %4151
      %4154 = vset.pattern.permute.xlu0 1
      %4155 = vperm.xlu0 %4154, %v3903
      %v4156 = vpop.permute.xlu0 %4155
      %4158 = vset.pattern.permute.xlu0 1
      %4159 = vperm.xlu0 %4158, %v3904
      %v4160 = vpop.permute.xlu0 %4159
      %4162 = vset.pattern.permute.xlu0 1
      %4163 = vperm.xlu0 %4162, %v3905
      %v4164 = vpop.permute.xlu0 %4163
      %4166 = vset.pattern.permute.xlu0 1
      %4167 = vperm.xlu0 %4166, %v3906
      %v4168 = vpop.permute.xlu0 %4167
      %4170 = vset.pattern.permute.xlu0 1
      %4171 = vperm.xlu0 %4170, %v3907
      %v4172 = vpop.permute.xlu0 %4171
      %4174 = vset.pattern.permute.xlu0 1
      %4175 = vperm.xlu0 %4174, %v3908
      %v4176 = vpop.permute.xlu0 %4175
      %4178 = vset.pattern.permute.xlu0 1
      %4179 = vperm.xlu0 %4178, %v3909
      %v4180 = vpop.permute.xlu0 %4179
      %4182 = vset.pattern.permute.xlu0 1
      %4183 = vperm.xlu0 %4182, %v3910
      %v4184 = vpop.permute.xlu0 %4183
      %4186 = vset.pattern.permute.xlu0 1
      %4187 = vperm.xlu0 %4186, %v3911
      %v4188 = vpop.permute.xlu0 %4187
      %4190 = vset.pattern.permute.xlu0 1
      %4191 = vperm.xlu0 %4190, %v3912
      %v4192 = vpop.permute.xlu0 %4191
      %4194 = vset.pattern.permute.xlu0 1
      %4195 = vperm.xlu0 %4194, %v3913
      %v4196 = vpop.permute.xlu0 %4195
      %4198 = vset.pattern.permute.xlu0 1
      %4199 = vperm.xlu0 %4198, %v3914
      %v4200 = vpop.permute.xlu0 %4199
      %4202 = vset.pattern.permute.xlu0 1
      %4203 = vperm.xlu0 %4202, %v3915
      %v4204 = vpop.permute.xlu0 %4203
      %4206 = vset.pattern.permute.xlu0 1
      %4207 = vperm.xlu0 %4206, %v3916
      %v4208 = vpop.permute.xlu0 %4207
      %4210 = vset.pattern.permute.xlu0 1
      %4211 = vperm.xlu0 %4210, %v3917
      %v4212 = vpop.permute.xlu0 %4211
      %4214 = vset.pattern.permute.xlu0 1
      %4215 = vperm.xlu0 %4214, %v3918
      %v4216 = vpop.permute.xlu0 %4215
      %4218 = vset.pattern.permute.xlu0 1
      %4219 = vperm.xlu0 %4218, %v3919
      %v4220 = vpop.permute.xlu0 %4219
      %4222 = vset.pattern.permute.xlu0 1
      %4223 = vperm.xlu0 %4222, %v3920
      %v4224 = vpop.permute.xlu0 %4223
      %4226 = vset.pattern.permute.xlu0 1
      %4227 = vperm.xlu0 %4226, %v3921
      %v4228 = vpop.permute.xlu0 %4227
      %4230 = vset.pattern.permute.xlu0 1
      %4231 = vperm.xlu0 %4230, %v3922
      %v4232 = vpop.permute.xlu0 %4231
      %4234 = vset.pattern.permute.xlu0 1
      %4235 = vperm.xlu0 %4234, %v3923
      %v4236 = vpop.permute.xlu0 %4235
      %4238 = vset.pattern.permute.xlu0 1
      %4239 = vperm.xlu0 %4238, %v3924
      %v4240 = vpop.permute.xlu0 %4239
      %4242 = vset.pattern.permute.xlu0 1
      %4243 = vperm.xlu0 %4242, %v3925
      %v4244 = vpop.permute.xlu0 %4243
      %v4246 = vmul.f32 %v3529, %v4120
      %v4247 = vmul.f32 %v3535, %v4124
      %v4248 = vmul.f32 %v3349, %v4128
      %v4249 = vmul.f32 %v3355, %v4132
      %v4250 = vmul.f32 %v3361, %v4136
      %v4251 = vmul.f32 %v3367, %v4140
      %v4252 = vmul.f32 %v3373, %v4144
      %v4253 = vmul.f32 %v3379, %v4148
      %v4254 = vmul.f32 %v3385, %v4152
      %v4255 = vmul.f32 %v3391, %v4156
      %v4256 = vmul.f32 %v3397, %v4160
      %v4257 = vmul.f32 %v3403, %v4164
      %v4258 = vmul.f32 %v3409, %v4168
      %v4259 = vmul.f32 %v3415, %v4172
      %v4260 = vmul.f32 %v3421, %v4176
      %v4261 = vmul.f32 %v3427, %v4180
      %v4262 = vmul.f32 %v3433, %v4184
      %v4263 = vmul.f32 %v3439, %v4188
      %v4264 = vmul.f32 %v3445, %v4192
      %v4265 = vmul.f32 %v3451, %v4196
      %v4266 = vmul.f32 %v3457, %v4200
      %v4267 = vmul.f32 %v3463, %v4204
      %v4268 = vmul.f32 %v3469, %v4208
      %v4269 = vmul.f32 %v3475, %v4212
      %v4270 = vmul.f32 %v3481, %v4216
      %v4271 = vmul.f32 %v3487, %v4220
      %v4272 = vmul.f32 %v3493, %v4224
      %v4273 = vmul.f32 %v3499, %v4228
      %v4274 = vmul.f32 %v3505, %v4232
      %v4275 = vmul.f32 %v3511, %v4236
      %v4276 = vmul.f32 %v3517, %v4240
      %v4277 = vmul.f32 %v3523, %v4244
      %4310 = vrot.lane.b32.xlu0 %v4246, 96
      %v4311 = vpop.permute.xlu0 %4310
      %4312 = vrot.lane.b32.xlu0 %v4247, 96
      %v4313 = vpop.permute.xlu0 %4312
      %4314 = vrot.lane.b32.xlu0 %v4248, 96
      %v4315 = vpop.permute.xlu0 %4314
      %4316 = vrot.lane.b32.xlu0 %v4249, 96
      %v4317 = vpop.permute.xlu0 %4316
      %4318 = vrot.lane.b32.xlu0 %v4250, 96
      %v4319 = vpop.permute.xlu0 %4318
      %4320 = vrot.lane.b32.xlu0 %v4251, 96
      %v4321 = vpop.permute.xlu0 %4320
      %4322 = vrot.lane.b32.xlu0 %v4252, 96
      %v4323 = vpop.permute.xlu0 %4322
      %4324 = vrot.lane.b32.xlu0 %v4253, 96
      %v4325 = vpop.permute.xlu0 %4324
      %4326 = vrot.lane.b32.xlu0 %v4254, 96
      %v4327 = vpop.permute.xlu0 %4326
      %4328 = vrot.lane.b32.xlu0 %v4255, 96
      %v4329 = vpop.permute.xlu0 %4328
      %4330 = vrot.lane.b32.xlu0 %v4256, 96
      %v4331 = vpop.permute.xlu0 %4330
      %4332 = vrot.lane.b32.xlu0 %v4257, 96
      %v4333 = vpop.permute.xlu0 %4332
      %4334 = vrot.lane.b32.xlu0 %v4258, 96
      %v4335 = vpop.permute.xlu0 %4334
      %4336 = vrot.lane.b32.xlu0 %v4259, 96
      %v4337 = vpop.permute.xlu0 %4336
      %4338 = vrot.lane.b32.xlu0 %v4260, 96
      %v4339 = vpop.permute.xlu0 %4338
      %4340 = vrot.lane.b32.xlu0 %v4261, 96
      %v4341 = vpop.permute.xlu0 %4340
      %4342 = vrot.lane.b32.xlu0 %v4262, 96
      %v4343 = vpop.permute.xlu0 %4342
      %4344 = vrot.lane.b32.xlu0 %v4263, 96
      %v4345 = vpop.permute.xlu0 %4344
      %4346 = vrot.lane.b32.xlu0 %v4264, 96
      %v4347 = vpop.permute.xlu0 %4346
      %4348 = vrot.lane.b32.xlu0 %v4265, 96
      %v4349 = vpop.permute.xlu0 %4348
      %4350 = vrot.lane.b32.xlu0 %v4266, 96
      %v4351 = vpop.permute.xlu0 %4350
      %4352 = vrot.lane.b32.xlu0 %v4267, 96
      %v4353 = vpop.permute.xlu0 %4352
      %4354 = vrot.lane.b32.xlu0 %v4268, 96
      %v4355 = vpop.permute.xlu0 %4354
      %4356 = vrot.lane.b32.xlu0 %v4269, 96
      %v4357 = vpop.permute.xlu0 %4356
      %4358 = vrot.lane.b32.xlu0 %v4270, 96
      %v4359 = vpop.permute.xlu0 %4358
      %4360 = vrot.lane.b32.xlu0 %v4271, 96
      %v4361 = vpop.permute.xlu0 %4360
      %4362 = vrot.lane.b32.xlu0 %v4272, 96
      %v4363 = vpop.permute.xlu0 %4362
      %4364 = vrot.lane.b32.xlu0 %v4273, 96
      %v4365 = vpop.permute.xlu0 %4364
      %4366 = vrot.lane.b32.xlu0 %v4274, 96
      %v4367 = vpop.permute.xlu0 %4366
      %4368 = vrot.lane.b32.xlu0 %v4275, 96
      %v4369 = vpop.permute.xlu0 %4368
      %4370 = vrot.lane.b32.xlu0 %v4276, 96
      %v4371 = vpop.permute.xlu0 %4370
      %4372 = vrot.lane.b32.xlu0 %v4277, 96
      %v4373 = vpop.permute.xlu0 %4372
      %v4406 = vadd.f32 %v4086, %v4311
      %v4407 = vadd.f32 %v4087, %v4313
      %v4408 = vadd.f32 %v4088, %v4315
      %v4409 = vadd.f32 %v4089, %v4317
      %v4410 = vadd.f32 %v4090, %v4319
      %v4411 = vadd.f32 %v4091, %v4321
      %v4412 = vadd.f32 %v4092, %v4323
      %v4413 = vadd.f32 %v4093, %v4325
      %v4414 = vadd.f32 %v4094, %v4327
      %v4415 = vadd.f32 %v4095, %v4329
      %v4416 = vadd.f32 %v4096, %v4331
      %v4417 = vadd.f32 %v4097, %v4333
      %v4418 = vadd.f32 %v4098, %v4335
      %v4419 = vadd.f32 %v4099, %v4337
      %v4420 = vadd.f32 %v4100, %v4339
      %v4421 = vadd.f32 %v4101, %v4341
      %v4422 = vadd.f32 %v4102, %v4343
      %v4423 = vadd.f32 %v4103, %v4345
      %v4424 = vadd.f32 %v4104, %v4347
      %v4425 = vadd.f32 %v4105, %v4349
      %v4426 = vadd.f32 %v4106, %v4351
      %v4427 = vadd.f32 %v4107, %v4353
      %v4428 = vadd.f32 %v4108, %v4355
      %v4429 = vadd.f32 %v4109, %v4357
      %v4430 = vadd.f32 %v4110, %v4359
      %v4431 = vadd.f32 %v4111, %v4361
      %v4432 = vadd.f32 %v4112, %v4363
      %v4433 = vadd.f32 %v4113, %v4365
      %v4434 = vadd.f32 %v4114, %v4367
      %v4435 = vadd.f32 %v4115, %v4369
      %v4436 = vadd.f32 %v4116, %v4371
      %v4437 = vadd.f32 %v4117, %v4373
      %vm4438 = vcmask 1046528
      %v4439 = vrot.slane %v3529, 1
      %v4440 = vrot.slane %v3535, 1
      %v4441 = vsel %vm4438, %v4439, %v4440
      %v4444 = vrot.slane %v3349, 1
      %v4445 = vrot.slane %v3355, 1
      %v4446 = vsel %vm4438, %v4444, %v4445
      %v4447 = vrot.slane %v3361, 1
      %v4448 = vsel %vm4438, %v4445, %v4447
      %v4449 = vrot.slane %v3367, 1
      %v4450 = vsel %vm4438, %v4447, %v4449
      %v4451 = vrot.slane %v3373, 1
      %v4452 = vsel %vm4438, %v4449, %v4451
      %v4453 = vrot.slane %v3379, 1
      %v4454 = vsel %vm4438, %v4451, %v4453
      %v4455 = vrot.slane %v3385, 1
      %v4456 = vsel %vm4438, %v4453, %v4455
      %v4457 = vrot.slane %v3391, 1
      %v4458 = vsel %vm4438, %v4455, %v4457
      %v4459 = vrot.slane %v3397, 1
      %v4460 = vsel %vm4438, %v4457, %v4459
      %v4461 = vrot.slane %v3403, 1
      %v4462 = vsel %vm4438, %v4459, %v4461
      %v4463 = vrot.slane %v3409, 1
      %v4464 = vsel %vm4438, %v4461, %v4463
      %v4465 = vrot.slane %v3415, 1
      %v4466 = vsel %vm4438, %v4463, %v4465
      %v4467 = vrot.slane %v3421, 1
      %v4468 = vsel %vm4438, %v4465, %v4467
      %v4469 = vrot.slane %v3427, 1
      %v4470 = vsel %vm4438, %v4467, %v4469
      %v4471 = vrot.slane %v3433, 1
      %v4472 = vsel %vm4438, %v4469, %v4471
      %v4473 = vrot.slane %v3439, 1
      %v4474 = vsel %vm4438, %v4471, %v4473
      %v4475 = vrot.slane %v3445, 1
      %v4476 = vsel %vm4438, %v4473, %v4475
      %v4477 = vrot.slane %v3451, 1
      %v4478 = vsel %vm4438, %v4475, %v4477
      %v4479 = vrot.slane %v3457, 1
      %v4480 = vsel %vm4438, %v4477, %v4479
      %v4481 = vrot.slane %v3463, 1
      %v4482 = vsel %vm4438, %v4479, %v4481
      %v4483 = vrot.slane %v3469, 1
      %v4484 = vsel %vm4438, %v4481, %v4483
      %v4485 = vrot.slane %v3475, 1
      %v4486 = vsel %vm4438, %v4483, %v4485
      %v4487 = vrot.slane %v3481, 1
      %v4488 = vsel %vm4438, %v4485, %v4487
      %v4489 = vrot.slane %v3487, 1
      %v4490 = vsel %vm4438, %v4487, %v4489
      %v4491 = vrot.slane %v3493, 1
      %v4492 = vsel %vm4438, %v4489, %v4491
      %v4493 = vrot.slane %v3499, 1
      %v4494 = vsel %vm4438, %v4491, %v4493
      %v4495 = vrot.slane %v3505, 1
      %v4496 = vsel %vm4438, %v4493, %v4495
      %v4497 = vrot.slane %v3511, 1
      %v4498 = vsel %vm4438, %v4495, %v4497
      %v4499 = vrot.slane %v3517, 1
      %v4500 = vsel %vm4438, %v4497, %v4499
      %v4501 = vrot.slane %v3523, 1
      %v4502 = vsel %vm4438, %v4499, %v4501
      %v4503 = vsel %vm4438, %v4501, %v4439
      %v4535 = vsel %vm4438, %v4440, %v4444
      %4536 = vset.pattern.permute.xlu0 2
      %4537 = vperm.xlu0 %4536, %v3894
      %v4538 = vpop.permute.xlu0 %4537
      %4540 = vset.pattern.permute.xlu0 2
      %4541 = vperm.xlu0 %4540, %v3895
      %v4542 = vpop.permute.xlu0 %4541
      %4544 = vset.pattern.permute.xlu0 2
      %4545 = vperm.xlu0 %4544, %v3896
      %v4546 = vpop.permute.xlu0 %4545
      %4548 = vset.pattern.permute.xlu0 2
      %4549 = vperm.xlu0 %4548, %v3897
      %v4550 = vpop.permute.xlu0 %4549
      %4552 = vset.pattern.permute.xlu0 2
      %4553 = vperm.xlu0 %4552, %v3898
      %v4554 = vpop.permute.xlu0 %4553
      %4556 = vset.pattern.permute.xlu0 2
      %4557 = vperm.xlu0 %4556, %v3899
      %v4558 = vpop.permute.xlu0 %4557
      %4560 = vset.pattern.permute.xlu0 2
      %4561 = vperm.xlu0 %4560, %v3900
      %v4562 = vpop.permute.xlu0 %4561
      %4564 = vset.pattern.permute.xlu0 2
      %4565 = vperm.xlu0 %4564, %v3901
      %v4566 = vpop.permute.xlu0 %4565
      %4568 = vset.pattern.permute.xlu0 2
      %4569 = vperm.xlu0 %4568, %v3902
      %v4570 = vpop.permute.xlu0 %4569
      %4572 = vset.pattern.permute.xlu0 2
      %4573 = vperm.xlu0 %4572, %v3903
      %v4574 = vpop.permute.xlu0 %4573
      %4576 = vset.pattern.permute.xlu0 2
      %4577 = vperm.xlu0 %4576, %v3904
      %v4578 = vpop.permute.xlu0 %4577
      %4580 = vset.pattern.permute.xlu0 2
      %4581 = vperm.xlu0 %4580, %v3905
      %v4582 = vpop.permute.xlu0 %4581
      %4584 = vset.pattern.permute.xlu0 2
      %4585 = vperm.xlu0 %4584, %v3906
      %v4586 = vpop.permute.xlu0 %4585
      %4588 = vset.pattern.permute.xlu0 2
      %4589 = vperm.xlu0 %4588, %v3907
      %v4590 = vpop.permute.xlu0 %4589
      %4592 = vset.pattern.permute.xlu0 2
      %4593 = vperm.xlu0 %4592, %v3908
      %v4594 = vpop.permute.xlu0 %4593
      %4596 = vset.pattern.permute.xlu0 2
      %4597 = vperm.xlu0 %4596, %v3909
      %v4598 = vpop.permute.xlu0 %4597
      %4600 = vset.pattern.permute.xlu0 2
      %4601 = vperm.xlu0 %4600, %v3910
      %v4602 = vpop.permute.xlu0 %4601
      %4604 = vset.pattern.permute.xlu0 2
      %4605 = vperm.xlu0 %4604, %v3911
      %v4606 = vpop.permute.xlu0 %4605
      %4608 = vset.pattern.permute.xlu0 2
      %4609 = vperm.xlu0 %4608, %v3912
      %v4610 = vpop.permute.xlu0 %4609
      %4612 = vset.pattern.permute.xlu0 2
      %4613 = vperm.xlu0 %4612, %v3913
      %v4614 = vpop.permute.xlu0 %4613
      %4616 = vset.pattern.permute.xlu0 2
      %4617 = vperm.xlu0 %4616, %v3914
      %v4618 = vpop.permute.xlu0 %4617
      %4620 = vset.pattern.permute.xlu0 2
      %4621 = vperm.xlu0 %4620, %v3915
      %v4622 = vpop.permute.xlu0 %4621
      %4624 = vset.pattern.permute.xlu0 2
      %4625 = vperm.xlu0 %4624, %v3916
      %v4626 = vpop.permute.xlu0 %4625
      %4628 = vset.pattern.permute.xlu0 2
      %4629 = vperm.xlu0 %4628, %v3917
      %v4630 = vpop.permute.xlu0 %4629
      %4632 = vset.pattern.permute.xlu0 2
      %4633 = vperm.xlu0 %4632, %v3918
      %v4634 = vpop.permute.xlu0 %4633
      %4636 = vset.pattern.permute.xlu0 2
      %4637 = vperm.xlu0 %4636, %v3919
      %v4638 = vpop.permute.xlu0 %4637
      %4640 = vset.pattern.permute.xlu0 2
      %4641 = vperm.xlu0 %4640, %v3920
      %v4642 = vpop.permute.xlu0 %4641
      %4644 = vset.pattern.permute.xlu0 2
      %4645 = vperm.xlu0 %4644, %v3921
      %v4646 = vpop.permute.xlu0 %4645
      %4648 = vset.pattern.permute.xlu0 2
      %4649 = vperm.xlu0 %4648, %v3922
      %v4650 = vpop.permute.xlu0 %4649
      %4652 = vset.pattern.permute.xlu0 2
      %4653 = vperm.xlu0 %4652, %v3923
      %v4654 = vpop.permute.xlu0 %4653
      %4656 = vset.pattern.permute.xlu0 2
      %4657 = vperm.xlu0 %4656, %v3924
      %v4658 = vpop.permute.xlu0 %4657
      %4660 = vset.pattern.permute.xlu0 2
      %4661 = vperm.xlu0 %4660, %v3925
      %v4662 = vpop.permute.xlu0 %4661
      %v4664 = vmul.f32 %v4441, %v4538
      %v4665 = vmul.f32 %v4535, %v4542
      %v4666 = vmul.f32 %v4446, %v4546
      %v4667 = vmul.f32 %v4448, %v4550
      %v4668 = vmul.f32 %v4450, %v4554
      %v4669 = vmul.f32 %v4452, %v4558
      %v4670 = vmul.f32 %v4454, %v4562
      %v4671 = vmul.f32 %v4456, %v4566
      %v4672 = vmul.f32 %v4458, %v4570
      %v4673 = vmul.f32 %v4460, %v4574
      %v4674 = vmul.f32 %v4462, %v4578
      %v4675 = vmul.f32 %v4464, %v4582
      %v4676 = vmul.f32 %v4466, %v4586
      %v4677 = vmul.f32 %v4468, %v4590
      %v4678 = vmul.f32 %v4470, %v4594
      %v4679 = vmul.f32 %v4472, %v4598
      %v4680 = vmul.f32 %v4474, %v4602
      %v4681 = vmul.f32 %v4476, %v4606
      %v4682 = vmul.f32 %v4478, %v4610
      %v4683 = vmul.f32 %v4480, %v4614
      %v4684 = vmul.f32 %v4482, %v4618
      %v4685 = vmul.f32 %v4484, %v4622
      %v4686 = vmul.f32 %v4486, %v4626
      %v4687 = vmul.f32 %v4488, %v4630
      %v4688 = vmul.f32 %v4490, %v4634
      %v4689 = vmul.f32 %v4492, %v4638
      %v4690 = vmul.f32 %v4494, %v4642
      %v4691 = vmul.f32 %v4496, %v4646
      %v4692 = vmul.f32 %v4498, %v4650
      %v4693 = vmul.f32 %v4500, %v4654
      %v4694 = vmul.f32 %v4502, %v4658
      %v4695 = vmul.f32 %v4503, %v4662
      %4728 = vrot.lane.b32.xlu0 %v4664, 64
      %v4729 = vpop.permute.xlu0 %4728
      %4730 = vrot.lane.b32.xlu0 %v4665, 64
      %v4731 = vpop.permute.xlu0 %4730
      %4732 = vrot.lane.b32.xlu0 %v4666, 64
      %v4733 = vpop.permute.xlu0 %4732
      %4734 = vrot.lane.b32.xlu0 %v4667, 64
      %v4735 = vpop.permute.xlu0 %4734
      %4736 = vrot.lane.b32.xlu0 %v4668, 64
      %v4737 = vpop.permute.xlu0 %4736
      %4738 = vrot.lane.b32.xlu0 %v4669, 64
      %v4739 = vpop.permute.xlu0 %4738
      %4740 = vrot.lane.b32.xlu0 %v4670, 64
      %v4741 = vpop.permute.xlu0 %4740
      %4742 = vrot.lane.b32.xlu0 %v4671, 64
      %v4743 = vpop.permute.xlu0 %4742
      %4744 = vrot.lane.b32.xlu0 %v4672, 64
      %v4745 = vpop.permute.xlu0 %4744
      %4746 = vrot.lane.b32.xlu0 %v4673, 64
      %v4747 = vpop.permute.xlu0 %4746
      %4748 = vrot.lane.b32.xlu0 %v4674, 64
      %v4749 = vpop.permute.xlu0 %4748
      %4750 = vrot.lane.b32.xlu0 %v4675, 64
      %v4751 = vpop.permute.xlu0 %4750
      %4752 = vrot.lane.b32.xlu0 %v4676, 64
      %v4753 = vpop.permute.xlu0 %4752
      %4754 = vrot.lane.b32.xlu0 %v4677, 64
      %v4755 = vpop.permute.xlu0 %4754
      %4756 = vrot.lane.b32.xlu0 %v4678, 64
      %v4757 = vpop.permute.xlu0 %4756
      %4758 = vrot.lane.b32.xlu0 %v4679, 64
      %v4759 = vpop.permute.xlu0 %4758
      %4760 = vrot.lane.b32.xlu0 %v4680, 64
      %v4761 = vpop.permute.xlu0 %4760
      %4762 = vrot.lane.b32.xlu0 %v4681, 64
      %v4763 = vpop.permute.xlu0 %4762
      %4764 = vrot.lane.b32.xlu0 %v4682, 64
      %v4765 = vpop.permute.xlu0 %4764
      %4766 = vrot.lane.b32.xlu0 %v4683, 64
      %v4767 = vpop.permute.xlu0 %4766
      %4768 = vrot.lane.b32.xlu0 %v4684, 64
      %v4769 = vpop.permute.xlu0 %4768
      %4770 = vrot.lane.b32.xlu0 %v4685, 64
      %v4771 = vpop.permute.xlu0 %4770
      %4772 = vrot.lane.b32.xlu0 %v4686, 64
      %v4773 = vpop.permute.xlu0 %4772
      %4774 = vrot.lane.b32.xlu0 %v4687, 64
      %v4775 = vpop.permute.xlu0 %4774
      %4776 = vrot.lane.b32.xlu0 %v4688, 64
      %v4777 = vpop.permute.xlu0 %4776
      %4778 = vrot.lane.b32.xlu0 %v4689, 64
      %v4779 = vpop.permute.xlu0 %4778
      %4780 = vrot.lane.b32.xlu0 %v4690, 64
      %v4781 = vpop.permute.xlu0 %4780
      %4782 = vrot.lane.b32.xlu0 %v4691, 64
      %v4783 = vpop.permute.xlu0 %4782
      %4784 = vrot.lane.b32.xlu0 %v4692, 64
      %v4785 = vpop.permute.xlu0 %4784
      %4786 = vrot.lane.b32.xlu0 %v4693, 64
      %v4787 = vpop.permute.xlu0 %4786
      %4788 = vrot.lane.b32.xlu0 %v4694, 64
      %v4789 = vpop.permute.xlu0 %4788
      %4790 = vrot.lane.b32.xlu0 %v4695, 64
      %v4791 = vpop.permute.xlu0 %4790
      %v4824 = vadd.f32 %v4406, %v4729
      %v4825 = vadd.f32 %v4407, %v4731
      %v4826 = vadd.f32 %v4408, %v4733
      %v4827 = vadd.f32 %v4409, %v4735
      %v4828 = vadd.f32 %v4410, %v4737
      %v4829 = vadd.f32 %v4411, %v4739
      %v4830 = vadd.f32 %v4412, %v4741
      %v4831 = vadd.f32 %v4413, %v4743
      %v4832 = vadd.f32 %v4414, %v4745
      %v4833 = vadd.f32 %v4415, %v4747
      %v4834 = vadd.f32 %v4416, %v4749
      %v4835 = vadd.f32 %v4417, %v4751
      %v4836 = vadd.f32 %v4418, %v4753
      %v4837 = vadd.f32 %v4419, %v4755
      %v4838 = vadd.f32 %v4420, %v4757
      %v4839 = vadd.f32 %v4421, %v4759
      %v4840 = vadd.f32 %v4422, %v4761
      %v4841 = vadd.f32 %v4423, %v4763
      %v4842 = vadd.f32 %v4424, %v4765
      %v4843 = vadd.f32 %v4425, %v4767
      %v4844 = vadd.f32 %v4426, %v4769
      %v4845 = vadd.f32 %v4427, %v4771
      %v4846 = vadd.f32 %v4428, %v4773
      %v4847 = vadd.f32 %v4429, %v4775
      %v4848 = vadd.f32 %v4430, %v4777
      %v4849 = vadd.f32 %v4431, %v4779
      %v4850 = vadd.f32 %v4432, %v4781
      %v4851 = vadd.f32 %v4433, %v4783
      %v4852 = vadd.f32 %v4434, %v4785
      %v4853 = vadd.f32 %v4435, %v4787
      %v4854 = vadd.f32 %v4436, %v4789
      %v4855 = vadd.f32 %v4437, %v4791
      %4856 = vset.pattern.permute.xlu0 3
      %4857 = vperm.xlu0 %4856, %v3894
      %v4858 = vpop.permute.xlu0 %4857
      %4860 = vset.pattern.permute.xlu0 3
      %4861 = vperm.xlu0 %4860, %v3895
      %v4862 = vpop.permute.xlu0 %4861
      %4864 = vset.pattern.permute.xlu0 3
      %4865 = vperm.xlu0 %4864, %v3896
      %v4866 = vpop.permute.xlu0 %4865
      %4868 = vset.pattern.permute.xlu0 3
      %4869 = vperm.xlu0 %4868, %v3897
      %v4870 = vpop.permute.xlu0 %4869
      %4872 = vset.pattern.permute.xlu0 3
      %4873 = vperm.xlu0 %4872, %v3898
      %v4874 = vpop.permute.xlu0 %4873
      %4876 = vset.pattern.permute.xlu0 3
      %4877 = vperm.xlu0 %4876, %v3899
      %v4878 = vpop.permute.xlu0 %4877
      %4880 = vset.pattern.permute.xlu0 3
      %4881 = vperm.xlu0 %4880, %v3900
      %v4882 = vpop.permute.xlu0 %4881
      %4884 = vset.pattern.permute.xlu0 3
      %4885 = vperm.xlu0 %4884, %v3901
      %v4886 = vpop.permute.xlu0 %4885
      %4888 = vset.pattern.permute.xlu0 3
      %4889 = vperm.xlu0 %4888, %v3902
      %v4890 = vpop.permute.xlu0 %4889
      %4892 = vset.pattern.permute.xlu0 3
      %4893 = vperm.xlu0 %4892, %v3903
      %v4894 = vpop.permute.xlu0 %4893
      %4896 = vset.pattern.permute.xlu0 3
      %4897 = vperm.xlu0 %4896, %v3904
      %v4898 = vpop.permute.xlu0 %4897
      %4900 = vset.pattern.permute.xlu0 3
      %4901 = vperm.xlu0 %4900, %v3905
      %v4902 = vpop.permute.xlu0 %4901
      %4904 = vset.pattern.permute.xlu0 3
      %4905 = vperm.xlu0 %4904, %v3906
      %v4906 = vpop.permute.xlu0 %4905
      %4908 = vset.pattern.permute.xlu0 3
      %4909 = vperm.xlu0 %4908, %v3907
      %v4910 = vpop.permute.xlu0 %4909
      %4912 = vset.pattern.permute.xlu0 3
      %4913 = vperm.xlu0 %4912, %v3908
      %v4914 = vpop.permute.xlu0 %4913
      %4916 = vset.pattern.permute.xlu0 3
      %4917 = vperm.xlu0 %4916, %v3909
      %v4918 = vpop.permute.xlu0 %4917
      %4920 = vset.pattern.permute.xlu0 3
      %4921 = vperm.xlu0 %4920, %v3910
      %v4922 = vpop.permute.xlu0 %4921
      %4924 = vset.pattern.permute.xlu0 3
      %4925 = vperm.xlu0 %4924, %v3911
      %v4926 = vpop.permute.xlu0 %4925
      %4928 = vset.pattern.permute.xlu0 3
      %4929 = vperm.xlu0 %4928, %v3912
      %v4930 = vpop.permute.xlu0 %4929
      %4932 = vset.pattern.permute.xlu0 3
      %4933 = vperm.xlu0 %4932, %v3913
      %v4934 = vpop.permute.xlu0 %4933
      %4936 = vset.pattern.permute.xlu0 3
      %4937 = vperm.xlu0 %4936, %v3914
      %v4938 = vpop.permute.xlu0 %4937
      %4940 = vset.pattern.permute.xlu0 3
      %4941 = vperm.xlu0 %4940, %v3915
      %v4942 = vpop.permute.xlu0 %4941
      %4944 = vset.pattern.permute.xlu0 3
      %4945 = vperm.xlu0 %4944, %v3916
      %v4946 = vpop.permute.xlu0 %4945
      %4948 = vset.pattern.permute.xlu0 3
      %4949 = vperm.xlu0 %4948, %v3917
      %v4950 = vpop.permute.xlu0 %4949
      %4952 = vset.pattern.permute.xlu0 3
      %4953 = vperm.xlu0 %4952, %v3918
      %v4954 = vpop.permute.xlu0 %4953
      %4956 = vset.pattern.permute.xlu0 3
      %4957 = vperm.xlu0 %4956, %v3919
      %v4958 = vpop.permute.xlu0 %4957
      %4960 = vset.pattern.permute.xlu0 3
      %4961 = vperm.xlu0 %4960, %v3920
      %v4962 = vpop.permute.xlu0 %4961
      %4964 = vset.pattern.permute.xlu0 3
      %4965 = vperm.xlu0 %4964, %v3921
      %v4966 = vpop.permute.xlu0 %4965
      %4968 = vset.pattern.permute.xlu0 3
      %4969 = vperm.xlu0 %4968, %v3922
      %v4970 = vpop.permute.xlu0 %4969
      %4972 = vset.pattern.permute.xlu0 3
      %4973 = vperm.xlu0 %4972, %v3923
      %v4974 = vpop.permute.xlu0 %4973
      %4976 = vset.pattern.permute.xlu0 3
      %4977 = vperm.xlu0 %4976, %v3924
      %v4978 = vpop.permute.xlu0 %4977
      %4980 = vset.pattern.permute.xlu0 3
      %4981 = vperm.xlu0 %4980, %v3925
      %v4982 = vpop.permute.xlu0 %4981
      %v4984 = vmul.f32 %v3893, %v4858
      %v4985 = vmul.f32 %v3807, %v4862
      %v4986 = vmul.f32 %v3809, %v4866
      %v4987 = vmul.f32 %v3811, %v4870
      %v4988 = vmul.f32 %v3813, %v4874
      %v4989 = vmul.f32 %v3815, %v4878
      %v4990 = vmul.f32 %v3817, %v4882
      %v4991 = vmul.f32 %v3819, %v4886
      %v4992 = vmul.f32 %v3821, %v4890
      %v4993 = vmul.f32 %v3823, %v4894
      %v4994 = vmul.f32 %v3825, %v4898
      %v4995 = vmul.f32 %v3827, %v4902
      %v4996 = vmul.f32 %v3829, %v4906
      %v4997 = vmul.f32 %v3831, %v4910
      %v4998 = vmul.f32 %v3833, %v4914
      %v4999 = vmul.f32 %v3835, %v4918
      %v5000 = vmul.f32 %v3837, %v4922
      %v5001 = vmul.f32 %v3839, %v4926
      %v5002 = vmul.f32 %v3841, %v4930
      %v5003 = vmul.f32 %v3843, %v4934
      %v5004 = vmul.f32 %v3845, %v4938
      %v5005 = vmul.f32 %v3847, %v4942
      %v5006 = vmul.f32 %v3849, %v4946
      %v5007 = vmul.f32 %v3851, %v4950
      %v5008 = vmul.f32 %v3853, %v4954
      %v5009 = vmul.f32 %v3855, %v4958
      %v5010 = vmul.f32 %v3857, %v4962
      %v5011 = vmul.f32 %v3859, %v4966
      %v5012 = vmul.f32 %v3861, %v4970
      %v5013 = vmul.f32 %v3862, %v4974
      %v5014 = vmul.f32 %v3770, %v4978
      %v5015 = vmul.f32 %v3772, %v4982
      %5048 = vrot.lane.b32.xlu0 %v4984, 32
      %v5049 = vpop.permute.xlu0 %5048
      %5050 = vrot.lane.b32.xlu0 %v4985, 32
      %v5051 = vpop.permute.xlu0 %5050
      %5052 = vrot.lane.b32.xlu0 %v4986, 32
      %v5053 = vpop.permute.xlu0 %5052
      %5054 = vrot.lane.b32.xlu0 %v4987, 32
      %v5055 = vpop.permute.xlu0 %5054
      %5056 = vrot.lane.b32.xlu0 %v4988, 32
      %v5057 = vpop.permute.xlu0 %5056
      %5058 = vrot.lane.b32.xlu0 %v4989, 32
      %v5059 = vpop.permute.xlu0 %5058
      %5060 = vrot.lane.b32.xlu0 %v4990, 32
      %v5061 = vpop.permute.xlu0 %5060
      %5062 = vrot.lane.b32.xlu0 %v4991, 32
      %v5063 = vpop.permute.xlu0 %5062
      %5064 = vrot.lane.b32.xlu0 %v4992, 32
      %v5065 = vpop.permute.xlu0 %5064
      %5066 = vrot.lane.b32.xlu0 %v4993, 32
      %v5067 = vpop.permute.xlu0 %5066
      %5068 = vrot.lane.b32.xlu0 %v4994, 32
      %v5069 = vpop.permute.xlu0 %5068
      %5070 = vrot.lane.b32.xlu0 %v4995, 32
      %v5071 = vpop.permute.xlu0 %5070
      %5072 = vrot.lane.b32.xlu0 %v4996, 32
      %v5073 = vpop.permute.xlu0 %5072
      %5074 = vrot.lane.b32.xlu0 %v4997, 32
      %v5075 = vpop.permute.xlu0 %5074
      %5076 = vrot.lane.b32.xlu0 %v4998, 32
      %v5077 = vpop.permute.xlu0 %5076
      %5078 = vrot.lane.b32.xlu0 %v4999, 32
      %v5079 = vpop.permute.xlu0 %5078
      %5080 = vrot.lane.b32.xlu0 %v5000, 32
      %v5081 = vpop.permute.xlu0 %5080
      %5082 = vrot.lane.b32.xlu0 %v5001, 32
      %v5083 = vpop.permute.xlu0 %5082
      %5084 = vrot.lane.b32.xlu0 %v5002, 32
      %v5085 = vpop.permute.xlu0 %5084
      %5086 = vrot.lane.b32.xlu0 %v5003, 32
      %v5087 = vpop.permute.xlu0 %5086
      %5088 = vrot.lane.b32.xlu0 %v5004, 32
      %v5089 = vpop.permute.xlu0 %5088
      %5090 = vrot.lane.b32.xlu0 %v5005, 32
      %v5091 = vpop.permute.xlu0 %5090
      %5092 = vrot.lane.b32.xlu0 %v5006, 32
      %v5093 = vpop.permute.xlu0 %5092
      %5094 = vrot.lane.b32.xlu0 %v5007, 32
      %v5095 = vpop.permute.xlu0 %5094
      %5096 = vrot.lane.b32.xlu0 %v5008, 32
      %v5097 = vpop.permute.xlu0 %5096
      %5098 = vrot.lane.b32.xlu0 %v5009, 32
      %v5099 = vpop.permute.xlu0 %5098
      %5100 = vrot.lane.b32.xlu0 %v5010, 32
      %v5101 = vpop.permute.xlu0 %5100
      %5102 = vrot.lane.b32.xlu0 %v5011, 32
      %v5103 = vpop.permute.xlu0 %5102
      %5104 = vrot.lane.b32.xlu0 %v5012, 32
      %v5105 = vpop.permute.xlu0 %5104
      %5106 = vrot.lane.b32.xlu0 %v5013, 32
      %v5107 = vpop.permute.xlu0 %5106
      %5108 = vrot.lane.b32.xlu0 %v5014, 32
      %v5109 = vpop.permute.xlu0 %5108
      %5110 = vrot.lane.b32.xlu0 %v5015, 32
      %v5111 = vpop.permute.xlu0 %5110
      %v5144 = vadd.f32 %v4824, %v5049
      %v5145 = vadd.f32 %v4825, %v5051
      %v5146 = vadd.f32 %v4826, %v5053
      %v5147 = vadd.f32 %v4827, %v5055
      %v5148 = vadd.f32 %v4828, %v5057
      %v5149 = vadd.f32 %v4829, %v5059
      %v5150 = vadd.f32 %v4830, %v5061
      %v5151 = vadd.f32 %v4831, %v5063
      %v5152 = vadd.f32 %v4832, %v5065
      %v5153 = vadd.f32 %v4833, %v5067
      %v5154 = vadd.f32 %v4834, %v5069
      %v5155 = vadd.f32 %v4835, %v5071
      %v5156 = vadd.f32 %v4836, %v5073
      %v5157 = vadd.f32 %v4837, %v5075
      %v5158 = vadd.f32 %v4838, %v5077
      %v5159 = vadd.f32 %v4839, %v5079
      %v5160 = vadd.f32 %v4840, %v5081
      %v5161 = vadd.f32 %v4841, %v5083
      %v5162 = vadd.f32 %v4842, %v5085
      %v5163 = vadd.f32 %v4843, %v5087
      %v5164 = vadd.f32 %v4844, %v5089
      %v5165 = vadd.f32 %v4845, %v5091
      %v5166 = vadd.f32 %v4846, %v5093
      %v5167 = vadd.f32 %v4847, %v5095
      %v5168 = vadd.f32 %v4848, %v5097
      %v5169 = vadd.f32 %v4849, %v5099
      %v5170 = vadd.f32 %v4850, %v5101
      %v5171 = vadd.f32 %v4851, %v5103
      %v5172 = vadd.f32 %v4852, %v5105
      %v5173 = vadd.f32 %v4853, %v5107
      %v5174 = vadd.f32 %v4854, %v5109
      %v5175 = vadd.f32 %v4855, %v5111
      %v5176 = vadd.f32 %v5144, %v3351
      %v5177 = vadd.f32 %v5145, %v3357
      %v5178 = vadd.f32 %v5146, %v3363
      %v5179 = vadd.f32 %v5147, %v3369
      %v5180 = vadd.f32 %v5148, %v3375
      %v5181 = vadd.f32 %v5149, %v3381
      %v5182 = vadd.f32 %v5150, %v3387
      %v5183 = vadd.f32 %v5151, %v3393
      %v5184 = vadd.f32 %v5152, %v3399
      %v5185 = vadd.f32 %v5153, %v3405
      %v5186 = vadd.f32 %v5154, %v3411
      %v5187 = vadd.f32 %v5155, %v3417
      %v5188 = vadd.f32 %v5156, %v3423
      %v5189 = vadd.f32 %v5157, %v3429
      %v5190 = vadd.f32 %v5158, %v3435
      %v5191 = vadd.f32 %v5159, %v3441
      %v5192 = vadd.f32 %v5160, %v3447
      %v5193 = vadd.f32 %v5161, %v3453
      %v5194 = vadd.f32 %v5162, %v3459
      %v5195 = vadd.f32 %v5163, %v3465
      %v5196 = vadd.f32 %v5164, %v3471
      %v5197 = vadd.f32 %v5165, %v3477
      %v5198 = vadd.f32 %v5166, %v3483
      %v5199 = vadd.f32 %v5167, %v3489
      %v5200 = vadd.f32 %v5168, %v3495
      %v5201 = vadd.f32 %v5169, %v3501
      %v5202 = vadd.f32 %v5170, %v3507
      %v5203 = vadd.f32 %v5171, %v3513
      %v5204 = vadd.f32 %v5172, %v3519
      %v5205 = vadd.f32 %v5173, %v3525
      %v5206 = vadd.f32 %v5174, %v3531
      %v5207 = vadd.f32 %v5175, %v3537
      %v5240 = vrot.slane %v3351, 1
      %v5241 = vrot.slane %v3357, 1
      %v5242 = vsel %vm4438, %v5240, %v5241
      %v5243 = vrot.slane %v3363, 1
      %v5244 = vsel %vm4438, %v5241, %v5243
      %v5245 = vrot.slane %v3369, 1
      %v5246 = vsel %vm4438, %v5243, %v5245
      %v5247 = vrot.slane %v3375, 1
      %v5248 = vsel %vm4438, %v5245, %v5247
      %v5249 = vrot.slane %v3381, 1
      %v5250 = vsel %vm4438, %v5247, %v5249
      %v5251 = vrot.slane %v3387, 1
      %v5252 = vsel %vm4438, %v5249, %v5251
      %v5253 = vrot.slane %v3393, 1
      %v5254 = vsel %vm4438, %v5251, %v5253
      %v5255 = vrot.slane %v3399, 1
      %v5256 = vsel %vm4438, %v5253, %v5255
      %v5257 = vrot.slane %v3405, 1
      %v5258 = vsel %vm4438, %v5255, %v5257
      %v5259 = vrot.slane %v3411, 1
      %v5260 = vsel %vm4438, %v5257, %v5259
      %v5261 = vrot.slane %v3417, 1
      %v5262 = vsel %vm4438, %v5259, %v5261
      %v5263 = vrot.slane %v3423, 1
      %v5264 = vsel %vm4438, %v5261, %v5263
      %v5265 = vrot.slane %v3429, 1
      %v5266 = vsel %vm4438, %v5263, %v5265
      %v5267 = vrot.slane %v3435, 1
      %v5268 = vsel %vm4438, %v5265, %v5267
      %v5269 = vrot.slane %v3441, 1
      %v5270 = vsel %vm4438, %v5267, %v5269
      %v5271 = vrot.slane %v3447, 1
      %v5272 = vsel %vm4438, %v5269, %v5271
      %v5273 = vrot.slane %v3453, 1
      %v5274 = vsel %vm4438, %v5271, %v5273
      %v5275 = vrot.slane %v3459, 1
      %v5276 = vsel %vm4438, %v5273, %v5275
      %v5277 = vrot.slane %v3465, 1
      %v5278 = vsel %vm4438, %v5275, %v5277
      %v5279 = vrot.slane %v3471, 1
      %v5280 = vsel %vm4438, %v5277, %v5279
      %v5281 = vrot.slane %v3477, 1
      %v5282 = vsel %vm4438, %v5279, %v5281
      %v5283 = vrot.slane %v3483, 1
      %v5284 = vsel %vm4438, %v5281, %v5283
      %v5285 = vrot.slane %v3489, 1
      %v5286 = vsel %vm4438, %v5283, %v5285
      %v5287 = vrot.slane %v3495, 1
      %v5288 = vsel %vm4438, %v5285, %v5287
      %v5289 = vrot.slane %v3501, 1
      %v5290 = vsel %vm4438, %v5287, %v5289
      %v5291 = vrot.slane %v3507, 1
      %v5292 = vsel %vm4438, %v5289, %v5291
      %v5293 = vrot.slane %v3513, 1
      %v5294 = vsel %vm4438, %v5291, %v5293
      %v5295 = vrot.slane %v3519, 1
      %v5296 = vsel %vm4438, %v5293, %v5295
      %v5297 = vrot.slane %v3525, 1
      %v5298 = vsel %vm4438, %v5295, %v5297
      %v5299 = vrot.slane %v3531, 1
      %v5300 = vsel %vm4438, %v5297, %v5299
      %v5301 = vrot.slane %v3537, 1
      %v5302 = vsel %vm4438, %v5299, %v5301
      %v5336 = vsel %vm4438, %v5301, %v5240
      %5337 = vset.pattern.permute.xlu0 5
      %5338 = vperm.xlu0 %5337, %v3894
      %v5339 = vpop.permute.xlu0 %5338
      %5341 = vset.pattern.permute.xlu0 5
      %5342 = vperm.xlu0 %5341, %v3895
      %v5343 = vpop.permute.xlu0 %5342
      %5345 = vset.pattern.permute.xlu0 5
      %5346 = vperm.xlu0 %5345, %v3896
      %v5347 = vpop.permute.xlu0 %5346
      %5349 = vset.pattern.permute.xlu0 5
      %5350 = vperm.xlu0 %5349, %v3897
      %v5351 = vpop.permute.xlu0 %5350
      %5353 = vset.pattern.permute.xlu0 5
      %5354 = vperm.xlu0 %5353, %v3898
      %v5355 = vpop.permute.xlu0 %5354
      %5357 = vset.pattern.permute.xlu0 5
      %5358 = vperm.xlu0 %5357, %v3899
      %v5359 = vpop.permute.xlu0 %5358
      %5361 = vset.pattern.permute.xlu0 5
      %5362 = vperm.xlu0 %5361, %v3900
      %v5363 = vpop.permute.xlu0 %5362
      %5365 = vset.pattern.permute.xlu0 5
      %5366 = vperm.xlu0 %5365, %v3901
      %v5367 = vpop.permute.xlu0 %5366
      %5369 = vset.pattern.permute.xlu0 5
      %5370 = vperm.xlu0 %5369, %v3902
      %v5371 = vpop.permute.xlu0 %5370
      %5373 = vset.pattern.permute.xlu0 5
      %5374 = vperm.xlu0 %5373, %v3903
      %v5375 = vpop.permute.xlu0 %5374
      %5377 = vset.pattern.permute.xlu0 5
      %5378 = vperm.xlu0 %5377, %v3904
      %v5379 = vpop.permute.xlu0 %5378
      %5381 = vset.pattern.permute.xlu0 5
      %5382 = vperm.xlu0 %5381, %v3905
      %v5383 = vpop.permute.xlu0 %5382
      %5385 = vset.pattern.permute.xlu0 5
      %5386 = vperm.xlu0 %5385, %v3906
      %v5387 = vpop.permute.xlu0 %5386
      %5389 = vset.pattern.permute.xlu0 5
      %5390 = vperm.xlu0 %5389, %v3907
      %v5391 = vpop.permute.xlu0 %5390
      %5393 = vset.pattern.permute.xlu0 5
      %5394 = vperm.xlu0 %5393, %v3908
      %v5395 = vpop.permute.xlu0 %5394
      %5397 = vset.pattern.permute.xlu0 5
      %5398 = vperm.xlu0 %5397, %v3909
      %v5399 = vpop.permute.xlu0 %5398
      %5401 = vset.pattern.permute.xlu0 5
      %5402 = vperm.xlu0 %5401, %v3910
      %v5403 = vpop.permute.xlu0 %5402
      %5405 = vset.pattern.permute.xlu0 5
      %5406 = vperm.xlu0 %5405, %v3911
      %v5407 = vpop.permute.xlu0 %5406
      %5409 = vset.pattern.permute.xlu0 5
      %5410 = vperm.xlu0 %5409, %v3912
      %v5411 = vpop.permute.xlu0 %5410
      %5413 = vset.pattern.permute.xlu0 5
      %5414 = vperm.xlu0 %5413, %v3913
      %v5415 = vpop.permute.xlu0 %5414
      %5417 = vset.pattern.permute.xlu0 5
      %5418 = vperm.xlu0 %5417, %v3914
      %v5419 = vpop.permute.xlu0 %5418
      %5421 = vset.pattern.permute.xlu0 5
      %5422 = vperm.xlu0 %5421, %v3915
      %v5423 = vpop.permute.xlu0 %5422
      %5425 = vset.pattern.permute.xlu0 5
      %5426 = vperm.xlu0 %5425, %v3916
      %v5427 = vpop.permute.xlu0 %5426
      %5429 = vset.pattern.permute.xlu0 5
      %5430 = vperm.xlu0 %5429, %v3917
      %v5431 = vpop.permute.xlu0 %5430
      %5433 = vset.pattern.permute.xlu0 5
      %5434 = vperm.xlu0 %5433, %v3918
      %v5435 = vpop.permute.xlu0 %5434
      %5437 = vset.pattern.permute.xlu0 5
      %5438 = vperm.xlu0 %5437, %v3919
      %v5439 = vpop.permute.xlu0 %5438
      %5441 = vset.pattern.permute.xlu0 5
      %5442 = vperm.xlu0 %5441, %v3920
      %v5443 = vpop.permute.xlu0 %5442
      %5445 = vset.pattern.permute.xlu0 5
      %5446 = vperm.xlu0 %5445, %v3921
      %v5447 = vpop.permute.xlu0 %5446
      %5449 = vset.pattern.permute.xlu0 5
      %5450 = vperm.xlu0 %5449, %v3922
      %v5451 = vpop.permute.xlu0 %5450
      %5453 = vset.pattern.permute.xlu0 5
      %5454 = vperm.xlu0 %5453, %v3923
      %v5455 = vpop.permute.xlu0 %5454
      %5457 = vset.pattern.permute.xlu0 5
      %5458 = vperm.xlu0 %5457, %v3924
      %v5459 = vpop.permute.xlu0 %5458
      %5461 = vset.pattern.permute.xlu0 5
      %5462 = vperm.xlu0 %5461, %v3925
      %v5463 = vpop.permute.xlu0 %5462
      %v5465 = vmul.f32 %v5242, %v5339
      %v5466 = vmul.f32 %v5244, %v5343
      %v5467 = vmul.f32 %v5246, %v5347
      %v5468 = vmul.f32 %v5248, %v5351
      %v5469 = vmul.f32 %v5250, %v5355
      %v5470 = vmul.f32 %v5252, %v5359
      %v5471 = vmul.f32 %v5254, %v5363
      %v5472 = vmul.f32 %v5256, %v5367
      %v5473 = vmul.f32 %v5258, %v5371
      %v5474 = vmul.f32 %v5260, %v5375
      %v5475 = vmul.f32 %v5262, %v5379
      %v5476 = vmul.f32 %v5264, %v5383
      %v5477 = vmul.f32 %v5266, %v5387
      %v5478 = vmul.f32 %v5268, %v5391
      %v5479 = vmul.f32 %v5270, %v5395
      %v5480 = vmul.f32 %v5272, %v5399
      %v5481 = vmul.f32 %v5274, %v5403
      %v5482 = vmul.f32 %v5276, %v5407
      %v5483 = vmul.f32 %v5278, %v5411
      %v5484 = vmul.f32 %v5280, %v5415
      %v5485 = vmul.f32 %v5282, %v5419
      %v5486 = vmul.f32 %v5284, %v5423
      %v5487 = vmul.f32 %v5286, %v5427
      %v5488 = vmul.f32 %v5288, %v5431
      %v5489 = vmul.f32 %v5290, %v5435
      %v5490 = vmul.f32 %v5292, %v5439
      %v5491 = vmul.f32 %v5294, %v5443
      %v5492 = vmul.f32 %v5296, %v5447
      %v5493 = vmul.f32 %v5298, %v5451
      %v5494 = vmul.f32 %v5300, %v5455
      %v5495 = vmul.f32 %v5302, %v5459
      %v5496 = vmul.f32 %v5336, %v5463
      %5529 = vrot.lane.b32.xlu0 %v5465, 96
      %v5530 = vpop.permute.xlu0 %5529
      %5531 = vrot.lane.b32.xlu0 %v5466, 96
      %v5532 = vpop.permute.xlu0 %5531
      %5533 = vrot.lane.b32.xlu0 %v5467, 96
      %v5534 = vpop.permute.xlu0 %5533
      %5535 = vrot.lane.b32.xlu0 %v5468, 96
      %v5536 = vpop.permute.xlu0 %5535
      %5537 = vrot.lane.b32.xlu0 %v5469, 96
      %v5538 = vpop.permute.xlu0 %5537
      %5539 = vrot.lane.b32.xlu0 %v5470, 96
      %v5540 = vpop.permute.xlu0 %5539
      %5541 = vrot.lane.b32.xlu0 %v5471, 96
      %v5542 = vpop.permute.xlu0 %5541
      %5543 = vrot.lane.b32.xlu0 %v5472, 96
      %v5544 = vpop.permute.xlu0 %5543
      %5545 = vrot.lane.b32.xlu0 %v5473, 96
      %v5546 = vpop.permute.xlu0 %5545
      %5547 = vrot.lane.b32.xlu0 %v5474, 96
      %v5548 = vpop.permute.xlu0 %5547
      %5549 = vrot.lane.b32.xlu0 %v5475, 96
      %v5550 = vpop.permute.xlu0 %5549
      %5551 = vrot.lane.b32.xlu0 %v5476, 96
      %v5552 = vpop.permute.xlu0 %5551
      %5553 = vrot.lane.b32.xlu0 %v5477, 96
      %v5554 = vpop.permute.xlu0 %5553
      %5555 = vrot.lane.b32.xlu0 %v5478, 96
      %v5556 = vpop.permute.xlu0 %5555
      %5557 = vrot.lane.b32.xlu0 %v5479, 96
      %v5558 = vpop.permute.xlu0 %5557
      %5559 = vrot.lane.b32.xlu0 %v5480, 96
      %v5560 = vpop.permute.xlu0 %5559
      %5561 = vrot.lane.b32.xlu0 %v5481, 96
      %v5562 = vpop.permute.xlu0 %5561
      %5563 = vrot.lane.b32.xlu0 %v5482, 96
      %v5564 = vpop.permute.xlu0 %5563
      %5565 = vrot.lane.b32.xlu0 %v5483, 96
      %v5566 = vpop.permute.xlu0 %5565
      %5567 = vrot.lane.b32.xlu0 %v5484, 96
      %v5568 = vpop.permute.xlu0 %5567
      %5569 = vrot.lane.b32.xlu0 %v5485, 96
      %v5570 = vpop.permute.xlu0 %5569
      %5571 = vrot.lane.b32.xlu0 %v5486, 96
      %v5572 = vpop.permute.xlu0 %5571
      %5573 = vrot.lane.b32.xlu0 %v5487, 96
      %v5574 = vpop.permute.xlu0 %5573
      %5575 = vrot.lane.b32.xlu0 %v5488, 96
      %v5576 = vpop.permute.xlu0 %5575
      %5577 = vrot.lane.b32.xlu0 %v5489, 96
      %v5578 = vpop.permute.xlu0 %5577
      %5579 = vrot.lane.b32.xlu0 %v5490, 96
      %v5580 = vpop.permute.xlu0 %5579
      %5581 = vrot.lane.b32.xlu0 %v5491, 96
      %v5582 = vpop.permute.xlu0 %5581
      %5583 = vrot.lane.b32.xlu0 %v5492, 96
      %v5584 = vpop.permute.xlu0 %5583
      %5585 = vrot.lane.b32.xlu0 %v5493, 96
      %v5586 = vpop.permute.xlu0 %5585
      %5587 = vrot.lane.b32.xlu0 %v5494, 96
      %v5588 = vpop.permute.xlu0 %5587
      %5589 = vrot.lane.b32.xlu0 %v5495, 96
      %v5590 = vpop.permute.xlu0 %5589
      %5591 = vrot.lane.b32.xlu0 %v5496, 96
      %v5592 = vpop.permute.xlu0 %5591
      %v5625 = vadd.f32 %v5176, %v5530
      %v5626 = vadd.f32 %v5177, %v5532
      %v5627 = vadd.f32 %v5178, %v5534
      %v5628 = vadd.f32 %v5179, %v5536
      %v5629 = vadd.f32 %v5180, %v5538
      %v5630 = vadd.f32 %v5181, %v5540
      %v5631 = vadd.f32 %v5182, %v5542
      %v5632 = vadd.f32 %v5183, %v5544
      %v5633 = vadd.f32 %v5184, %v5546
      %v5634 = vadd.f32 %v5185, %v5548
      %v5635 = vadd.f32 %v5186, %v5550
      %v5636 = vadd.f32 %v5187, %v5552
      %v5637 = vadd.f32 %v5188, %v5554
      %v5638 = vadd.f32 %v5189, %v5556
      %v5639 = vadd.f32 %v5190, %v5558
      %v5640 = vadd.f32 %v5191, %v5560
      %v5641 = vadd.f32 %v5192, %v5562
      %v5642 = vadd.f32 %v5193, %v5564
      %v5643 = vadd.f32 %v5194, %v5566
      %v5644 = vadd.f32 %v5195, %v5568
      %v5645 = vadd.f32 %v5196, %v5570
      %v5646 = vadd.f32 %v5197, %v5572
      %v5647 = vadd.f32 %v5198, %v5574
      %v5648 = vadd.f32 %v5199, %v5576
      %v5649 = vadd.f32 %v5200, %v5578
      %v5650 = vadd.f32 %v5201, %v5580
      %v5651 = vadd.f32 %v5202, %v5582
      %v5652 = vadd.f32 %v5203, %v5584
      %v5653 = vadd.f32 %v5204, %v5586
      %v5654 = vadd.f32 %v5205, %v5588
      %v5655 = vadd.f32 %v5206, %v5590
      %v5656 = vadd.f32 %v5207, %v5592
      %v5657 = vrot.slane %v3357, 7
      %v5658 = vrot.slane %v3363, 7
      %v5659 = vsel %vm3767, %v5657, %v5658
      %v5660 = vrot.slane %v3369, 7
      %v5661 = vsel %vm3767, %v5658, %v5660
      %v5662 = vrot.slane %v3375, 7
      %v5663 = vsel %vm3767, %v5660, %v5662
      %v5664 = vrot.slane %v3381, 7
      %v5665 = vsel %vm3767, %v5662, %v5664
      %v5666 = vrot.slane %v3387, 7
      %v5667 = vsel %vm3767, %v5664, %v5666
      %v5668 = vrot.slane %v3393, 7
      %v5669 = vsel %vm3767, %v5666, %v5668
      %v5670 = vrot.slane %v3399, 7
      %v5671 = vsel %vm3767, %v5668, %v5670
      %v5672 = vrot.slane %v3405, 7
      %v5673 = vsel %vm3767, %v5670, %v5672
      %v5674 = vrot.slane %v3411, 7
      %v5675 = vsel %vm3767, %v5672, %v5674
      %v5676 = vrot.slane %v3417, 7
      %v5677 = vsel %vm3767, %v5674, %v5676
      %v5678 = vrot.slane %v3423, 7
      %v5679 = vsel %vm3767, %v5676, %v5678
      %v5680 = vrot.slane %v3429, 7
      %v5681 = vsel %vm3767, %v5678, %v5680
      %v5682 = vrot.slane %v3435, 7
      %v5683 = vsel %vm3767, %v5680, %v5682
      %v5684 = vrot.slane %v3441, 7
      %v5685 = vsel %vm3767, %v5682, %v5684
      %v5686 = vrot.slane %v3447, 7
      %v5687 = vsel %vm3767, %v5684, %v5686
      %v5688 = vrot.slane %v3453, 7
      %v5689 = vsel %vm3767, %v5686, %v5688
      %v5690 = vrot.slane %v3459, 7
      %v5691 = vsel %vm3767, %v5688, %v5690
      %v5692 = vrot.slane %v3465, 7
      %v5693 = vsel %vm3767, %v5690, %v5692
      %v5694 = vrot.slane %v3471, 7
      %v5695 = vsel %vm3767, %v5692, %v5694
      %v5696 = vrot.slane %v3477, 7
      %v5697 = vsel %vm3767, %v5694, %v5696
      %v5698 = vrot.slane %v3483, 7
      %v5699 = vsel %vm3767, %v5696, %v5698
      %v5700 = vrot.slane %v3489, 7
      %v5701 = vsel %vm3767, %v5698, %v5700
      %v5702 = vrot.slane %v3495, 7
      %v5703 = vsel %vm3767, %v5700, %v5702
      %v5704 = vrot.slane %v3501, 7
      %v5705 = vsel %vm3767, %v5702, %v5704
      %v5706 = vrot.slane %v3507, 7
      %v5707 = vsel %vm3767, %v5704, %v5706
      %v5708 = vrot.slane %v3513, 7
      %v5709 = vsel %vm3767, %v5706, %v5708
      %v5710 = vrot.slane %v3519, 7
      %v5711 = vsel %vm3767, %v5708, %v5710
      %v5712 = vrot.slane %v3525, 7
      %v5713 = vsel %vm3767, %v5710, %v5712
      %v5714 = vrot.slane %v3531, 7
      %v5715 = vsel %vm3767, %v5712, %v5714
      %v5716 = vrot.slane %v3537, 7
      %v5717 = vsel %vm3767, %v5714, %v5716
      %v5749 = vrot.slane %v3351, 7
      %v5750 = vsel %vm3767, %v5749, %v5657
      %v5753 = vsel %vm3767, %v5716, %v5749
      %5754 = vset.pattern.permute.xlu0 6
      %5755 = vperm.xlu0 %5754, %v3894
      %v5756 = vpop.permute.xlu0 %5755
      %5758 = vset.pattern.permute.xlu0 6
      %5759 = vperm.xlu0 %5758, %v3895
      %v5760 = vpop.permute.xlu0 %5759
      %5762 = vset.pattern.permute.xlu0 6
      %5763 = vperm.xlu0 %5762, %v3896
      %v5764 = vpop.permute.xlu0 %5763
      %5766 = vset.pattern.permute.xlu0 6
      %5767 = vperm.xlu0 %5766, %v3897
      %v5768 = vpop.permute.xlu0 %5767
      %5770 = vset.pattern.permute.xlu0 6
      %5771 = vperm.xlu0 %5770, %v3898
      %v5772 = vpop.permute.xlu0 %5771
      %5774 = vset.pattern.permute.xlu0 6
      %5775 = vperm.xlu0 %5774, %v3899
      %v5776 = vpop.permute.xlu0 %5775
      %5778 = vset.pattern.permute.xlu0 6
      %5779 = vperm.xlu0 %5778, %v3900
      %v5780 = vpop.permute.xlu0 %5779
      %5782 = vset.pattern.permute.xlu0 6
      %5783 = vperm.xlu0 %5782, %v3901
      %v5784 = vpop.permute.xlu0 %5783
      %5786 = vset.pattern.permute.xlu0 6
      %5787 = vperm.xlu0 %5786, %v3902
      %v5788 = vpop.permute.xlu0 %5787
      %5790 = vset.pattern.permute.xlu0 6
      %5791 = vperm.xlu0 %5790, %v3903
      %v5792 = vpop.permute.xlu0 %5791
      %5794 = vset.pattern.permute.xlu0 6
      %5795 = vperm.xlu0 %5794, %v3904
      %v5796 = vpop.permute.xlu0 %5795
      %5798 = vset.pattern.permute.xlu0 6
      %5799 = vperm.xlu0 %5798, %v3905
      %v5800 = vpop.permute.xlu0 %5799
      %5802 = vset.pattern.permute.xlu0 6
      %5803 = vperm.xlu0 %5802, %v3906
      %v5804 = vpop.permute.xlu0 %5803
      %5806 = vset.pattern.permute.xlu0 6
      %5807 = vperm.xlu0 %5806, %v3907
      %v5808 = vpop.permute.xlu0 %5807
      %5810 = vset.pattern.permute.xlu0 6
      %5811 = vperm.xlu0 %5810, %v3908
      %v5812 = vpop.permute.xlu0 %5811
      %5814 = vset.pattern.permute.xlu0 6
      %5815 = vperm.xlu0 %5814, %v3909
      %v5816 = vpop.permute.xlu0 %5815
      %5818 = vset.pattern.permute.xlu0 6
      %5819 = vperm.xlu0 %5818, %v3910
      %v5820 = vpop.permute.xlu0 %5819
      %5822 = vset.pattern.permute.xlu0 6
      %5823 = vperm.xlu0 %5822, %v3911
      %v5824 = vpop.permute.xlu0 %5823
      %5826 = vset.pattern.permute.xlu0 6
      %5827 = vperm.xlu0 %5826, %v3912
      %v5828 = vpop.permute.xlu0 %5827
      %5830 = vset.pattern.permute.xlu0 6
      %5831 = vperm.xlu0 %5830, %v3913
      %v5832 = vpop.permute.xlu0 %5831
      %5834 = vset.pattern.permute.xlu0 6
      %5835 = vperm.xlu0 %5834, %v3914
      %v5836 = vpop.permute.xlu0 %5835
      %5838 = vset.pattern.permute.xlu0 6
      %5839 = vperm.xlu0 %5838, %v3915
      %v5840 = vpop.permute.xlu0 %5839
      %5842 = vset.pattern.permute.xlu0 6
      %5843 = vperm.xlu0 %5842, %v3916
      %v5844 = vpop.permute.xlu0 %5843
      %5846 = vset.pattern.permute.xlu0 6
      %5847 = vperm.xlu0 %5846, %v3917
      %v5848 = vpop.permute.xlu0 %5847
      %5850 = vset.pattern.permute.xlu0 6
      %5851 = vperm.xlu0 %5850, %v3918
      %v5852 = vpop.permute.xlu0 %5851
      %5854 = vset.pattern.permute.xlu0 6
      %5855 = vperm.xlu0 %5854, %v3919
      %v5856 = vpop.permute.xlu0 %5855
      %5858 = vset.pattern.permute.xlu0 6
      %5859 = vperm.xlu0 %5858, %v3920
      %v5860 = vpop.permute.xlu0 %5859
      %5862 = vset.pattern.permute.xlu0 6
      %5863 = vperm.xlu0 %5862, %v3921
      %v5864 = vpop.permute.xlu0 %5863
      %5866 = vset.pattern.permute.xlu0 6
      %5867 = vperm.xlu0 %5866, %v3922
      %v5868 = vpop.permute.xlu0 %5867
      %5870 = vset.pattern.permute.xlu0 6
      %5871 = vperm.xlu0 %5870, %v3923
      %v5872 = vpop.permute.xlu0 %5871
      %5874 = vset.pattern.permute.xlu0 6
      %5875 = vperm.xlu0 %5874, %v3924
      %v5876 = vpop.permute.xlu0 %5875
      %5878 = vset.pattern.permute.xlu0 6
      %5879 = vperm.xlu0 %5878, %v3925
      %v5880 = vpop.permute.xlu0 %5879
      %v5882 = vmul.f32 %v5659, %v5756
      %v5883 = vmul.f32 %v5661, %v5760
      %v5884 = vmul.f32 %v5663, %v5764
      %v5885 = vmul.f32 %v5665, %v5768
      %v5886 = vmul.f32 %v5667, %v5772
      %v5887 = vmul.f32 %v5669, %v5776
      %v5888 = vmul.f32 %v5671, %v5780
      %v5889 = vmul.f32 %v5673, %v5784
      %v5890 = vmul.f32 %v5675, %v5788
      %v5891 = vmul.f32 %v5677, %v5792
      %v5892 = vmul.f32 %v5679, %v5796
      %v5893 = vmul.f32 %v5681, %v5800
      %v5894 = vmul.f32 %v5683, %v5804
      %v5895 = vmul.f32 %v5685, %v5808
      %v5896 = vmul.f32 %v5687, %v5812
      %v5897 = vmul.f32 %v5689, %v5816
      %v5898 = vmul.f32 %v5691, %v5820
      %v5899 = vmul.f32 %v5693, %v5824
      %v5900 = vmul.f32 %v5695, %v5828
      %v5901 = vmul.f32 %v5697, %v5832
      %v5902 = vmul.f32 %v5699, %v5836
      %v5903 = vmul.f32 %v5701, %v5840
      %v5904 = vmul.f32 %v5703, %v5844
      %v5905 = vmul.f32 %v5705, %v5848
      %v5906 = vmul.f32 %v5707, %v5852
      %v5907 = vmul.f32 %v5709, %v5856
      %v5908 = vmul.f32 %v5711, %v5860
      %v5909 = vmul.f32 %v5713, %v5864
      %v5910 = vmul.f32 %v5715, %v5868
      %v5911 = vmul.f32 %v5717, %v5872
      %v5912 = vmul.f32 %v5753, %v5876
      %v5913 = vmul.f32 %v5750, %v5880
      %5946 = vrot.lane.b32.xlu0 %v5882, 64
      %v5947 = vpop.permute.xlu0 %5946
      %5948 = vrot.lane.b32.xlu0 %v5883, 64
      %v5949 = vpop.permute.xlu0 %5948
      %5950 = vrot.lane.b32.xlu0 %v5884, 64
      %v5951 = vpop.permute.xlu0 %5950
      %5952 = vrot.lane.b32.xlu0 %v5885, 64
      %v5953 = vpop.permute.xlu0 %5952
      %5954 = vrot.lane.b32.xlu0 %v5886, 64
      %v5955 = vpop.permute.xlu0 %5954
      %5956 = vrot.lane.b32.xlu0 %v5887, 64
      %v5957 = vpop.permute.xlu0 %5956
      %5958 = vrot.lane.b32.xlu0 %v5888, 64
      %v5959 = vpop.permute.xlu0 %5958
      %5960 = vrot.lane.b32.xlu0 %v5889, 64
      %v5961 = vpop.permute.xlu0 %5960
      %5962 = vrot.lane.b32.xlu0 %v5890, 64
      %v5963 = vpop.permute.xlu0 %5962
      %5964 = vrot.lane.b32.xlu0 %v5891, 64
      %v5965 = vpop.permute.xlu0 %5964
      %5966 = vrot.lane.b32.xlu0 %v5892, 64
      %v5967 = vpop.permute.xlu0 %5966
      %5968 = vrot.lane.b32.xlu0 %v5893, 64
      %v5969 = vpop.permute.xlu0 %5968
      %5970 = vrot.lane.b32.xlu0 %v5894, 64
      %v5971 = vpop.permute.xlu0 %5970
      %5972 = vrot.lane.b32.xlu0 %v5895, 64
      %v5973 = vpop.permute.xlu0 %5972
      %5974 = vrot.lane.b32.xlu0 %v5896, 64
      %v5975 = vpop.permute.xlu0 %5974
      %5976 = vrot.lane.b32.xlu0 %v5897, 64
      %v5977 = vpop.permute.xlu0 %5976
      %5978 = vrot.lane.b32.xlu0 %v5898, 64
      %v5979 = vpop.permute.xlu0 %5978
      %5980 = vrot.lane.b32.xlu0 %v5899, 64
      %v5981 = vpop.permute.xlu0 %5980
      %5982 = vrot.lane.b32.xlu0 %v5900, 64
      %v5983 = vpop.permute.xlu0 %5982
      %5984 = vrot.lane.b32.xlu0 %v5901, 64
      %v5985 = vpop.permute.xlu0 %5984
      %5986 = vrot.lane.b32.xlu0 %v5902, 64
      %v5987 = vpop.permute.xlu0 %5986
      %5988 = vrot.lane.b32.xlu0 %v5903, 64
      %v5989 = vpop.permute.xlu0 %5988
      %5990 = vrot.lane.b32.xlu0 %v5904, 64
      %v5991 = vpop.permute.xlu0 %5990
      %5992 = vrot.lane.b32.xlu0 %v5905, 64
      %v5993 = vpop.permute.xlu0 %5992
      %5994 = vrot.lane.b32.xlu0 %v5906, 64
      %v5995 = vpop.permute.xlu0 %5994
      %5996 = vrot.lane.b32.xlu0 %v5907, 64
      %v5997 = vpop.permute.xlu0 %5996
      %5998 = vrot.lane.b32.xlu0 %v5908, 64
      %v5999 = vpop.permute.xlu0 %5998
      %6000 = vrot.lane.b32.xlu0 %v5909, 64
      %v6001 = vpop.permute.xlu0 %6000
      %6002 = vrot.lane.b32.xlu0 %v5910, 64
      %v6003 = vpop.permute.xlu0 %6002
      %6004 = vrot.lane.b32.xlu0 %v5911, 64
      %v6005 = vpop.permute.xlu0 %6004
      %6006 = vrot.lane.b32.xlu0 %v5912, 64
      %v6007 = vpop.permute.xlu0 %6006
      %6008 = vrot.lane.b32.xlu0 %v5913, 64
      %v6009 = vpop.permute.xlu0 %6008
      %v6042 = vadd.f32 %v5625, %v5947
      %v6043 = vadd.f32 %v5626, %v5949
      %v6044 = vadd.f32 %v5627, %v5951
      %v6045 = vadd.f32 %v5628, %v5953
      %v6046 = vadd.f32 %v5629, %v5955
      %v6047 = vadd.f32 %v5630, %v5957
      %v6048 = vadd.f32 %v5631, %v5959
      %v6049 = vadd.f32 %v5632, %v5961
      %v6050 = vadd.f32 %v5633, %v5963
      %v6051 = vadd.f32 %v5634, %v5965
      %v6052 = vadd.f32 %v5635, %v5967
      %v6053 = vadd.f32 %v5636, %v5969
      %v6054 = vadd.f32 %v5637, %v5971
      %v6055 = vadd.f32 %v5638, %v5973
      %v6056 = vadd.f32 %v5639, %v5975
      %v6057 = vadd.f32 %v5640, %v5977
      %v6058 = vadd.f32 %v5641, %v5979
      %v6059 = vadd.f32 %v5642, %v5981
      %v6060 = vadd.f32 %v5643, %v5983
      %v6061 = vadd.f32 %v5644, %v5985
      %v6062 = vadd.f32 %v5645, %v5987
      %v6063 = vadd.f32 %v5646, %v5989
      %v6064 = vadd.f32 %v5647, %v5991
      %v6065 = vadd.f32 %v5648, %v5993
      %v6066 = vadd.f32 %v5649, %v5995
      %v6067 = vadd.f32 %v5650, %v5997
      %v6068 = vadd.f32 %v5651, %v5999
      %v6069 = vadd.f32 %v5652, %v6001
      %v6070 = vadd.f32 %v5653, %v6003
      %v6071 = vadd.f32 %v5654, %v6005
      %v6072 = vadd.f32 %v5655, %v6007
      %v6073 = vadd.f32 %v5656, %v6009
      %6074 = vset.pattern.permute.xlu0 7
      %6075 = vperm.xlu0 %6074, %v3894
      %v6076 = vpop.permute.xlu0 %6075
      %6078 = vset.pattern.permute.xlu0 7
      %6079 = vperm.xlu0 %6078, %v3895
      %v6080 = vpop.permute.xlu0 %6079
      %6082 = vset.pattern.permute.xlu0 7
      %6083 = vperm.xlu0 %6082, %v3896
      %v6084 = vpop.permute.xlu0 %6083
      %6086 = vset.pattern.permute.xlu0 7
      %6087 = vperm.xlu0 %6086, %v3897
      %v6088 = vpop.permute.xlu0 %6087
      %6090 = vset.pattern.permute.xlu0 7
      %6091 = vperm.xlu0 %6090, %v3898
      %v6092 = vpop.permute.xlu0 %6091
      %6094 = vset.pattern.permute.xlu0 7
      %6095 = vperm.xlu0 %6094, %v3899
      %v6096 = vpop.permute.xlu0 %6095
      %6098 = vset.pattern.permute.xlu0 7
      %6099 = vperm.xlu0 %6098, %v3900
      %v6100 = vpop.permute.xlu0 %6099
      %6102 = vset.pattern.permute.xlu0 7
      %6103 = vperm.xlu0 %6102, %v3901
      %v6104 = vpop.permute.xlu0 %6103
      %6106 = vset.pattern.permute.xlu0 7
      %6107 = vperm.xlu0 %6106, %v3902
      %v6108 = vpop.permute.xlu0 %6107
      %6110 = vset.pattern.permute.xlu0 7
      %6111 = vperm.xlu0 %6110, %v3903
      %v6112 = vpop.permute.xlu0 %6111
      %6114 = vset.pattern.permute.xlu0 7
      %6115 = vperm.xlu0 %6114, %v3904
      %v6116 = vpop.permute.xlu0 %6115
      %6118 = vset.pattern.permute.xlu0 7
      %6119 = vperm.xlu0 %6118, %v3905
      %v6120 = vpop.permute.xlu0 %6119
      %6122 = vset.pattern.permute.xlu0 7
      %6123 = vperm.xlu0 %6122, %v3906
      %v6124 = vpop.permute.xlu0 %6123
      %6126 = vset.pattern.permute.xlu0 7
      %6127 = vperm.xlu0 %6126, %v3907
      %v6128 = vpop.permute.xlu0 %6127
      %6130 = vset.pattern.permute.xlu0 7
      %6131 = vperm.xlu0 %6130, %v3908
      %v6132 = vpop.permute.xlu0 %6131
      %6134 = vset.pattern.permute.xlu0 7
      %6135 = vperm.xlu0 %6134, %v3909
      %v6136 = vpop.permute.xlu0 %6135
      %6138 = vset.pattern.permute.xlu0 7
      %6139 = vperm.xlu0 %6138, %v3910
      %v6140 = vpop.permute.xlu0 %6139
      %6142 = vset.pattern.permute.xlu0 7
      %6143 = vperm.xlu0 %6142, %v3911
      %v6144 = vpop.permute.xlu0 %6143
      %6146 = vset.pattern.permute.xlu0 7
      %6147 = vperm.xlu0 %6146, %v3912
      %v6148 = vpop.permute.xlu0 %6147
      %6150 = vset.pattern.permute.xlu0 7
      %6151 = vperm.xlu0 %6150, %v3913
      %v6152 = vpop.permute.xlu0 %6151
      %6154 = vset.pattern.permute.xlu0 7
      %6155 = vperm.xlu0 %6154, %v3914
      %v6156 = vpop.permute.xlu0 %6155
      %6158 = vset.pattern.permute.xlu0 7
      %6159 = vperm.xlu0 %6158, %v3915
      %v6160 = vpop.permute.xlu0 %6159
      %6162 = vset.pattern.permute.xlu0 7
      %6163 = vperm.xlu0 %6162, %v3916
      %v6164 = vpop.permute.xlu0 %6163
      %6166 = vset.pattern.permute.xlu0 7
      %6167 = vperm.xlu0 %6166, %v3917
      %v6168 = vpop.permute.xlu0 %6167
      %6170 = vset.pattern.permute.xlu0 7
      %6171 = vperm.xlu0 %6170, %v3918
      %v6172 = vpop.permute.xlu0 %6171
      %6174 = vset.pattern.permute.xlu0 7
      %6175 = vperm.xlu0 %6174, %v3919
      %v6176 = vpop.permute.xlu0 %6175
      %6178 = vset.pattern.permute.xlu0 7
      %6179 = vperm.xlu0 %6178, %v3920
      %v6180 = vpop.permute.xlu0 %6179
      %6182 = vset.pattern.permute.xlu0 7
      %6183 = vperm.xlu0 %6182, %v3921
      %v6184 = vpop.permute.xlu0 %6183
      %6186 = vset.pattern.permute.xlu0 7
      %6187 = vperm.xlu0 %6186, %v3922
      %v6188 = vpop.permute.xlu0 %6187
      %6190 = vset.pattern.permute.xlu0 7
      %6191 = vperm.xlu0 %6190, %v3923
      %v6192 = vpop.permute.xlu0 %6191
      %6194 = vset.pattern.permute.xlu0 7
      %6195 = vperm.xlu0 %6194, %v3924
      %v6196 = vpop.permute.xlu0 %6195
      %6198 = vset.pattern.permute.xlu0 7
      %6199 = vperm.xlu0 %6198, %v3925
      %v6200 = vpop.permute.xlu0 %6199
      %v6202 = vmul.f32 %v3363, %v6076
      %v6203 = vmul.f32 %v3369, %v6080
      %v6204 = vmul.f32 %v3375, %v6084
      %v6205 = vmul.f32 %v3381, %v6088
      %v6206 = vmul.f32 %v3387, %v6092
      %v6207 = vmul.f32 %v3393, %v6096
      %v6208 = vmul.f32 %v3399, %v6100
      %v6209 = vmul.f32 %v3405, %v6104
      %v6210 = vmul.f32 %v3411, %v6108
      %v6211 = vmul.f32 %v3417, %v6112
      %v6212 = vmul.f32 %v3423, %v6116
      %v6213 = vmul.f32 %v3429, %v6120
      %v6214 = vmul.f32 %v3435, %v6124
      %v6215 = vmul.f32 %v3441, %v6128
      %v6216 = vmul.f32 %v3447, %v6132
      %v6217 = vmul.f32 %v3453, %v6136
      %v6218 = vmul.f32 %v3459, %v6140
      %v6219 = vmul.f32 %v3465, %v6144
      %v6220 = vmul.f32 %v3471, %v6148
      %v6221 = vmul.f32 %v3477, %v6152
      %v6222 = vmul.f32 %v3483, %v6156
      %v6223 = vmul.f32 %v3489, %v6160
      %v6224 = vmul.f32 %v3495, %v6164
      %v6225 = vmul.f32 %v3501, %v6168
      %v6226 = vmul.f32 %v3507, %v6172
      %v6227 = vmul.f32 %v3513, %v6176
      %v6228 = vmul.f32 %v3519, %v6180
      %v6229 = vmul.f32 %v3525, %v6184
      %v6230 = vmul.f32 %v3531, %v6188
      %v6231 = vmul.f32 %v3537, %v6192
      %v6232 = vmul.f32 %v3351, %v6196
      %v6233 = vmul.f32 %v3357, %v6200
      %6266 = vrot.lane.b32.xlu0 %v6202, 32
      %v6267 = vpop.permute.xlu0 %6266
      %6268 = vrot.lane.b32.xlu0 %v6203, 32
      %v6269 = vpop.permute.xlu0 %6268
      %6270 = vrot.lane.b32.xlu0 %v6204, 32
      %v6271 = vpop.permute.xlu0 %6270
      %6272 = vrot.lane.b32.xlu0 %v6205, 32
      %v6273 = vpop.permute.xlu0 %6272
      %6274 = vrot.lane.b32.xlu0 %v6206, 32
      %v6275 = vpop.permute.xlu0 %6274
      %6276 = vrot.lane.b32.xlu0 %v6207, 32
      %v6277 = vpop.permute.xlu0 %6276
      %6278 = vrot.lane.b32.xlu0 %v6208, 32
      %v6279 = vpop.permute.xlu0 %6278
      %6280 = vrot.lane.b32.xlu0 %v6209, 32
      %v6281 = vpop.permute.xlu0 %6280
      %6282 = vrot.lane.b32.xlu0 %v6210, 32
      %v6283 = vpop.permute.xlu0 %6282
      %6284 = vrot.lane.b32.xlu0 %v6211, 32
      %v6285 = vpop.permute.xlu0 %6284
      %6286 = vrot.lane.b32.xlu0 %v6212, 32
      %v6287 = vpop.permute.xlu0 %6286
      %6288 = vrot.lane.b32.xlu0 %v6213, 32
      %v6289 = vpop.permute.xlu0 %6288
      %6290 = vrot.lane.b32.xlu0 %v6214, 32
      %v6291 = vpop.permute.xlu0 %6290
      %6292 = vrot.lane.b32.xlu0 %v6215, 32
      %v6293 = vpop.permute.xlu0 %6292
      %6294 = vrot.lane.b32.xlu0 %v6216, 32
      %v6295 = vpop.permute.xlu0 %6294
      %6296 = vrot.lane.b32.xlu0 %v6217, 32
      %v6297 = vpop.permute.xlu0 %6296
      %6298 = vrot.lane.b32.xlu0 %v6218, 32
      %v6299 = vpop.permute.xlu0 %6298
      %6300 = vrot.lane.b32.xlu0 %v6219, 32
      %v6301 = vpop.permute.xlu0 %6300
      %6302 = vrot.lane.b32.xlu0 %v6220, 32
      %v6303 = vpop.permute.xlu0 %6302
      %6304 = vrot.lane.b32.xlu0 %v6221, 32
      %v6305 = vpop.permute.xlu0 %6304
      %6306 = vrot.lane.b32.xlu0 %v6222, 32
      %v6307 = vpop.permute.xlu0 %6306
      %6308 = vrot.lane.b32.xlu0 %v6223, 32
      %v6309 = vpop.permute.xlu0 %6308
      %6310 = vrot.lane.b32.xlu0 %v6224, 32
      %v6311 = vpop.permute.xlu0 %6310
      %6312 = vrot.lane.b32.xlu0 %v6225, 32
      %v6313 = vpop.permute.xlu0 %6312
      %6314 = vrot.lane.b32.xlu0 %v6226, 32
      %v6315 = vpop.permute.xlu0 %6314
      %6316 = vrot.lane.b32.xlu0 %v6227, 32
      %v6317 = vpop.permute.xlu0 %6316
      %6318 = vrot.lane.b32.xlu0 %v6228, 32
      %v6319 = vpop.permute.xlu0 %6318
      %6320 = vrot.lane.b32.xlu0 %v6229, 32
      %v6321 = vpop.permute.xlu0 %6320
      %6322 = vrot.lane.b32.xlu0 %v6230, 32
      %v6323 = vpop.permute.xlu0 %6322
      %6324 = vrot.lane.b32.xlu0 %v6231, 32
      %v6325 = vpop.permute.xlu0 %6324
      %6326 = vrot.lane.b32.xlu0 %v6232, 32
      %v6327 = vpop.permute.xlu0 %6326
      %6328 = vrot.lane.b32.xlu0 %v6233, 32
      %v6329 = vpop.permute.xlu0 %6328
      %v6362 = vadd.f32 %v6042, %v6267
      %v6363 = vadd.f32 %v6043, %v6269
      %v6364 = vadd.f32 %v6044, %v6271
      %v6365 = vadd.f32 %v6045, %v6273
      %v6366 = vadd.f32 %v6046, %v6275
      %v6367 = vadd.f32 %v6047, %v6277
      %v6368 = vadd.f32 %v6048, %v6279
      %v6369 = vadd.f32 %v6049, %v6281
      %v6370 = vadd.f32 %v6050, %v6283
      %v6371 = vadd.f32 %v6051, %v6285
      %v6372 = vadd.f32 %v6052, %v6287
      %v6373 = vadd.f32 %v6053, %v6289
      %v6374 = vadd.f32 %v6054, %v6291
      %v6375 = vadd.f32 %v6055, %v6293
      %v6376 = vadd.f32 %v6056, %v6295
      %v6377 = vadd.f32 %v6057, %v6297
      %v6378 = vadd.f32 %v6058, %v6299
      %v6379 = vadd.f32 %v6059, %v6301
      %v6380 = vadd.f32 %v6060, %v6303
      %v6381 = vadd.f32 %v6061, %v6305
      %v6382 = vadd.f32 %v6062, %v6307
      %v6383 = vadd.f32 %v6063, %v6309
      %v6384 = vadd.f32 %v6064, %v6311
      %v6385 = vadd.f32 %v6065, %v6313
      %v6386 = vadd.f32 %v6066, %v6315
      %v6387 = vadd.f32 %v6067, %v6317
      %v6388 = vadd.f32 %v6068, %v6319
      %v6389 = vadd.f32 %v6069, %v6321
      %v6390 = vadd.f32 %v6070, %v6323
      %v6391 = vadd.f32 %v6071, %v6325
      %v6392 = vadd.f32 %v6072, %v6327
      %v6393 = vadd.f32 %v6073, %v6329
      %v6424 = vrot.slane %v3616, 1
      %v6425 = vrot.slane %v3621, 1
      %v6426 = vsel %vm4438, %v6424, %v6425
      %v6427 = vrot.slane %v3626, 1
      %v6428 = vsel %vm4438, %v6425, %v6427
      %v6429 = vrot.slane %v3631, 1
      %v6430 = vsel %vm4438, %v6427, %v6429
      %v6431 = vrot.slane %v3636, 1
      %v6432 = vsel %vm4438, %v6429, %v6431
      %v6433 = vrot.slane %v3641, 1
      %v6434 = vsel %vm4438, %v6431, %v6433
      %v6435 = vrot.slane %v3646, 1
      %v6436 = vsel %vm4438, %v6433, %v6435
      %v6437 = vrot.slane %v3651, 1
      %v6438 = vsel %vm4438, %v6435, %v6437
      %v6439 = vrot.slane %v3656, 1
      %v6440 = vsel %vm4438, %v6437, %v6439
      %v6441 = vrot.slane %v3661, 1
      %v6442 = vsel %vm4438, %v6439, %v6441
      %v6443 = vrot.slane %v3666, 1
      %v6444 = vsel %vm4438, %v6441, %v6443
      %v6445 = vrot.slane %v3671, 1
      %v6446 = vsel %vm4438, %v6443, %v6445
      %v6447 = vrot.slane %v3676, 1
      %v6448 = vsel %vm4438, %v6445, %v6447
      %v6449 = vrot.slane %v3681, 1
      %v6450 = vsel %vm4438, %v6447, %v6449
      %v6451 = vrot.slane %v3686, 1
      %v6452 = vsel %vm4438, %v6449, %v6451
      %v6453 = vrot.slane %v3691, 1
      %v6454 = vsel %vm4438, %v6451, %v6453
      %v6455 = vrot.slane %v3696, 1
      %v6456 = vsel %vm4438, %v6453, %v6455
      %v6457 = vrot.slane %v3701, 1
      %v6458 = vsel %vm4438, %v6455, %v6457
      %v6459 = vrot.slane %v3706, 1
      %v6460 = vsel %vm4438, %v6457, %v6459
      %v6461 = vrot.slane %v3711, 1
      %v6462 = vsel %vm4438, %v6459, %v6461
      %v6463 = vrot.slane %v3716, 1
      %v6464 = vsel %vm4438, %v6461, %v6463
      %v6465 = vrot.slane %v3721, 1
      %v6466 = vsel %vm4438, %v6463, %v6465
      %v6467 = vrot.slane %v3726, 1
      %v6468 = vsel %vm4438, %v6465, %v6467
      %v6469 = vrot.slane %v3731, 1
      %v6470 = vsel %vm4438, %v6467, %v6469
      %v6471 = vrot.slane %v3736, 1
      %v6472 = vsel %vm4438, %v6469, %v6471
      %v6473 = vrot.slane %v3741, 1
      %v6474 = vsel %vm4438, %v6471, %v6473
      %v6475 = vrot.slane %v3746, 1
      %v6476 = vsel %vm4438, %v6473, %v6475
      %v6477 = vrot.slane %v3751, 1
      %v6478 = vsel %vm4438, %v6475, %v6477
      %v6479 = vrot.slane %v3756, 1
      %v6480 = vsel %vm4438, %v6477, %v6479
      %v6481 = vrot.slane %v3761, 1
      %v6482 = vsel %vm4438, %v6479, %v6481
      %v6515 = vrot.slane %v3606, 1
      %v6516 = vrot.slane %v3611, 1
      %v6517 = vsel %vm4438, %v6515, %v6516
      %v6518 = vsel %vm4438, %v6516, %v6424
      %v6522 = vsel %vm4438, %v6481, %v6515
      %6523 = vset.pattern.permute.xlu0 8
      %6524 = vperm.xlu0 %6523, %v3894
      %v6525 = vpop.permute.xlu0 %6524
      %6527 = vset.pattern.permute.xlu0 8
      %6528 = vperm.xlu0 %6527, %v3895
      %v6529 = vpop.permute.xlu0 %6528
      %6531 = vset.pattern.permute.xlu0 8
      %6532 = vperm.xlu0 %6531, %v3896
      %v6533 = vpop.permute.xlu0 %6532
      %6535 = vset.pattern.permute.xlu0 8
      %6536 = vperm.xlu0 %6535, %v3897
      %v6537 = vpop.permute.xlu0 %6536
      %6539 = vset.pattern.permute.xlu0 8
      %6540 = vperm.xlu0 %6539, %v3898
      %v6541 = vpop.permute.xlu0 %6540
      %6543 = vset.pattern.permute.xlu0 8
      %6544 = vperm.xlu0 %6543, %v3899
      %v6545 = vpop.permute.xlu0 %6544
      %6547 = vset.pattern.permute.xlu0 8
      %6548 = vperm.xlu0 %6547, %v3900
      %v6549 = vpop.permute.xlu0 %6548
      %6551 = vset.pattern.permute.xlu0 8
      %6552 = vperm.xlu0 %6551, %v3901
      %v6553 = vpop.permute.xlu0 %6552
      %6555 = vset.pattern.permute.xlu0 8
      %6556 = vperm.xlu0 %6555, %v3902
      %v6557 = vpop.permute.xlu0 %6556
      %6559 = vset.pattern.permute.xlu0 8
      %6560 = vperm.xlu0 %6559, %v3903
      %v6561 = vpop.permute.xlu0 %6560
      %6563 = vset.pattern.permute.xlu0 8
      %6564 = vperm.xlu0 %6563, %v3904
      %v6565 = vpop.permute.xlu0 %6564
      %6567 = vset.pattern.permute.xlu0 8
      %6568 = vperm.xlu0 %6567, %v3905
      %v6569 = vpop.permute.xlu0 %6568
      %6571 = vset.pattern.permute.xlu0 8
      %6572 = vperm.xlu0 %6571, %v3906
      %v6573 = vpop.permute.xlu0 %6572
      %6575 = vset.pattern.permute.xlu0 8
      %6576 = vperm.xlu0 %6575, %v3907
      %v6577 = vpop.permute.xlu0 %6576
      %6579 = vset.pattern.permute.xlu0 8
      %6580 = vperm.xlu0 %6579, %v3908
      %v6581 = vpop.permute.xlu0 %6580
      %6583 = vset.pattern.permute.xlu0 8
      %6584 = vperm.xlu0 %6583, %v3909
      %v6585 = vpop.permute.xlu0 %6584
      %6587 = vset.pattern.permute.xlu0 8
      %6588 = vperm.xlu0 %6587, %v3910
      %v6589 = vpop.permute.xlu0 %6588
      %6591 = vset.pattern.permute.xlu0 8
      %6592 = vperm.xlu0 %6591, %v3911
      %v6593 = vpop.permute.xlu0 %6592
      %6595 = vset.pattern.permute.xlu0 8
      %6596 = vperm.xlu0 %6595, %v3912
      %v6597 = vpop.permute.xlu0 %6596
      %6599 = vset.pattern.permute.xlu0 8
      %6600 = vperm.xlu0 %6599, %v3913
      %v6601 = vpop.permute.xlu0 %6600
      %6603 = vset.pattern.permute.xlu0 8
      %6604 = vperm.xlu0 %6603, %v3914
      %v6605 = vpop.permute.xlu0 %6604
      %6607 = vset.pattern.permute.xlu0 8
      %6608 = vperm.xlu0 %6607, %v3915
      %v6609 = vpop.permute.xlu0 %6608
      %6611 = vset.pattern.permute.xlu0 8
      %6612 = vperm.xlu0 %6611, %v3916
      %v6613 = vpop.permute.xlu0 %6612
      %6615 = vset.pattern.permute.xlu0 8
      %6616 = vperm.xlu0 %6615, %v3917
      %v6617 = vpop.permute.xlu0 %6616
      %6619 = vset.pattern.permute.xlu0 8
      %6620 = vperm.xlu0 %6619, %v3918
      %v6621 = vpop.permute.xlu0 %6620
      %6623 = vset.pattern.permute.xlu0 8
      %6624 = vperm.xlu0 %6623, %v3919
      %v6625 = vpop.permute.xlu0 %6624
      %6627 = vset.pattern.permute.xlu0 8
      %6628 = vperm.xlu0 %6627, %v3920
      %v6629 = vpop.permute.xlu0 %6628
      %6631 = vset.pattern.permute.xlu0 8
      %6632 = vperm.xlu0 %6631, %v3921
      %v6633 = vpop.permute.xlu0 %6632
      %6635 = vset.pattern.permute.xlu0 8
      %6636 = vperm.xlu0 %6635, %v3922
      %v6637 = vpop.permute.xlu0 %6636
      %6639 = vset.pattern.permute.xlu0 8
      %6640 = vperm.xlu0 %6639, %v3923
      %v6641 = vpop.permute.xlu0 %6640
      %6643 = vset.pattern.permute.xlu0 8
      %6644 = vperm.xlu0 %6643, %v3924
      %v6645 = vpop.permute.xlu0 %6644
      %6647 = vset.pattern.permute.xlu0 8
      %6648 = vperm.xlu0 %6647, %v3925
      %v6649 = vpop.permute.xlu0 %6648
      %v6651 = vmul.f32 %v6426, %v6525
      %v6652 = vmul.f32 %v6428, %v6529
      %v6653 = vmul.f32 %v6430, %v6533
      %v6654 = vmul.f32 %v6432, %v6537
      %v6655 = vmul.f32 %v6434, %v6541
      %v6656 = vmul.f32 %v6436, %v6545
      %v6657 = vmul.f32 %v6438, %v6549
      %v6658 = vmul.f32 %v6440, %v6553
      %v6659 = vmul.f32 %v6442, %v6557
      %v6660 = vmul.f32 %v6444, %v6561
      %v6661 = vmul.f32 %v6446, %v6565
      %v6662 = vmul.f32 %v6448, %v6569
      %v6663 = vmul.f32 %v6450, %v6573
      %v6664 = vmul.f32 %v6452, %v6577
      %v6665 = vmul.f32 %v6454, %v6581
      %v6666 = vmul.f32 %v6456, %v6585
      %v6667 = vmul.f32 %v6458, %v6589
      %v6668 = vmul.f32 %v6460, %v6593
      %v6669 = vmul.f32 %v6462, %v6597
      %v6670 = vmul.f32 %v6464, %v6601
      %v6671 = vmul.f32 %v6466, %v6605
      %v6672 = vmul.f32 %v6468, %v6609
      %v6673 = vmul.f32 %v6470, %v6613
      %v6674 = vmul.f32 %v6472, %v6617
      %v6675 = vmul.f32 %v6474, %v6621
      %v6676 = vmul.f32 %v6476, %v6625
      %v6677 = vmul.f32 %v6478, %v6629
      %v6678 = vmul.f32 %v6480, %v6633
      %v6679 = vmul.f32 %v6482, %v6637
      %v6680 = vmul.f32 %v6522, %v6641
      %v6681 = vmul.f32 %v6517, %v6645
      %v6682 = vmul.f32 %v6518, %v6649
      %v6683 = vadd.f32 %v6362, %v6651
      %v6684 = vadd.f32 %v6363, %v6652
      %v6685 = vadd.f32 %v6364, %v6653
      %v6686 = vadd.f32 %v6365, %v6654
      %v6687 = vadd.f32 %v6366, %v6655
      %v6688 = vadd.f32 %v6367, %v6656
      %v6689 = vadd.f32 %v6368, %v6657
      %v6690 = vadd.f32 %v6369, %v6658
      %v6691 = vadd.f32 %v6370, %v6659
      %v6692 = vadd.f32 %v6371, %v6660
      %v6693 = vadd.f32 %v6372, %v6661
      %v6694 = vadd.f32 %v6373, %v6662
      %v6695 = vadd.f32 %v6374, %v6663
      %v6696 = vadd.f32 %v6375, %v6664
      %v6697 = vadd.f32 %v6376, %v6665
      %v6698 = vadd.f32 %v6377, %v6666
      %v6699 = vadd.f32 %v6378, %v6667
      %v6700 = vadd.f32 %v6379, %v6668
      %v6701 = vadd.f32 %v6380, %v6669
      %v6702 = vadd.f32 %v6381, %v6670
      %v6703 = vadd.f32 %v6382, %v6671
      %v6704 = vadd.f32 %v6383, %v6672
      %v6705 = vadd.f32 %v6384, %v6673
      %v6706 = vadd.f32 %v6385, %v6674
      %v6707 = vadd.f32 %v6386, %v6675
      %v6708 = vadd.f32 %v6387, %v6676
      %v6709 = vadd.f32 %v6388, %v6677
      %v6710 = vadd.f32 %v6389, %v6678
      %v6711 = vadd.f32 %v6390, %v6679
      %v6712 = vadd.f32 %v6391, %v6680
      %v6713 = vadd.f32 %v6392, %v6681
      %v6714 = vadd.f32 %v6393, %v6682
      %v6715 = vld [vmem:[%s9] sm:$0x1]
      %v6717 = vlaneseq
      %v6718 = vshrl.u32 %v6717, 7
      %v6719 = vsub.s32 0, %v6718
      %v6720 = vrot.slane %v6715, %v6719
      %v6722 = vadd.f32 %v6683, %v6720
      %v6723 = vadd.f32 %v6684, %v6720
      %v6724 = vadd.f32 %v6685, %v6720
      %v6725 = vadd.f32 %v6686, %v6720
      %v6726 = vadd.f32 %v6687, %v6720
      %v6727 = vadd.f32 %v6688, %v6720
      %v6728 = vadd.f32 %v6689, %v6720
      %v6729 = vadd.f32 %v6690, %v6720
      %v6730 = vadd.f32 %v6691, %v6720
      %v6731 = vadd.f32 %v6692, %v6720
      %v6732 = vadd.f32 %v6693, %v6720
      %v6733 = vadd.f32 %v6694, %v6720
      %v6734 = vadd.f32 %v6695, %v6720
      %v6735 = vadd.f32 %v6696, %v6720
      %v6736 = vadd.f32 %v6697, %v6720
      %v6737 = vadd.f32 %v6698, %v6720
      %v6738 = vadd.f32 %v6699, %v6720
      %v6739 = vadd.f32 %v6700, %v6720
      %v6740 = vadd.f32 %v6701, %v6720
      %v6741 = vadd.f32 %v6702, %v6720
      %v6742 = vadd.f32 %v6703, %v6720
      %v6743 = vadd.f32 %v6704, %v6720
      %v6744 = vadd.f32 %v6705, %v6720
      %v6745 = vadd.f32 %v6706, %v6720
      %v6746 = vadd.f32 %v6707, %v6720
      %v6747 = vadd.f32 %v6708, %v6720
      %v6748 = vadd.f32 %v6709, %v6720
      %v6749 = vadd.f32 %v6710, %v6720
      %v6750 = vadd.f32 %v6711, %v6720
      %v6751 = vadd.f32 %v6712, %v6720
      %v6752 = vadd.f32 %v6713, %v6720
      %v6753 = vadd.f32 %v6714, %v6720
      %v6754 = vmax.f32 %v6722, 0.0
      %v6755 = vmax.f32 %v6723, 0.0
      %v6756 = vmax.f32 %v6724, 0.0
      %v6757 = vmax.f32 %v6725, 0.0
      %v6758 = vmax.f32 %v6726, 0.0
      %v6759 = vmax.f32 %v6727, 0.0
      %v6760 = vmax.f32 %v6728, 0.0
      %v6761 = vmax.f32 %v6729, 0.0
      %v6762 = vmax.f32 %v6730, 0.0
      %v6763 = vmax.f32 %v6731, 0.0
      %v6764 = vmax.f32 %v6732, 0.0
      %v6765 = vmax.f32 %v6733, 0.0
      %v6766 = vmax.f32 %v6734, 0.0
      %v6767 = vmax.f32 %v6735, 0.0
      %v6768 = vmax.f32 %v6736, 0.0
      %v6769 = vmax.f32 %v6737, 0.0
      %v6770 = vmax.f32 %v6738, 0.0
      %v6771 = vmax.f32 %v6739, 0.0
      %v6772 = vmax.f32 %v6740, 0.0
      %v6773 = vmax.f32 %v6741, 0.0
      %v6774 = vmax.f32 %v6742, 0.0
      %v6775 = vmax.f32 %v6743, 0.0
      %v6776 = vmax.f32 %v6744, 0.0
      %v6777 = vmax.f32 %v6745, 0.0
      %v6778 = vmax.f32 %v6746, 0.0
      %v6779 = vmax.f32 %v6747, 0.0
      %v6780 = vmax.f32 %v6748, 0.0
      %v6781 = vmax.f32 %v6749, 0.0
      %v6782 = vmax.f32 %v6750, 0.0
      %v6783 = vmax.f32 %v6751, 0.0
      %v6784 = vmax.f32 %v6752, 0.0
      %v6785 = vmax.f32 %v6753, 0.0
      %6786 = vst.msk [vmem:[%s406] sm:$0xff] %vm450, %v6754
      %6787 = vst.msk [vmem:[%s406 + $0x8] sm:$0xff] %vm450, %v6755
      %6788 = vst.msk [vmem:[%s406 + $0x10] sm:$0xff] %vm450, %v6756
      %6789 = vst.msk [vmem:[%s406 + $0x18] sm:$0xff] %vm450, %v6757
      %6790 = vst.msk [vmem:[%s406 + $0x20] sm:$0xff] %vm450, %v6758
      %6791 = vst.msk [vmem:[%s406 + $0x28] sm:$0xff] %vm450, %v6759
      %6792 = vst.msk [vmem:[%s406 + $0x30] sm:$0xff] %vm450, %v6760
      %6793 = vst.msk [vmem:[%s406 + $0x38] sm:$0xff] %vm450, %v6761
      %6794 = vst.msk [vmem:[%s406 + $0x40] sm:$0xff] %vm450, %v6762
      %6795 = vst.msk [vmem:[%s406 + $0x48] sm:$0xff] %vm450, %v6763
      %6796 = vst.msk [vmem:[%s406 + $0x50] sm:$0xff] %vm450, %v6764
      %6797 = vst.msk [vmem:[%s406 + $0x58] sm:$0xff] %vm450, %v6765
      %6798 = vst.msk [vmem:[%s406 + $0x60] sm:$0xff] %vm450, %v6766
      %6799 = vst.msk [vmem:[%s406 + $0x68] sm:$0xff] %vm450, %v6767
      %6800 = vst.msk [vmem:[%s406 + $0x70] sm:$0xff] %vm450, %v6768
      %6801 = vst.msk [vmem:[%s406 + $0x78] sm:$0xff] %vm450, %v6769
      %6802 = vst.msk [vmem:[%s406 + $0x80] sm:$0xff] %vm450, %v6770
      %6803 = vst.msk [vmem:[%s406 + $0x88] sm:$0xff] %vm450, %v6771
      %6804 = vst.msk [vmem:[%s406 + $0x90] sm:$0xff] %vm450, %v6772
      %6805 = vst.msk [vmem:[%s406 + $0x98] sm:$0xff] %vm450, %v6773
      %6806 = vst.msk [vmem:[%s406 + $0xa0] sm:$0xff] %vm450, %v6774
      %6807 = vst.msk [vmem:[%s406 + $0xa8] sm:$0xff] %vm450, %v6775
      %6808 = vst.msk [vmem:[%s406 + $0xb0] sm:$0xff] %vm450, %v6776
      %6809 = vst.msk [vmem:[%s406 + $0xb8] sm:$0xff] %vm450, %v6777
      %6810 = vst.msk [vmem:[%s406 + $0xc0] sm:$0xff] %vm450, %v6778
      %6811 = vst.msk [vmem:[%s406 + $0xc8] sm:$0xff] %vm450, %v6779
      %6812 = vst.msk [vmem:[%s406 + $0xd0] sm:$0xff] %vm450, %v6780
      %6813 = vst.msk [vmem:[%s406 + $0xd8] sm:$0xff] %vm450, %v6781
      %6814 = vst.msk [vmem:[%s406 + $0xe0] sm:$0xff] %vm450, %v6782
      %6815 = vst.msk [vmem:[%s406 + $0xe8] sm:$0xff] %vm450, %v6783
      %6816 = vst.msk [vmem:[%s406 + $0xf0] sm:$0xff] %vm450, %v6784
      %6817 = vst.msk [vmem:[%s406 + $0xf8] sm:$0xff] %vm450, %v6785
      %p6818 = scmp.lt.s32.totalorder %s22, 1
      %s6819 = scalar_select %p6818, %s22, 1
      %s6820 = smul.addr %s6819, 32
      %s6821 = smul.addr %s6820, 8
      %s6822 = scalar_lea.vmem %s11, %s6821
      // Predicated region
      $region65: #{tpu_custom_call.1} parent=63 // pred_check
        %p6823 = pneg %p281
      $region66: #{tpu_custom_call.1} parent=63 // pred_check_branch
        %6825 = sbr.rel (%p6823) target = $region68
      $region67: #{tpu_custom_call.1} parent=63 // pred_region
        _
      $region68: #{tpu_custom_call.1} parent=63 // pred_fallthru
        _
    $region64: #{tpu_custom_call.1} parent=5 // pred_fallthru
      _
    %p6826 = scmp.le.s32.totalorder 2, %s17
    // Predicated region
    $region69: #{tpu_custom_call.1} parent=5 // pred_check
      %p6827 = pneg %p6826
    $region70: #{tpu_custom_call.1} parent=5 // pred_check_branch
      %6829 = sbr.rel (%p6827) target = $region72
    $region71: #{tpu_custom_call.1} parent=5 // pred_region
      %s6830 = ssub.s32 %s17, 2
      // Predicated region
      $region73: #{tpu_custom_call.1} parent=71 // pred_check
        %p6831 = pneg %p287
      $region74: #{tpu_custom_call.1} parent=71 // pred_check_branch
        %6833 = sbr.rel (%p6831) target = $region76
      $region75: #{tpu_custom_call.1} parent=71 // pred_region
        %p6834 = scmp.lt.s32.totalorder %s23, 1
        %s6835 = scalar_select %p6834, %s23, 1
        %s6836 = smul.addr %s6835, 32
        %s6837 = smul.addr %s6836, 8
        %s6838 = scalar_lea.vmem %s11, %s6837
      $region76: #{tpu_custom_call.1} parent=71 // pred_fallthru
        _
    $region72: #{tpu_custom_call.1} parent=5 // pred_fallthru
      _
  $region6: #{tpu_custom_call.1} parent=0 // loop_footer
    %s21 = sadd.s32 1, %s17
  $region7: #{tpu_custom_call.1} parent=0 // loop_footer_branch
    %16 = sbr.rel target = $region3
  $region8: #{tpu_custom_call.1} parent=0 // loop_exit
    _

</llo_original>
